<compile_context>
chip_gen: v5e
topology: v5e:2x2
jax: 0.10.0
libtpu: 0.0.40
codegen_flags: <defaults>
</compile_context>

<pallas_src>
import functools
import math

import jax
import jax.numpy as jnp
from jax.experimental import pallas as pl
from jax.experimental.pallas import tpu as pltpu


# ------------------------------ in-kernel helpers ------------------------------

_LN_EPS = 1e-5
_N_ENC_PARAMS = 12  # arrays per encoder stack (see init_encoder_stack order)


def _bf16(x):
    return x.astype(jnp.bfloat16)


def _layernorm(x, g, b):
    mu = jnp.mean(x, axis=-1, keepdims=True)
    var = jnp.mean((x - mu) ** 2, axis=-1, keepdims=True)
    return (x - mu) * jax.lax.rsqrt(var + _LN_EPS) * g + b


def _encoder_layer(x, wqkv, bqkv, wo, bo, ln1g, ln1b, w1, b1, w2, b2,
                   ln2g, ln2b, nhead, neg_mask):
    """One post-norm nn.TransformerEncoderLayer (eval mode) on an (L, E) slab."""
    L, E = x.shape
    hd = E // nhead
    scale = 1.0 / math.sqrt(hd)

    # Fused QKV projection: one wide lane-dense (L, 3E) matmul on the MXU.
    qkv = jnp.dot(_bf16(x), wqkv, preferred_element_type=jnp.float32) + bqkv

    # Stack heads along the sublane axis -> (nhead*L, hd); all heads then share
    # ONE score matmul, ONE softmax and ONE PV matmul (block-diag head mask).
    q2 = jnp.concatenate([qkv[:, h * hd:(h + 1) * hd] for h in range(nhead)], axis=0)
    k2 = jnp.concatenate([qkv[:, E + h * hd:E + (h + 1) * hd] for h in range(nhead)], axis=0)
    v2 = jnp.concatenate([qkv[:, 2 * E + h * hd:2 * E + (h + 1) * hd] for h in range(nhead)], axis=0)

    s = jax.lax.dot_general(_bf16(q2), _bf16(k2), (((1,), (1,)), ((), ())),
                            preferred_element_type=jnp.float32) * scale
    s = s + neg_mask                                   # -1e30 off the per-head blocks
    m = jnp.max(s, axis=-1, keepdims=True)
    p = jnp.exp(s - m)
    p = p / jnp.sum(p, axis=-1, keepdims=True)         # exact softmax (f32)
    ctx2 = jnp.dot(_bf16(p), _bf16(v2), preferred_element_type=jnp.float32)  # (H*L, hd)

    # Un-stack heads back to (L, E) and apply ONE (L,E)@(E,E) output projection.
    ctx = jnp.concatenate([ctx2[h * L:(h + 1) * L, :] for h in range(nhead)], axis=-1)
    attn = jnp.dot(_bf16(ctx), wo, preferred_element_type=jnp.float32) + bo

    # add + LayerNorm 1, feed-forward, add + LayerNorm 2 (dropout = identity).
    h1 = _layernorm(x + attn, ln1g, ln1b)
    ff = jnp.dot(_bf16(h1), w1, preferred_element_type=jnp.float32) + b1
    ff = jnp.maximum(ff, 0.0)
    ff = jnp.dot(_bf16(ff), w2, preferred_element_type=jnp.float32) + b2
    return _layernorm(h1 + ff, ln2g, ln2b)


def _run_stack(x, refs, nhead, neg_mask):
    """Run all layers of one encoder stack (weights stacked on a layer axis)."""
    (wqkv, bqkv, wo, bo, ln1g, ln1b, w1, b1, w2, b2, ln2g, ln2b) = refs
    n_layers = wqkv.shape[0]
    for l in range(n_layers):
        x = _encoder_layer(x, wqkv[l], bqkv[l], wo[l], bo[l],
                           ln1g[l], ln1b[l], w1[l], b1[l],
                           w2[l], b2[l], ln2g[l], ln2b[l],
                           nhead, neg_mask)
    return x


# ----------------------- the single fused whole-model kernel -----------------------

def _irms_kernel(*args, nh1, nh2, nhf):
    o_ref = args[-1]
    it = iter(args[:-1])
    nxt = lambda: next(it)

    s1_ref, s2_ref, pe_ref = nxt(), nxt(), nxt()
    s1w, s1b = nxt(), nxt()
    s2w1, s2b1, s2w2, s2b2 = nxt(), nxt(), nxt(), nxt()
    s1bf_w, s1bf_b = nxt(), nxt()
    mask1, mask2, maskf = nxt(), nxt(), nxt()
    enc1 = [nxt() for _ in range(_N_ENC_PARAMS)]
    enc2 = [nxt() for _ in range(_N_ENC_PARAMS)]
    encf = [nxt() for _ in range(_N_ENC_PARAMS)]
    fc1w, fc1b, fc2w, fc2b, fc3w, fc3b = (nxt() for _ in range(6))

    # ---------------- S1 branch: embedding + (2*x + pe) + encoder stack ----------------
    x1 = jnp.dot(_bf16(s1_ref[...]), s1w[...], preferred_element_type=jnp.float32) + s1b[...]
    x1 = 2.0 * x1 + pe_ref[...]            # PyTorch: S1 += PE(S1)  ==>  2*S1 + pe
    x1 = _run_stack(x1, enc1, nh1, mask1[...])

    # ---- S2 branch: time/value tuple embeddings (block-diag merged MLP) + encoder ----
    h = jnp.dot(_bf16(s2_ref[...]), s2w1[...], preferred_element_type=jnp.float32) + s2b1[...]
    h = jnp.maximum(h, 0.0)
    x2 = jnp.dot(_bf16(h), s2w2[...], preferred_element_type=jnp.float32) + s2b2[...]
    x2 = _run_stack(x2, enc2, nh2, mask2[...])

    # ---- fusion: seq-axis linear on S1 + in-register feature concat + encoder ----
    y1 = jnp.dot(s1bf_w[...], _bf16(x1), preferred_element_type=jnp.float32) + s1bf_b[...]
    s = jnp.concatenate([y1, x2], axis=-1)                     # (Lf, d1 + d2)
    s = _run_stack(s, encf, nhf, maskf[...])

    # ---- classifier head: flatten folded into per-row fc1 blocks, BN folded, ReLU ----
    # TODO(synk): dropout layers are identity (eval-mode forward pass).
    Lf = s.shape[0]
    h = fc1b[...]                                              # (1, 512)
    for f in range(Lf):
        h = h + jnp.dot(_bf16(s[f:f + 1, :]), fc1w[f], preferred_element_type=jnp.float32)
    h = jnp.maximum(h, 0.0)
    h = jnp.dot(_bf16(h), fc2w[...], preferred_element_type=jnp.float32) + fc2b[...]
    h = jnp.maximum(h, 0.0)
    o_ref[...] = jnp.dot(_bf16(h), fc3w[...], preferred_element_type=jnp.float32) + fc3b[...]


def irms_forward(params, S1, S2, *, n_head_s1, n_head_s2, n_head_f, num_classes):
    """Whole IRMSTransformer forward: ONE pallas_call, grid over the batch."""
    B, L1, _ = S1.shape
    assert S2.shape[0] == B
    assert params["pe"].shape[0] == L1

    ins, specs = [], []

    def const_map(nd):
        return lambda b: (0,) * nd

    def add_full(x):
        ins.append(x)
        specs.append(pl.BlockSpec(x.shape, const_map(x.ndim)))

    def add_batched(x):
        ins.append(x)
        nd = x.ndim - 1
        specs.append(pl.BlockSpec((None,) + x.shape[1:],
                                  lambda b, nd=nd: (b,) + (0,) * nd))

    add_batched(S1)
    add_batched(S2)
    add_full(params["pe"])
    add_full(params["s1_emb_w"]); add_full(params["s1_emb_b"])
    for k in ("s2_w1", "s2_b1", "s2_w2", "s2_b2"):
        add_full(params[k])
    add_full(params["s1bf_w"]); add_full(params["s1bf_b"])
    add_full(params["mask_s1"]); add_full(params["mask_s2"]); add_full(params["mask_f"])
    for stack in ("s1_enc", "s2_enc", "fusion_enc"):
        for arr in params[stack]:
            add_full(arr)
    for k in ("fc1_w", "fc1_b", "fc2_w", "fc2_b", "fc3_w", "fc3_b"):
        add_full(params[k])

    out = pl.pallas_call(
        functools.partial(_irms_kernel, nh1=n_head_s1, nh2=n_head_s2, nhf=n_head_f),
        out_shape=jax.ShapeDtypeStruct((B, 1, num_classes), jnp.float32),
        grid=(B,),
        in_specs=specs,
        out_specs=pl.BlockSpec((None, 1, num_classes), lambda b: (b, 0, 0)),
        compiler_params=pltpu.CompilerParams(dimension_semantics=("parallel",)),
    )(*ins)
    return out.reshape(B, num_classes)


# ------------------------------- parameters (all preprocessing at init) -------------------------------

class KeyGen:
    def __init__(self, key):
        self.key = key

    def __call__(self):
        self.key, k = jax.random.split(self.key)
        return k


def make_pe(d_model, seq_length):
    pos = jnp.arange(seq_length, dtype=jnp.float32)[:, None]
    div = jnp.exp(jnp.arange(0, d_model, 2, dtype=jnp.float32)
                  * (-math.log(10000.0) / d_model))
    pe = jnp.zeros((seq_length, d_model), jnp.float32)
    pe = pe.at[:, 0::2].set(jnp.sin(pos * div))
    pe = pe.at[:, 1::2].set(jnp.cos(pos * div))
    return pe                                        # (seq, d_model)


def make_head_mask(nhead, seq_len):
    """Additive block-diagonal mask so all heads share one softmax: 0 on the
    per-head (L,L) blocks of the (nhead*L, nhead*L) score matrix, -1e30 off."""
    hl = nhead * seq_len
    hid = jnp.arange(hl) // seq_len
    same = hid[:, None] == hid[None, :]
    return jnp.where(same, 0.0, -1e30).astype(jnp.float32)


def _fold_bn(w, b, bn, eps=1e-5):
    # Eval-mode BatchNorm1d folded into the preceding linear: zero runtime cost.
    scale = bn["gamma"] * jax.lax.rsqrt(bn["var"] + eps)
    return w * scale[None, :], (b - bn["mean"]) * scale + bn["beta"]


def init_encoder_stack(kg, n_layers, d_model, d_ff):
    """Per-layer weights stacked on a leading layer axis; matmul weights bf16."""
    def lin(din, dout):
        w = jax.random.normal(kg(), (n_layers, din, dout), jnp.float32) * 0.05
        b = jnp.zeros((n_layers, 1, dout), jnp.float32)
        return w, b

    wqkv, bqkv = lin(d_model, 3 * d_model)
    wo, bo = lin(d_model, d_model)
    w1, b1 = lin(d_model, d_ff)
    w2, b2 = lin(d_ff, d_model)
    ln_g = jnp.ones((n_layers, 1, d_model), jnp.float32)
    ln_b = jnp.zeros((n_layers, 1, d_model), jnp.float32)
    # order must match _run_stack unpacking
    return [wqkv.astype(jnp.bfloat16), bqkv,
            wo.astype(jnp.bfloat16), bo,
            ln_g, ln_b,
            w1.astype(jnp.bfloat16), b1,
            w2.astype(jnp.bfloat16), b2,
            jnp.ones((n_layers, 1, d_model), jnp.float32),
            jnp.zeros((n_layers, 1, d_model), jnp.float32)]


def init_params(seed, s1_cfg, s2_cfg, f_cfg, num_classes):
    kg = KeyGen(jax.random.PRNGKey(seed))

    def lin(din, dout):
        return (jax.random.normal(kg(), (din, dout), jnp.float32) * 0.05,
                jnp.zeros((dout,), jnp.float32))

    p = {}

    # --- S1 embedding + positional encoding (pe passed once, never tiled) ---
    w, b = lin(s1_cfg["in_channels"], s1_cfg["d_model"])
    p["s1_emb_w"] = w.astype(jnp.bfloat16)
    p["s1_emb_b"] = b.reshape(1, -1)
    p["pe"] = make_pe(s1_cfg["d_model"], s1_cfg["seq_length"])

    # --- S2 value/time tuple embeddings merged into one block-diag 2-layer MLP ---
    cv, ct = s2_cfg["in_channels"], s2_cfg["time_channels"]   # value chans, time chan (last)
    hid, d2 = s2_cfg["hidden_dim"], s2_cfg["d_model"]
    wv1, bv1 = lin(cv, hid); wv2, bv2 = lin(hid, d2)
    wt1, bt1 = lin(ct, hid); wt2, bt2 = lin(hid, d2)
    w1_blk = jnp.zeros((cv + ct, 2 * hid), jnp.float32)
    w1_blk = w1_blk.at[:cv, :hid].set(wv1)
    w1_blk = w1_blk.at[cv:, hid:].set(wt1)
    p["s2_w1"] = w1_blk.astype(jnp.bfloat16)
    p["s2_b1"] = jnp.concatenate([bv1, bt1]).reshape(1, -1)
    p["s2_w2"] = jnp.concatenate([wv2, wt2], axis=0).astype(jnp.bfloat16)
    p["s2_b2"] = (bv2 + bt2).reshape(1, -1)               # value_embed + time_embed

    # --- encoder stacks (layer axis stacked) + per-stack block-diag head masks ---
    p["s1_enc"] = init_encoder_stack(kg, s1_cfg["n_layers"], s1_cfg["d_model"], s1_cfg["d_feedforward"])
    p["s2_enc"] = init_encoder_stack(kg, s2_cfg["n_layers"], s2_cfg["d_model"], s2_cfg["d_feedforward"])
    p["fusion_enc"] = init_encoder_stack(kg, f_cfg["n_layers"], f_cfg["d_model"], f_cfg["d_feedforward"])
    p["mask_s1"] = make_head_mask(s1_cfg["n_head"], s1_cfg["seq_length"])
    p["mask_s2"] = make_head_mask(s2_cfg["n_head"], f_cfg["seq_length"])   # S2 seq len == fusion seq len
    p["mask_f"] = make_head_mask(f_cfg["n_head"], f_cfg["seq_length"])

    # --- S1 seq-axis linear before fusion (stored pre-transposed: (Lf, L1)) ---
    w, b = lin(s1_cfg["seq_length"], f_cfg["seq_length"])
    p["s1bf_w"] = jnp.transpose(w).astype(jnp.bfloat16)
    p["s1bf_b"] = b.reshape(-1, 1)

    # --- classifier head: BN folded, fc1 weight pre-blocked over fusion seq rows ---
    d_f, Lf = f_cfg["d_model"], f_cfg["seq_length"]
    fc1_w, fc1_b = lin(d_f * Lf, 512)
    bn1 = dict(mean=jnp.zeros(512), var=jnp.ones(512), gamma=jnp.ones(512), beta=jnp.zeros(512))
    fc2_w, fc2_b = lin(512, 256)
    bn2 = dict(mean=jnp.zeros(256), var=jnp.ones(256), gamma=jnp.ones(256), beta=jnp.zeros(256))
    fc3_w, fc3_b = lin(256, num_classes)
    fc1_w, fc1_b = _fold_bn(fc1_w, fc1_b, bn1)
    fc2_w, fc2_b = _fold_bn(fc2_w, fc2_b, bn2)
    p["fc1_w"] = fc1_w.reshape(Lf, d_f, 512).astype(jnp.bfloat16)  # flatten folded into row blocks
    p["fc1_b"] = fc1_b.reshape(1, -1)
    p["fc2_w"] = fc2_w.astype(jnp.bfloat16)
    p["fc2_b"] = fc2_b.reshape(1, -1)
    p["fc3_w"] = fc3_w.astype(jnp.bfloat16)
    p["fc3_b"] = fc3_b.reshape(1, -1)
    return p


# ----------------------------------- main -----------------------------------

if __name__ == "__main__":
    S1_cfg = dict(in_channels=6, d_model=16, seq_length=10, n_head=2,
                  d_feedforward=32, dropout=0.1, n_layers=1)
    S2_cfg = dict(in_channels=4, time_channels=1, hidden_dim=32, d_model=16,
                  n_head=2, d_feedforward=32, dropout=0.1, n_layers=1)
    fusion_cfg = dict(d_model=32, seq_length=8, n_head=4,
                      d_feedforward=64, dropout=0.1, n_layers=1)
    num_classes = 5
    batch = 2

    params = init_params(0, S1_cfg, S2_cfg, fusion_cfg, num_classes)

    k1, k2 = jax.random.split(jax.random.PRNGKey(0))
    # S1: (batch, seq_length_S1, in_channels_S1)
    S1 = jax.random.normal(k1, (batch, S1_cfg["seq_length"], S1_cfg["in_channels"]),
                           jnp.float32)
    # S2: (batch, seq_length_fusion, value_channels + 1 time channel)
    S2 = jax.random.normal(k2, (batch, fusion_cfg["seq_length"],
                                S2_cfg["in_channels"] + S2_cfg["time_channels"]),
                           jnp.float32)

    fwd = jax.jit(functools.partial(
        irms_forward,
        n_head_s1=S1_cfg["n_head"], n_head_s2=S2_cfg["n_head"],
        n_head_f=fusion_cfg["n_head"], num_classes=num_classes))
    out = jax.block_until_ready(fwd(params, S1, S2))

    assert out.shape == (batch, num_classes), out.shape
    assert bool(jnp.all(jnp.isfinite(out)))
    print("KERNEL_OK")
</pallas_src>

<mosaic_0001>
module attributes {stable_mosaic.version = 11 : i64} {
  func.func @_irms_kernel(%arg0: i32, %arg1: memref<1x10x6xf32, #tpu.memory_space<vmem>>, %arg2: memref<1x8x5xf32, #tpu.memory_space<vmem>>, %arg3: memref<10x16xf32, #tpu.memory_space<vmem>>, %arg4: memref<6x16xbf16, #tpu.memory_space<vmem>>, %arg5: memref<1x16xf32, #tpu.memory_space<vmem>>, %arg6: memref<5x64xbf16, #tpu.memory_space<vmem>>, %arg7: memref<1x64xf32, #tpu.memory_space<vmem>>, %arg8: memref<64x16xbf16, #tpu.memory_space<vmem>>, %arg9: memref<1x16xf32, #tpu.memory_space<vmem>>, %arg10: memref<8x10xbf16, #tpu.memory_space<vmem>>, %arg11: memref<8x1xf32, #tpu.memory_space<vmem>>, %arg12: memref<20x20xf32, #tpu.memory_space<vmem>>, %arg13: memref<16x16xf32, #tpu.memory_space<vmem>>, %arg14: memref<32x32xf32, #tpu.memory_space<vmem>>, %arg15: memref<1x16x48xbf16, #tpu.memory_space<vmem>>, %arg16: memref<1x1x48xf32, #tpu.memory_space<vmem>>, %arg17: memref<1x16x16xbf16, #tpu.memory_space<vmem>>, %arg18: memref<1x1x16xf32, #tpu.memory_space<vmem>>, %arg19: memref<1x1x16xf32, #tpu.memory_space<vmem>>, %arg20: memref<1x1x16xf32, #tpu.memory_space<vmem>>, %arg21: memref<1x16x32xbf16, #tpu.memory_space<vmem>>, %arg22: memref<1x1x32xf32, #tpu.memory_space<vmem>>, %arg23: memref<1x32x16xbf16, #tpu.memory_space<vmem>>, %arg24: memref<1x1x16xf32, #tpu.memory_space<vmem>>, %arg25: memref<1x1x16xf32, #tpu.memory_space<vmem>>, %arg26: memref<1x1x16xf32, #tpu.memory_space<vmem>>, %arg27: memref<1x16x48xbf16, #tpu.memory_space<vmem>>, %arg28: memref<1x1x48xf32, #tpu.memory_space<vmem>>, %arg29: memref<1x16x16xbf16, #tpu.memory_space<vmem>>, %arg30: memref<1x1x16xf32, #tpu.memory_space<vmem>>, %arg31: memref<1x1x16xf32, #tpu.memory_space<vmem>>, %arg32: memref<1x1x16xf32, #tpu.memory_space<vmem>>, %arg33: memref<1x16x32xbf16, #tpu.memory_space<vmem>>, %arg34: memref<1x1x32xf32, #tpu.memory_space<vmem>>, %arg35: memref<1x32x16xbf16, #tpu.memory_space<vmem>>, %arg36: memref<1x1x16xf32, #tpu.memory_space<vmem>>, %arg37: memref<1x1x16xf32, #tpu.memory_space<vmem>>, %arg38: memref<1x1x16xf32, #tpu.memory_space<vmem>>, %arg39: memref<1x32x96xbf16, #tpu.memory_space<vmem>>, %arg40: memref<1x1x96xf32, #tpu.memory_space<vmem>>, %arg41: memref<1x32x32xbf16, #tpu.memory_space<vmem>>, %arg42: memref<1x1x32xf32, #tpu.memory_space<vmem>>, %arg43: memref<1x1x32xf32, #tpu.memory_space<vmem>>, %arg44: memref<1x1x32xf32, #tpu.memory_space<vmem>>, %arg45: memref<1x32x64xbf16, #tpu.memory_space<vmem>>, %arg46: memref<1x1x64xf32, #tpu.memory_space<vmem>>, %arg47: memref<1x64x32xbf16, #tpu.memory_space<vmem>>, %arg48: memref<1x1x32xf32, #tpu.memory_space<vmem>>, %arg49: memref<1x1x32xf32, #tpu.memory_space<vmem>>, %arg50: memref<1x1x32xf32, #tpu.memory_space<vmem>>, %arg51: memref<8x32x512xbf16, #tpu.memory_space<vmem>>, %arg52: memref<1x512xf32, #tpu.memory_space<vmem>>, %arg53: memref<512x256xbf16, #tpu.memory_space<vmem>>, %arg54: memref<1x256xf32, #tpu.memory_space<vmem>>, %arg55: memref<256x5xbf16, #tpu.memory_space<vmem>>, %arg56: memref<1x5xf32, #tpu.memory_space<vmem>>, %arg57: memref<1x1x5xf32, #tpu.memory_space<vmem>>) attributes {dimension_semantics = [#tpu.dimension_semantics<parallel>], iteration_bounds = array<i64: 2>, scalar_prefetch = 0 : i64, scratch_operands = 0 : i64, tpu.core_type = #tpu.core_type<tc>, window_params = [{transform_indices = @transform_0, window_bounds = array<i64: 1, 10, 6>}, {transform_indices = @transform_1, window_bounds = array<i64: 1, 8, 5>}, {pipeline_mode = #tpu.pipeline_mode<synchronous>, transform_indices = @transform_2, window_bounds = array<i64: 10, 16>}, {pipeline_mode = #tpu.pipeline_mode<synchronous>, transform_indices = @transform_3, window_bounds = array<i64: 6, 16>}, {pipeline_mode = #tpu.pipeline_mode<synchronous>, transform_indices = @transform_4, window_bounds = array<i64: 1, 16>}, {pipeline_mode = #tpu.pipeline_mode<synchronous>, transform_indices = @transform_5, window_bounds = array<i64: 5, 64>}, {pipeline_mode = #tpu.pipeline_mode<synchronous>, transform_indices = @transform_6, window_bounds = array<i64: 1, 64>}, {pipeline_mode = #tpu.pipeline_mode<synchronous>, transform_indices = @transform_7, window_bounds = array<i64: 64, 16>}, {pipeline_mode = #tpu.pipeline_mode<synchronous>, transform_indices = @transform_8, window_bounds = array<i64: 1, 16>}, {pipeline_mode = #tpu.pipeline_mode<synchronous>, transform_indices = @transform_9, window_bounds = array<i64: 8, 10>}, {pipeline_mode = #tpu.pipeline_mode<synchronous>, transform_indices = @transform_10, window_bounds = array<i64: 8, 1>}, {pipeline_mode = #tpu.pipeline_mode<synchronous>, transform_indices = @transform_11, window_bounds = array<i64: 20, 20>}, {pipeline_mode = #tpu.pipeline_mode<synchronous>, transform_indices = @transform_12, window_bounds = array<i64: 16, 16>}, {pipeline_mode = #tpu.pipeline_mode<synchronous>, transform_indices = @transform_13, window_bounds = array<i64: 32, 32>}, {pipeline_mode = #tpu.pipeline_mode<synchronous>, transform_indices = @transform_14, window_bounds = array<i64: 1, 16, 48>}, {pipeline_mode = #tpu.pipeline_mode<synchronous>, transform_indices = @transform_15, window_bounds = array<i64: 1, 1, 48>}, {pipeline_mode = #tpu.pipeline_mode<synchronous>, transform_indices = @transform_16, window_bounds = array<i64: 1, 16, 16>}, {pipeline_mode = #tpu.pipeline_mode<synchronous>, transform_indices = @transform_17, window_bounds = array<i64: 1, 1, 16>}, {pipeline_mode = #tpu.pipeline_mode<synchronous>, transform_indices = @transform_18, window_bounds = array<i64: 1, 1, 16>}, {pipeline_mode = #tpu.pipeline_mode<synchronous>, transform_indices = @transform_19, window_bounds = array<i64: 1, 1, 16>}, {pipeline_mode = #tpu.pipeline_mode<synchronous>, transform_indices = @transform_20, window_bounds = array<i64: 1, 16, 32>}, {pipeline_mode = #tpu.pipeline_mode<synchronous>, transform_indices = @transform_21, window_bounds = array<i64: 1, 1, 32>}, {pipeline_mode = #tpu.pipeline_mode<synchronous>, transform_indices = @transform_22, window_bounds = array<i64: 1, 32, 16>}, {pipeline_mode = #tpu.pipeline_mode<synchronous>, transform_indices = @transform_23, window_bounds = array<i64: 1, 1, 16>}, {pipeline_mode = #tpu.pipeline_mode<synchronous>, transform_indices = @transform_24, window_bounds = array<i64: 1, 1, 16>}, {pipeline_mode = #tpu.pipeline_mode<synchronous>, transform_indices = @transform_25, window_bounds = array<i64: 1, 1, 16>}, {pipeline_mode = #tpu.pipeline_mode<synchronous>, transform_indices = @transform_26, window_bounds = array<i64: 1, 16, 48>}, {pipeline_mode = #tpu.pipeline_mode<synchronous>, transform_indices = @transform_27, window_bounds = array<i64: 1, 1, 48>}, {pipeline_mode = #tpu.pipeline_mode<synchronous>, transform_indices = @transform_28, window_bounds = array<i64: 1, 16, 16>}, {pipeline_mode = #tpu.pipeline_mode<synchronous>, transform_indices = @transform_29, window_bounds = array<i64: 1, 1, 16>}, {pipeline_mode = #tpu.pipeline_mode<synchronous>, transform_indices = @transform_30, window_bounds = array<i64: 1, 1, 16>}, {pipeline_mode = #tpu.pipeline_mode<synchronous>, transform_indices = @transform_31, window_bounds = array<i64: 1, 1, 16>}, {pipeline_mode = #tpu.pipeline_mode<synchronous>, transform_indices = @transform_32, window_bounds = array<i64: 1, 16, 32>}, {pipeline_mode = #tpu.pipeline_mode<synchronous>, transform_indices = @transform_33, window_bounds = array<i64: 1, 1, 32>}, {pipeline_mode = #tpu.pipeline_mode<synchronous>, transform_indices = @transform_34, window_bounds = array<i64: 1, 32, 16>}, {pipeline_mode = #tpu.pipeline_mode<synchronous>, transform_indices = @transform_35, window_bounds = array<i64: 1, 1, 16>}, {pipeline_mode = #tpu.pipeline_mode<synchronous>, transform_indices = @transform_36, window_bounds = array<i64: 1, 1, 16>}, {pipeline_mode = #tpu.pipeline_mode<synchronous>, transform_indices = @transform_37, window_bounds = array<i64: 1, 1, 16>}, {pipeline_mode = #tpu.pipeline_mode<synchronous>, transform_indices = @transform_38, window_bounds = array<i64: 1, 32, 96>}, {pipeline_mode = #tpu.pipeline_mode<synchronous>, transform_indices = @transform_39, window_bounds = array<i64: 1, 1, 96>}, {pipeline_mode = #tpu.pipeline_mode<synchronous>, transform_indices = @transform_40, window_bounds = array<i64: 1, 32, 32>}, {pipeline_mode = #tpu.pipeline_mode<synchronous>, transform_indices = @transform_41, window_bounds = array<i64: 1, 1, 32>}, {pipeline_mode = #tpu.pipeline_mode<synchronous>, transform_indices = @transform_42, window_bounds = array<i64: 1, 1, 32>}, {pipeline_mode = #tpu.pipeline_mode<synchronous>, transform_indices = @transform_43, window_bounds = array<i64: 1, 1, 32>}, {pipeline_mode = #tpu.pipeline_mode<synchronous>, transform_indices = @transform_44, window_bounds = array<i64: 1, 32, 64>}, {pipeline_mode = #tpu.pipeline_mode<synchronous>, transform_indices = @transform_45, window_bounds = array<i64: 1, 1, 64>}, {pipeline_mode = #tpu.pipeline_mode<synchronous>, transform_indices = @transform_46, window_bounds = array<i64: 1, 64, 32>}, {pipeline_mode = #tpu.pipeline_mode<synchronous>, transform_indices = @transform_47, window_bounds = array<i64: 1, 1, 32>}, {pipeline_mode = #tpu.pipeline_mode<synchronous>, transform_indices = @transform_48, window_bounds = array<i64: 1, 1, 32>}, {pipeline_mode = #tpu.pipeline_mode<synchronous>, transform_indices = @transform_49, window_bounds = array<i64: 1, 1, 32>}, {pipeline_mode = #tpu.pipeline_mode<synchronous>, transform_indices = @transform_50, window_bounds = array<i64: 8, 32, 512>}, {pipeline_mode = #tpu.pipeline_mode<synchronous>, transform_indices = @transform_51, window_bounds = array<i64: 1, 512>}, {pipeline_mode = #tpu.pipeline_mode<synchronous>, transform_indices = @transform_52, window_bounds = array<i64: 512, 256>}, {pipeline_mode = #tpu.pipeline_mode<synchronous>, transform_indices = @transform_53, window_bounds = array<i64: 1, 256>}, {pipeline_mode = #tpu.pipeline_mode<synchronous>, transform_indices = @transform_54, window_bounds = array<i64: 256, 5>}, {pipeline_mode = #tpu.pipeline_mode<synchronous>, transform_indices = @transform_55, window_bounds = array<i64: 1, 5>}, {transform_indices = @transform_56, window_bounds = array<i64: 1, 1, 5>}]} {
    %c0 = arith.constant 0 : index
    %c0_0 = arith.constant 0 : index
    %c0_1 = arith.constant 0 : index
    %0 = vector.load %arg1[%c0, %c0_0, %c0_1] : memref<1x10x6xf32, #tpu.memory_space<vmem>>, vector<1x10x6xf32>
    %1 = vector.shape_cast %0 : vector<1x10x6xf32> to vector<10x6xf32>
    %2 = arith.truncf %1 : vector<10x6xf32> to vector<10x6xbf16>
    %c0_2 = arith.constant 0 : index
    %c0_3 = arith.constant 0 : index
    %3 = vector.load %arg4[%c0_2, %c0_3] : memref<6x16xbf16, #tpu.memory_space<vmem>>, vector<6x16xbf16>
    %cst = arith.constant dense<0.000000e+00> : vector<10x16xf32>
    %4 = tpu.matmul %2, %3, %cst {dimension_numbers = #tpu.dot_dimension_numbers<[1], [0], [0], [1], [0, 0, 1, 1], [], []>} : vector<10x6xbf16>, vector<6x16xbf16>, vector<10x16xf32> -> vector<10x16xf32>
    %c0_4 = arith.constant 0 : index
    %c0_5 = arith.constant 0 : index
    %5 = vector.load %arg5[%c0_4, %c0_5] : memref<1x16xf32, #tpu.memory_space<vmem>>, vector<1x16xf32>
    %6 = vector.broadcast %5 : vector<1x16xf32> to vector<10x16xf32>
    %7 = arith.addf %4, %6 : vector<10x16xf32>
    %cst_6 = arith.constant 2.000000e+00 : f32
    %8 = vector.broadcast %cst_6 : f32 to vector<10x16xf32>
    %9 = arith.mulf %8, %7 : vector<10x16xf32>
    %c0_7 = arith.constant 0 : index
    %c0_8 = arith.constant 0 : index
    %10 = vector.load %arg3[%c0_7, %c0_8] : memref<10x16xf32, #tpu.memory_space<vmem>>, vector<10x16xf32>
    %11 = arith.addf %9, %10 : vector<10x16xf32>
    %c0_9 = arith.constant 0 : index
    %c0_10 = arith.constant 0 : index
    %12 = vector.load %arg12[%c0_9, %c0_10] : memref<20x20xf32, #tpu.memory_space<vmem>>, vector<20x20xf32>
    %c0_11 = arith.constant 0 : index
    %c0_12 = arith.constant 0 : index
    %c0_13 = arith.constant 0 : index
    %13 = vector.load %arg15[%c0_11, %c0_12, %c0_13] : memref<1x16x48xbf16, #tpu.memory_space<vmem>>, vector<1x16x48xbf16>
    %14 = vector.shape_cast %13 : vector<1x16x48xbf16> to vector<16x48xbf16>
    %c0_14 = arith.constant 0 : index
    %c0_15 = arith.constant 0 : index
    %c0_16 = arith.constant 0 : index
    %15 = vector.load %arg16[%c0_14, %c0_15, %c0_16] : memref<1x1x48xf32, #tpu.memory_space<vmem>>, vector<1x1x48xf32>
    %16 = vector.shape_cast %15 : vector<1x1x48xf32> to vector<1x48xf32>
    %c0_17 = arith.constant 0 : index
    %c0_18 = arith.constant 0 : index
    %c0_19 = arith.constant 0 : index
    %17 = vector.load %arg17[%c0_17, %c0_18, %c0_19] : memref<1x16x16xbf16, #tpu.memory_space<vmem>>, vector<1x16x16xbf16>
    %18 = vector.shape_cast %17 : vector<1x16x16xbf16> to vector<16x16xbf16>
    %c0_20 = arith.constant 0 : index
    %c0_21 = arith.constant 0 : index
    %c0_22 = arith.constant 0 : index
    %19 = vector.load %arg18[%c0_20, %c0_21, %c0_22] : memref<1x1x16xf32, #tpu.memory_space<vmem>>, vector<1x1x16xf32>
    %20 = vector.shape_cast %19 : vector<1x1x16xf32> to vector<1x16xf32>
    %c0_23 = arith.constant 0 : index
    %c0_24 = arith.constant 0 : index
    %c0_25 = arith.constant 0 : index
    %21 = vector.load %arg19[%c0_23, %c0_24, %c0_25] : memref<1x1x16xf32, #tpu.memory_space<vmem>>, vector<1x1x16xf32>
    %22 = vector.shape_cast %21 : vector<1x1x16xf32> to vector<1x16xf32>
    %c0_26 = arith.constant 0 : index
    %c0_27 = arith.constant 0 : index
    %c0_28 = arith.constant 0 : index
    %23 = vector.load %arg20[%c0_26, %c0_27, %c0_28] : memref<1x1x16xf32, #tpu.memory_space<vmem>>, vector<1x1x16xf32>
    %24 = vector.shape_cast %23 : vector<1x1x16xf32> to vector<1x16xf32>
    %c0_29 = arith.constant 0 : index
    %c0_30 = arith.constant 0 : index
    %c0_31 = arith.constant 0 : index
    %25 = vector.load %arg21[%c0_29, %c0_30, %c0_31] : memref<1x16x32xbf16, #tpu.memory_space<vmem>>, vector<1x16x32xbf16>
    %26 = vector.shape_cast %25 : vector<1x16x32xbf16> to vector<16x32xbf16>
    %c0_32 = arith.constant 0 : index
    %c0_33 = arith.constant 0 : index
    %c0_34 = arith.constant 0 : index
    %27 = vector.load %arg22[%c0_32, %c0_33, %c0_34] : memref<1x1x32xf32, #tpu.memory_space<vmem>>, vector<1x1x32xf32>
    %28 = vector.shape_cast %27 : vector<1x1x32xf32> to vector<1x32xf32>
    %c0_35 = arith.constant 0 : index
    %c0_36 = arith.constant 0 : index
    %c0_37 = arith.constant 0 : index
    %29 = vector.load %arg23[%c0_35, %c0_36, %c0_37] : memref<1x32x16xbf16, #tpu.memory_space<vmem>>, vector<1x32x16xbf16>
    %30 = vector.shape_cast %29 : vector<1x32x16xbf16> to vector<32x16xbf16>
    %c0_38 = arith.constant 0 : index
    %c0_39 = arith.constant 0 : index
    %c0_40 = arith.constant 0 : index
    %31 = vector.load %arg24[%c0_38, %c0_39, %c0_40] : memref<1x1x16xf32, #tpu.memory_space<vmem>>, vector<1x1x16xf32>
    %32 = vector.shape_cast %31 : vector<1x1x16xf32> to vector<1x16xf32>
    %c0_41 = arith.constant 0 : index
    %c0_42 = arith.constant 0 : index
    %c0_43 = arith.constant 0 : index
    %33 = vector.load %arg25[%c0_41, %c0_42, %c0_43] : memref<1x1x16xf32, #tpu.memory_space<vmem>>, vector<1x1x16xf32>
    %34 = vector.shape_cast %33 : vector<1x1x16xf32> to vector<1x16xf32>
    %c0_44 = arith.constant 0 : index
    %c0_45 = arith.constant 0 : index
    %c0_46 = arith.constant 0 : index
    %35 = vector.load %arg26[%c0_44, %c0_45, %c0_46] : memref<1x1x16xf32, #tpu.memory_space<vmem>>, vector<1x1x16xf32>
    %36 = vector.shape_cast %35 : vector<1x1x16xf32> to vector<1x16xf32>
    %37 = arith.truncf %11 : vector<10x16xf32> to vector<10x16xbf16>
    %cst_47 = arith.constant dense<0.000000e+00> : vector<10x48xf32>
    %38 = tpu.matmul %37, %14, %cst_47 {dimension_numbers = #tpu.dot_dimension_numbers<[1], [0], [0], [1], [0, 0, 1, 1], [], []>} : vector<10x16xbf16>, vector<16x48xbf16>, vector<10x48xf32> -> vector<10x48xf32>
    %39 = vector.broadcast %16 : vector<1x48xf32> to vector<10x48xf32>
    %40 = arith.addf %38, %39 : vector<10x48xf32>
    %41 = vector.extract_strided_slice %40 {offsets = [0, 0], sizes = [10, 8], strides = [1, 1]} : vector<10x48xf32> to vector<10x8xf32>
    %42 = vector.extract_strided_slice %40 {offsets = [0, 8], sizes = [10, 8], strides = [1, 1]} : vector<10x48xf32> to vector<10x8xf32>
    %43 = tpu.concatenate %41, %42 in 0 : vector<10x8xf32>, vector<10x8xf32> -> vector<20x8xf32>
    %44 = vector.extract_strided_slice %40 {offsets = [0, 16], sizes = [10, 8], strides = [1, 1]} : vector<10x48xf32> to vector<10x8xf32>
    %45 = vector.extract_strided_slice %40 {offsets = [0, 24], sizes = [10, 8], strides = [1, 1]} : vector<10x48xf32> to vector<10x8xf32>
    %46 = tpu.concatenate %44, %45 in 0 : vector<10x8xf32>, vector<10x8xf32> -> vector<20x8xf32>
    %47 = vector.extract_strided_slice %40 {offsets = [0, 32], sizes = [10, 8], strides = [1, 1]} : vector<10x48xf32> to vector<10x8xf32>
    %48 = vector.extract_strided_slice %40 {offsets = [0, 40], sizes = [10, 8], strides = [1, 1]} : vector<10x48xf32> to vector<10x8xf32>
    %49 = tpu.concatenate %47, %48 in 0 : vector<10x8xf32>, vector<10x8xf32> -> vector<20x8xf32>
    %50 = arith.truncf %43 : vector<20x8xf32> to vector<20x8xbf16>
    %51 = arith.truncf %46 : vector<20x8xf32> to vector<20x8xbf16>
    %cst_48 = arith.constant dense<0.000000e+00> : vector<20x20xf32>
    %52 = tpu.matmul %50, %51, %cst_48 {dimension_numbers = #tpu.dot_dimension_numbers<[1], [1], [0], [0], [0, 0, 1, 0], [], []>} : vector<20x8xbf16>, vector<20x8xbf16>, vector<20x20xf32> -> vector<20x20xf32>
    %cst_49 = arith.constant 0.353553385 : f32
    %53 = vector.broadcast %cst_49 : f32 to vector<20x20xf32>
    %54 = arith.mulf %52, %53 : vector<20x20xf32>
    %55 = arith.addf %54, %12 : vector<20x20xf32>
    %cst_50 = arith.constant dense<0xFF800000> : vector<20xf32>
    %56 = vector.multi_reduction <maximumf>, %55, %cst_50 [1] : vector<20x20xf32> to vector<20xf32>
    %57 = vector.shape_cast %56 : vector<20xf32> to vector<20x1xf32>
    %58 = vector.broadcast %57 : vector<20x1xf32> to vector<20x20xf32>
    %59 = arith.subf %55, %58 : vector<20x20xf32>
    %60 = math.exp %59 : vector<20x20xf32>
    %cst_51 = arith.constant dense<0.000000e+00> : vector<20xf32>
    %61 = vector.multi_reduction <add>, %60, %cst_51 [1] : vector<20x20xf32> to vector<20xf32>
    %62 = vector.shape_cast %61 : vector<20xf32> to vector<20x1xf32>
    %63 = vector.broadcast %62 : vector<20x1xf32> to vector<20x20xf32>
    %64 = arith.divf %60, %63 : vector<20x20xf32>
    %65 = arith.truncf %64 : vector<20x20xf32> to vector<20x20xbf16>
    %66 = arith.truncf %49 : vector<20x8xf32> to vector<20x8xbf16>
    %cst_52 = arith.constant dense<0.000000e+00> : vector<20x8xf32>
    %67 = tpu.matmul %65, %66, %cst_52 {dimension_numbers = #tpu.dot_dimension_numbers<[1], [0], [0], [1], [0, 0, 1, 1], [], []>} : vector<20x20xbf16>, vector<20x8xbf16>, vector<20x8xf32> -> vector<20x8xf32>
    %68 = vector.extract_strided_slice %67 {offsets = [0, 0], sizes = [10, 8], strides = [1, 1]} : vector<20x8xf32> to vector<10x8xf32>
    %69 = vector.extract_strided_slice %67 {offsets = [10, 0], sizes = [10, 8], strides = [1, 1]} : vector<20x8xf32> to vector<10x8xf32>
    %70 = tpu.concatenate %68, %69 in 1 : vector<10x8xf32>, vector<10x8xf32> -> vector<10x16xf32>
    %71 = arith.truncf %70 : vector<10x16xf32> to vector<10x16xbf16>
    %cst_53 = arith.constant dense<0.000000e+00> : vector<10x16xf32>
    %72 = tpu.matmul %71, %18, %cst_53 {dimension_numbers = #tpu.dot_dimension_numbers<[1], [0], [0], [1], [0, 0, 1, 1], [], []>} : vector<10x16xbf16>, vector<16x16xbf16>, vector<10x16xf32> -> vector<10x16xf32>
    %73 = vector.broadcast %20 : vector<1x16xf32> to vector<10x16xf32>
    %74 = arith.addf %72, %73 : vector<10x16xf32>
    %75 = arith.addf %11, %74 : vector<10x16xf32>
    %cst_54 = arith.constant dense<0.000000e+00> : vector<10xf32>
    %76 = vector.multi_reduction <add>, %75, %cst_54 [1] : vector<10x16xf32> to vector<10xf32>
    %77 = vector.shape_cast %76 : vector<10xf32> to vector<10x1xf32>
    %cst_55 = arith.constant 1.600000e+01 : f32
    %78 = vector.broadcast %cst_55 : f32 to vector<10x1xf32>
    %79 = arith.divf %77, %78 : vector<10x1xf32>
    %80 = vector.broadcast %79 : vector<10x1xf32> to vector<10x16xf32>
    %81 = arith.subf %75, %80 : vector<10x16xf32>
    %82 = arith.mulf %81, %81 : vector<10x16xf32>
    %cst_56 = arith.constant dense<0.000000e+00> : vector<10xf32>
    %83 = vector.multi_reduction <add>, %82, %cst_56 [1] : vector<10x16xf32> to vector<10xf32>
    %84 = vector.shape_cast %83 : vector<10xf32> to vector<10x1xf32>
    %cst_57 = arith.constant 1.600000e+01 : f32
    %85 = vector.broadcast %cst_57 : f32 to vector<10x1xf32>
    %86 = arith.divf %84, %85 : vector<10x1xf32>
    %87 = vector.broadcast %79 : vector<10x1xf32> to vector<10x16xf32>
    %88 = arith.subf %75, %87 : vector<10x16xf32>
    %cst_58 = arith.constant 9.99999974E-6 : f32
    %89 = vector.broadcast %cst_58 : f32 to vector<10x1xf32>
    %90 = arith.addf %86, %89 : vector<10x1xf32>
    %91 = math.rsqrt %90 : vector<10x1xf32>
    %92 = vector.broadcast %91 : vector<10x1xf32> to vector<10x16xf32>
    %93 = arith.mulf %88, %92 : vector<10x16xf32>
    %94 = vector.broadcast %22 : vector<1x16xf32> to vector<10x16xf32>
    %95 = arith.mulf %93, %94 : vector<10x16xf32>
    %96 = vector.broadcast %24 : vector<1x16xf32> to vector<10x16xf32>
    %97 = arith.addf %95, %96 : vector<10x16xf32>
    %98 = arith.truncf %97 : vector<10x16xf32> to vector<10x16xbf16>
    %cst_59 = arith.constant dense<0.000000e+00> : vector<10x32xf32>
    %99 = tpu.matmul %98, %26, %cst_59 {dimension_numbers = #tpu.dot_dimension_numbers<[1], [0], [0], [1], [0, 0, 1, 1], [], []>} : vector<10x16xbf16>, vector<16x32xbf16>, vector<10x32xf32> -> vector<10x32xf32>
    %100 = vector.broadcast %28 : vector<1x32xf32> to vector<10x32xf32>
    %101 = arith.addf %99, %100 : vector<10x32xf32>
    %cst_60 = arith.constant 0.000000e+00 : f32
    %102 = vector.broadcast %cst_60 : f32 to vector<10x32xf32>
    %103 = arith.maximumf %101, %102 : vector<10x32xf32>
    %104 = arith.truncf %103 : vector<10x32xf32> to vector<10x32xbf16>
    %cst_61 = arith.constant dense<0.000000e+00> : vector<10x16xf32>
    %105 = tpu.matmul %104, %30, %cst_61 {dimension_numbers = #tpu.dot_dimension_numbers<[1], [0], [0], [1], [0, 0, 1, 1], [], []>} : vector<10x32xbf16>, vector<32x16xbf16>, vector<10x16xf32> -> vector<10x16xf32>
    %106 = vector.broadcast %32 : vector<1x16xf32> to vector<10x16xf32>
    %107 = arith.addf %105, %106 : vector<10x16xf32>
    %108 = arith.addf %97, %107 : vector<10x16xf32>
    %cst_62 = arith.constant dense<0.000000e+00> : vector<10xf32>
    %109 = vector.multi_reduction <add>, %108, %cst_62 [1] : vector<10x16xf32> to vector<10xf32>
    %110 = vector.shape_cast %109 : vector<10xf32> to vector<10x1xf32>
    %cst_63 = arith.constant 1.600000e+01 : f32
    %111 = vector.broadcast %cst_63 : f32 to vector<10x1xf32>
    %112 = arith.divf %110, %111 : vector<10x1xf32>
    %113 = vector.broadcast %112 : vector<10x1xf32> to vector<10x16xf32>
    %114 = arith.subf %108, %113 : vector<10x16xf32>
    %115 = arith.mulf %114, %114 : vector<10x16xf32>
    %cst_64 = arith.constant dense<0.000000e+00> : vector<10xf32>
    %116 = vector.multi_reduction <add>, %115, %cst_64 [1] : vector<10x16xf32> to vector<10xf32>
    %117 = vector.shape_cast %116 : vector<10xf32> to vector<10x1xf32>
    %cst_65 = arith.constant 1.600000e+01 : f32
    %118 = vector.broadcast %cst_65 : f32 to vector<10x1xf32>
    %119 = arith.divf %117, %118 : vector<10x1xf32>
    %120 = vector.broadcast %112 : vector<10x1xf32> to vector<10x16xf32>
    %121 = arith.subf %108, %120 : vector<10x16xf32>
    %cst_66 = arith.constant 9.99999974E-6 : f32
    %122 = vector.broadcast %cst_66 : f32 to vector<10x1xf32>
    %123 = arith.addf %119, %122 : vector<10x1xf32>
    %124 = math.rsqrt %123 : vector<10x1xf32>
    %125 = vector.broadcast %124 : vector<10x1xf32> to vector<10x16xf32>
    %126 = arith.mulf %121, %125 : vector<10x16xf32>
    %127 = vector.broadcast %34 : vector<1x16xf32> to vector<10x16xf32>
    %128 = arith.mulf %126, %127 : vector<10x16xf32>
    %129 = vector.broadcast %36 : vector<1x16xf32> to vector<10x16xf32>
    %130 = arith.addf %128, %129 : vector<10x16xf32>
    %c0_67 = arith.constant 0 : index
    %c0_68 = arith.constant 0 : index
    %c0_69 = arith.constant 0 : index
    %131 = vector.load %arg2[%c0_67, %c0_68, %c0_69] : memref<1x8x5xf32, #tpu.memory_space<vmem>>, vector<1x8x5xf32>
    %132 = vector.shape_cast %131 : vector<1x8x5xf32> to vector<8x5xf32>
    %133 = arith.truncf %132 : vector<8x5xf32> to vector<8x5xbf16>
    %c0_70 = arith.constant 0 : index
    %c0_71 = arith.constant 0 : index
    %134 = vector.load %arg6[%c0_70, %c0_71] : memref<5x64xbf16, #tpu.memory_space<vmem>>, vector<5x64xbf16>
    %cst_72 = arith.constant dense<0.000000e+00> : vector<8x64xf32>
    %135 = tpu.matmul %133, %134, %cst_72 {dimension_numbers = #tpu.dot_dimension_numbers<[1], [0], [0], [1], [0, 0, 1, 1], [], []>} : vector<8x5xbf16>, vector<5x64xbf16>, vector<8x64xf32> -> vector<8x64xf32>
    %c0_73 = arith.constant 0 : index
    %c0_74 = arith.constant 0 : index
    %136 = vector.load %arg7[%c0_73, %c0_74] : memref<1x64xf32, #tpu.memory_space<vmem>>, vector<1x64xf32>
    %137 = vector.broadcast %136 : vector<1x64xf32> to vector<8x64xf32>
    %138 = arith.addf %135, %137 : vector<8x64xf32>
    %cst_75 = arith.constant 0.000000e+00 : f32
    %139 = vector.broadcast %cst_75 : f32 to vector<8x64xf32>
    %140 = arith.maximumf %138, %139 : vector<8x64xf32>
    %141 = arith.truncf %140 : vector<8x64xf32> to vector<8x64xbf16>
    %c0_76 = arith.constant 0 : index
    %c0_77 = arith.constant 0 : index
    %142 = vector.load %arg8[%c0_76, %c0_77] : memref<64x16xbf16, #tpu.memory_space<vmem>>, vector<64x16xbf16>
    %cst_78 = arith.constant dense<0.000000e+00> : vector<8x16xf32>
    %143 = tpu.matmul %141, %142, %cst_78 {dimension_numbers = #tpu.dot_dimension_numbers<[1], [0], [0], [1], [0, 0, 1, 1], [], []>} : vector<8x64xbf16>, vector<64x16xbf16>, vector<8x16xf32> -> vector<8x16xf32>
    %c0_79 = arith.constant 0 : index
    %c0_80 = arith.constant 0 : index
    %144 = vector.load %arg9[%c0_79, %c0_80] : memref<1x16xf32, #tpu.memory_space<vmem>>, vector<1x16xf32>
    %145 = vector.broadcast %144 : vector<1x16xf32> to vector<8x16xf32>
    %146 = arith.addf %143, %145 : vector<8x16xf32>
    %c0_81 = arith.constant 0 : index
    %c0_82 = arith.constant 0 : index
    %147 = vector.load %arg13[%c0_81, %c0_82] : memref<16x16xf32, #tpu.memory_space<vmem>>, vector<16x16xf32>
    %c0_83 = arith.constant 0 : index
    %c0_84 = arith.constant 0 : index
    %c0_85 = arith.constant 0 : index
    %148 = vector.load %arg27[%c0_83, %c0_84, %c0_85] : memref<1x16x48xbf16, #tpu.memory_space<vmem>>, vector<1x16x48xbf16>
    %149 = vector.shape_cast %148 : vector<1x16x48xbf16> to vector<16x48xbf16>
    %c0_86 = arith.constant 0 : index
    %c0_87 = arith.constant 0 : index
    %c0_88 = arith.constant 0 : index
    %150 = vector.load %arg28[%c0_86, %c0_87, %c0_88] : memref<1x1x48xf32, #tpu.memory_space<vmem>>, vector<1x1x48xf32>
    %151 = vector.shape_cast %150 : vector<1x1x48xf32> to vector<1x48xf32>
    %c0_89 = arith.constant 0 : index
    %c0_90 = arith.constant 0 : index
    %c0_91 = arith.constant 0 : index
    %152 = vector.load %arg29[%c0_89, %c0_90, %c0_91] : memref<1x16x16xbf16, #tpu.memory_space<vmem>>, vector<1x16x16xbf16>
    %153 = vector.shape_cast %152 : vector<1x16x16xbf16> to vector<16x16xbf16>
    %c0_92 = arith.constant 0 : index
    %c0_93 = arith.constant 0 : index
    %c0_94 = arith.constant 0 : index
    %154 = vector.load %arg30[%c0_92, %c0_93, %c0_94] : memref<1x1x16xf32, #tpu.memory_space<vmem>>, vector<1x1x16xf32>
    %155 = vector.shape_cast %154 : vector<1x1x16xf32> to vector<1x16xf32>
    %c0_95 = arith.constant 0 : index
    %c0_96 = arith.constant 0 : index
    %c0_97 = arith.constant 0 : index
    %156 = vector.load %arg31[%c0_95, %c0_96, %c0_97] : memref<1x1x16xf32, #tpu.memory_space<vmem>>, vector<1x1x16xf32>
    %157 = vector.shape_cast %156 : vector<1x1x16xf32> to vector<1x16xf32>
    %c0_98 = arith.constant 0 : index
    %c0_99 = arith.constant 0 : index
    %c0_100 = arith.constant 0 : index
    %158 = vector.load %arg32[%c0_98, %c0_99, %c0_100] : memref<1x1x16xf32, #tpu.memory_space<vmem>>, vector<1x1x16xf32>
    %159 = vector.shape_cast %158 : vector<1x1x16xf32> to vector<1x16xf32>
    %c0_101 = arith.constant 0 : index
    %c0_102 = arith.constant 0 : index
    %c0_103 = arith.constant 0 : index
    %160 = vector.load %arg33[%c0_101, %c0_102, %c0_103] : memref<1x16x32xbf16, #tpu.memory_space<vmem>>, vector<1x16x32xbf16>
    %161 = vector.shape_cast %160 : vector<1x16x32xbf16> to vector<16x32xbf16>
    %c0_104 = arith.constant 0 : index
    %c0_105 = arith.constant 0 : index
    %c0_106 = arith.constant 0 : index
    %162 = vector.load %arg34[%c0_104, %c0_105, %c0_106] : memref<1x1x32xf32, #tpu.memory_space<vmem>>, vector<1x1x32xf32>
    %163 = vector.shape_cast %162 : vector<1x1x32xf32> to vector<1x32xf32>
    %c0_107 = arith.constant 0 : index
    %c0_108 = arith.constant 0 : index
    %c0_109 = arith.constant 0 : index
    %164 = vector.load %arg35[%c0_107, %c0_108, %c0_109] : memref<1x32x16xbf16, #tpu.memory_space<vmem>>, vector<1x32x16xbf16>
    %165 = vector.shape_cast %164 : vector<1x32x16xbf16> to vector<32x16xbf16>
    %c0_110 = arith.constant 0 : index
    %c0_111 = arith.constant 0 : index
    %c0_112 = arith.constant 0 : index
    %166 = vector.load %arg36[%c0_110, %c0_111, %c0_112] : memref<1x1x16xf32, #tpu.memory_space<vmem>>, vector<1x1x16xf32>
    %167 = vector.shape_cast %166 : vector<1x1x16xf32> to vector<1x16xf32>
    %c0_113 = arith.constant 0 : index
    %c0_114 = arith.constant 0 : index
    %c0_115 = arith.constant 0 : index
    %168 = vector.load %arg37[%c0_113, %c0_114, %c0_115] : memref<1x1x16xf32, #tpu.memory_space<vmem>>, vector<1x1x16xf32>
    %169 = vector.shape_cast %168 : vector<1x1x16xf32> to vector<1x16xf32>
    %c0_116 = arith.constant 0 : index
    %c0_117 = arith.constant 0 : index
    %c0_118 = arith.constant 0 : index
    %170 = vector.load %arg38[%c0_116, %c0_117, %c0_118] : memref<1x1x16xf32, #tpu.memory_space<vmem>>, vector<1x1x16xf32>
    %171 = vector.shape_cast %170 : vector<1x1x16xf32> to vector<1x16xf32>
    %172 = arith.truncf %146 : vector<8x16xf32> to vector<8x16xbf16>
    %cst_119 = arith.constant dense<0.000000e+00> : vector<8x48xf32>
    %173 = tpu.matmul %172, %149, %cst_119 {dimension_numbers = #tpu.dot_dimension_numbers<[1], [0], [0], [1], [0, 0, 1, 1], [], []>} : vector<8x16xbf16>, vector<16x48xbf16>, vector<8x48xf32> -> vector<8x48xf32>
    %174 = vector.broadcast %151 : vector<1x48xf32> to vector<8x48xf32>
    %175 = arith.addf %173, %174 : vector<8x48xf32>
    %176 = vector.extract_strided_slice %175 {offsets = [0, 0], sizes = [8, 8], strides = [1, 1]} : vector<8x48xf32> to vector<8x8xf32>
    %177 = vector.extract_strided_slice %175 {offsets = [0, 8], sizes = [8, 8], strides = [1, 1]} : vector<8x48xf32> to vector<8x8xf32>
    %178 = tpu.concatenate %176, %177 in 0 : vector<8x8xf32>, vector<8x8xf32> -> vector<16x8xf32>
    %179 = vector.extract_strided_slice %175 {offsets = [0, 16], sizes = [8, 8], strides = [1, 1]} : vector<8x48xf32> to vector<8x8xf32>
    %180 = vector.extract_strided_slice %175 {offsets = [0, 24], sizes = [8, 8], strides = [1, 1]} : vector<8x48xf32> to vector<8x8xf32>
    %181 = tpu.concatenate %179, %180 in 0 : vector<8x8xf32>, vector<8x8xf32> -> vector<16x8xf32>
    %182 = vector.extract_strided_slice %175 {offsets = [0, 32], sizes = [8, 8], strides = [1, 1]} : vector<8x48xf32> to vector<8x8xf32>
    %183 = vector.extract_strided_slice %175 {offsets = [0, 40], sizes = [8, 8], strides = [1, 1]} : vector<8x48xf32> to vector<8x8xf32>
    %184 = tpu.concatenate %182, %183 in 0 : vector<8x8xf32>, vector<8x8xf32> -> vector<16x8xf32>
    %185 = arith.truncf %178 : vector<16x8xf32> to vector<16x8xbf16>
    %186 = arith.truncf %181 : vector<16x8xf32> to vector<16x8xbf16>
    %cst_120 = arith.constant dense<0.000000e+00> : vector<16x16xf32>
    %187 = tpu.matmul %185, %186, %cst_120 {dimension_numbers = #tpu.dot_dimension_numbers<[1], [1], [0], [0], [0, 0, 1, 0], [], []>} : vector<16x8xbf16>, vector<16x8xbf16>, vector<16x16xf32> -> vector<16x16xf32>
    %cst_121 = arith.constant 0.353553385 : f32
    %188 = vector.broadcast %cst_121 : f32 to vector<16x16xf32>
    %189 = arith.mulf %187, %188 : vector<16x16xf32>
    %190 = arith.addf %189, %147 : vector<16x16xf32>
    %cst_122 = arith.constant dense<0xFF800000> : vector<16xf32>
    %191 = vector.multi_reduction <maximumf>, %190, %cst_122 [1] : vector<16x16xf32> to vector<16xf32>
    %192 = vector.shape_cast %191 : vector<16xf32> to vector<16x1xf32>
    %193 = vector.broadcast %192 : vector<16x1xf32> to vector<16x16xf32>
    %194 = arith.subf %190, %193 : vector<16x16xf32>
    %195 = math.exp %194 : vector<16x16xf32>
    %cst_123 = arith.constant dense<0.000000e+00> : vector<16xf32>
    %196 = vector.multi_reduction <add>, %195, %cst_123 [1] : vector<16x16xf32> to vector<16xf32>
    %197 = vector.shape_cast %196 : vector<16xf32> to vector<16x1xf32>
    %198 = vector.broadcast %197 : vector<16x1xf32> to vector<16x16xf32>
    %199 = arith.divf %195, %198 : vector<16x16xf32>
    %200 = arith.truncf %199 : vector<16x16xf32> to vector<16x16xbf16>
    %201 = arith.truncf %184 : vector<16x8xf32> to vector<16x8xbf16>
    %cst_124 = arith.constant dense<0.000000e+00> : vector<16x8xf32>
    %202 = tpu.matmul %200, %201, %cst_124 {dimension_numbers = #tpu.dot_dimension_numbers<[1], [0], [0], [1], [0, 0, 1, 1], [], []>} : vector<16x16xbf16>, vector<16x8xbf16>, vector<16x8xf32> -> vector<16x8xf32>
    %203 = vector.extract_strided_slice %202 {offsets = [0, 0], sizes = [8, 8], strides = [1, 1]} : vector<16x8xf32> to vector<8x8xf32>
    %204 = vector.extract_strided_slice %202 {offsets = [8, 0], sizes = [8, 8], strides = [1, 1]} : vector<16x8xf32> to vector<8x8xf32>
    %205 = tpu.concatenate %203, %204 in 1 : vector<8x8xf32>, vector<8x8xf32> -> vector<8x16xf32>
    %206 = arith.truncf %205 : vector<8x16xf32> to vector<8x16xbf16>
    %cst_125 = arith.constant dense<0.000000e+00> : vector<8x16xf32>
    %207 = tpu.matmul %206, %153, %cst_125 {dimension_numbers = #tpu.dot_dimension_numbers<[1], [0], [0], [1], [0, 0, 1, 1], [], []>} : vector<8x16xbf16>, vector<16x16xbf16>, vector<8x16xf32> -> vector<8x16xf32>
    %208 = vector.broadcast %155 : vector<1x16xf32> to vector<8x16xf32>
    %209 = arith.addf %207, %208 : vector<8x16xf32>
    %210 = arith.addf %146, %209 : vector<8x16xf32>
    %cst_126 = arith.constant dense<0.000000e+00> : vector<8xf32>
    %211 = vector.multi_reduction <add>, %210, %cst_126 [1] : vector<8x16xf32> to vector<8xf32>
    %212 = vector.shape_cast %211 : vector<8xf32> to vector<8x1xf32>
    %cst_127 = arith.constant 1.600000e+01 : f32
    %213 = vector.broadcast %cst_127 : f32 to vector<8x1xf32>
    %214 = arith.divf %212, %213 : vector<8x1xf32>
    %215 = vector.broadcast %214 : vector<8x1xf32> to vector<8x16xf32>
    %216 = arith.subf %210, %215 : vector<8x16xf32>
    %217 = arith.mulf %216, %216 : vector<8x16xf32>
    %cst_128 = arith.constant dense<0.000000e+00> : vector<8xf32>
    %218 = vector.multi_reduction <add>, %217, %cst_128 [1] : vector<8x16xf32> to vector<8xf32>
    %219 = vector.shape_cast %218 : vector<8xf32> to vector<8x1xf32>
    %cst_129 = arith.constant 1.600000e+01 : f32
    %220 = vector.broadcast %cst_129 : f32 to vector<8x1xf32>
    %221 = arith.divf %219, %220 : vector<8x1xf32>
    %222 = vector.broadcast %214 : vector<8x1xf32> to vector<8x16xf32>
    %223 = arith.subf %210, %222 : vector<8x16xf32>
    %cst_130 = arith.constant 9.99999974E-6 : f32
    %224 = vector.broadcast %cst_130 : f32 to vector<8x1xf32>
    %225 = arith.addf %221, %224 : vector<8x1xf32>
    %226 = math.rsqrt %225 : vector<8x1xf32>
    %227 = vector.broadcast %226 : vector<8x1xf32> to vector<8x16xf32>
    %228 = arith.mulf %223, %227 : vector<8x16xf32>
    %229 = vector.broadcast %157 : vector<1x16xf32> to vector<8x16xf32>
    %230 = arith.mulf %228, %229 : vector<8x16xf32>
    %231 = vector.broadcast %159 : vector<1x16xf32> to vector<8x16xf32>
    %232 = arith.addf %230, %231 : vector<8x16xf32>
    %233 = arith.truncf %232 : vector<8x16xf32> to vector<8x16xbf16>
    %cst_131 = arith.constant dense<0.000000e+00> : vector<8x32xf32>
    %234 = tpu.matmul %233, %161, %cst_131 {dimension_numbers = #tpu.dot_dimension_numbers<[1], [0], [0], [1], [0, 0, 1, 1], [], []>} : vector<8x16xbf16>, vector<16x32xbf16>, vector<8x32xf32> -> vector<8x32xf32>
    %235 = vector.broadcast %163 : vector<1x32xf32> to vector<8x32xf32>
    %236 = arith.addf %234, %235 : vector<8x32xf32>
    %cst_132 = arith.constant 0.000000e+00 : f32
    %237 = vector.broadcast %cst_132 : f32 to vector<8x32xf32>
    %238 = arith.maximumf %236, %237 : vector<8x32xf32>
    %239 = arith.truncf %238 : vector<8x32xf32> to vector<8x32xbf16>
    %cst_133 = arith.constant dense<0.000000e+00> : vector<8x16xf32>
    %240 = tpu.matmul %239, %165, %cst_133 {dimension_numbers = #tpu.dot_dimension_numbers<[1], [0], [0], [1], [0, 0, 1, 1], [], []>} : vector<8x32xbf16>, vector<32x16xbf16>, vector<8x16xf32> -> vector<8x16xf32>
    %241 = vector.broadcast %167 : vector<1x16xf32> to vector<8x16xf32>
    %242 = arith.addf %240, %241 : vector<8x16xf32>
    %243 = arith.addf %232, %242 : vector<8x16xf32>
    %cst_134 = arith.constant dense<0.000000e+00> : vector<8xf32>
    %244 = vector.multi_reduction <add>, %243, %cst_134 [1] : vector<8x16xf32> to vector<8xf32>
    %245 = vector.shape_cast %244 : vector<8xf32> to vector<8x1xf32>
    %cst_135 = arith.constant 1.600000e+01 : f32
    %246 = vector.broadcast %cst_135 : f32 to vector<8x1xf32>
    %247 = arith.divf %245, %246 : vector<8x1xf32>
    %248 = vector.broadcast %247 : vector<8x1xf32> to vector<8x16xf32>
    %249 = arith.subf %243, %248 : vector<8x16xf32>
    %250 = arith.mulf %249, %249 : vector<8x16xf32>
    %cst_136 = arith.constant dense<0.000000e+00> : vector<8xf32>
    %251 = vector.multi_reduction <add>, %250, %cst_136 [1] : vector<8x16xf32> to vector<8xf32>
    %252 = vector.shape_cast %251 : vector<8xf32> to vector<8x1xf32>
    %cst_137 = arith.constant 1.600000e+01 : f32
    %253 = vector.broadcast %cst_137 : f32 to vector<8x1xf32>
    %254 = arith.divf %252, %253 : vector<8x1xf32>
    %255 = vector.broadcast %247 : vector<8x1xf32> to vector<8x16xf32>
    %256 = arith.subf %243, %255 : vector<8x16xf32>
    %cst_138 = arith.constant 9.99999974E-6 : f32
    %257 = vector.broadcast %cst_138 : f32 to vector<8x1xf32>
    %258 = arith.addf %254, %257 : vector<8x1xf32>
    %259 = math.rsqrt %258 : vector<8x1xf32>
    %260 = vector.broadcast %259 : vector<8x1xf32> to vector<8x16xf32>
    %261 = arith.mulf %256, %260 : vector<8x16xf32>
    %262 = vector.broadcast %169 : vector<1x16xf32> to vector<8x16xf32>
    %263 = arith.mulf %261, %262 : vector<8x16xf32>
    %264 = vector.broadcast %171 : vector<1x16xf32> to vector<8x16xf32>
    %265 = arith.addf %263, %264 : vector<8x16xf32>
    %c0_139 = arith.constant 0 : index
    %c0_140 = arith.constant 0 : index
    %266 = vector.load %arg10[%c0_139, %c0_140] : memref<8x10xbf16, #tpu.memory_space<vmem>>, vector<8x10xbf16>
    %267 = arith.truncf %130 : vector<10x16xf32> to vector<10x16xbf16>
    %cst_141 = arith.constant dense<0.000000e+00> : vector<8x16xf32>
    %268 = tpu.matmul %266, %267, %cst_141 {dimension_numbers = #tpu.dot_dimension_numbers<[1], [0], [0], [1], [0, 0, 1, 1], [], []>} : vector<8x10xbf16>, vector<10x16xbf16>, vector<8x16xf32> -> vector<8x16xf32>
    %c0_142 = arith.constant 0 : index
    %c0_143 = arith.constant 0 : index
    %269 = vector.load %arg11[%c0_142, %c0_143] : memref<8x1xf32, #tpu.memory_space<vmem>>, vector<8x1xf32>
    %270 = vector.broadcast %269 : vector<8x1xf32> to vector<8x16xf32>
    %271 = arith.addf %268, %270 : vector<8x16xf32>
    %272 = tpu.concatenate %271, %265 in 1 : vector<8x16xf32>, vector<8x16xf32> -> vector<8x32xf32>
    %c0_144 = arith.constant 0 : index
    %c0_145 = arith.constant 0 : index
    %273 = vector.load %arg14[%c0_144, %c0_145] : memref<32x32xf32, #tpu.memory_space<vmem>>, vector<32x32xf32>
    %c0_146 = arith.constant 0 : index
    %c0_147 = arith.constant 0 : index
    %c0_148 = arith.constant 0 : index
    %274 = vector.load %arg39[%c0_146, %c0_147, %c0_148] : memref<1x32x96xbf16, #tpu.memory_space<vmem>>, vector<1x32x96xbf16>
    %275 = vector.shape_cast %274 : vector<1x32x96xbf16> to vector<32x96xbf16>
    %c0_149 = arith.constant 0 : index
    %c0_150 = arith.constant 0 : index
    %c0_151 = arith.constant 0 : index
    %276 = vector.load %arg40[%c0_149, %c0_150, %c0_151] : memref<1x1x96xf32, #tpu.memory_space<vmem>>, vector<1x1x96xf32>
    %277 = vector.shape_cast %276 : vector<1x1x96xf32> to vector<1x96xf32>
    %c0_152 = arith.constant 0 : index
    %c0_153 = arith.constant 0 : index
    %c0_154 = arith.constant 0 : index
    %278 = vector.load %arg41[%c0_152, %c0_153, %c0_154] : memref<1x32x32xbf16, #tpu.memory_space<vmem>>, vector<1x32x32xbf16>
    %279 = vector.shape_cast %278 : vector<1x32x32xbf16> to vector<32x32xbf16>
    %c0_155 = arith.constant 0 : index
    %c0_156 = arith.constant 0 : index
    %c0_157 = arith.constant 0 : index
    %280 = vector.load %arg42[%c0_155, %c0_156, %c0_157] : memref<1x1x32xf32, #tpu.memory_space<vmem>>, vector<1x1x32xf32>
    %281 = vector.shape_cast %280 : vector<1x1x32xf32> to vector<1x32xf32>
    %c0_158 = arith.constant 0 : index
    %c0_159 = arith.constant 0 : index
    %c0_160 = arith.constant 0 : index
    %282 = vector.load %arg43[%c0_158, %c0_159, %c0_160] : memref<1x1x32xf32, #tpu.memory_space<vmem>>, vector<1x1x32xf32>
    %283 = vector.shape_cast %282 : vector<1x1x32xf32> to vector<1x32xf32>
    %c0_161 = arith.constant 0 : index
    %c0_162 = arith.constant 0 : index
    %c0_163 = arith.constant 0 : index
    %284 = vector.load %arg44[%c0_161, %c0_162, %c0_163] : memref<1x1x32xf32, #tpu.memory_space<vmem>>, vector<1x1x32xf32>
    %285 = vector.shape_cast %284 : vector<1x1x32xf32> to vector<1x32xf32>
    %c0_164 = arith.constant 0 : index
    %c0_165 = arith.constant 0 : index
    %c0_166 = arith.constant 0 : index
    %286 = vector.load %arg45[%c0_164, %c0_165, %c0_166] : memref<1x32x64xbf16, #tpu.memory_space<vmem>>, vector<1x32x64xbf16>
    %287 = vector.shape_cast %286 : vector<1x32x64xbf16> to vector<32x64xbf16>
    %c0_167 = arith.constant 0 : index
    %c0_168 = arith.constant 0 : index
    %c0_169 = arith.constant 0 : index
    %288 = vector.load %arg46[%c0_167, %c0_168, %c0_169] : memref<1x1x64xf32, #tpu.memory_space<vmem>>, vector<1x1x64xf32>
    %289 = vector.shape_cast %288 : vector<1x1x64xf32> to vector<1x64xf32>
    %c0_170 = arith.constant 0 : index
    %c0_171 = arith.constant 0 : index
    %c0_172 = arith.constant 0 : index
    %290 = vector.load %arg47[%c0_170, %c0_171, %c0_172] : memref<1x64x32xbf16, #tpu.memory_space<vmem>>, vector<1x64x32xbf16>
    %291 = vector.shape_cast %290 : vector<1x64x32xbf16> to vector<64x32xbf16>
    %c0_173 = arith.constant 0 : index
    %c0_174 = arith.constant 0 : index
    %c0_175 = arith.constant 0 : index
    %292 = vector.load %arg48[%c0_173, %c0_174, %c0_175] : memref<1x1x32xf32, #tpu.memory_space<vmem>>, vector<1x1x32xf32>
    %293 = vector.shape_cast %292 : vector<1x1x32xf32> to vector<1x32xf32>
    %c0_176 = arith.constant 0 : index
    %c0_177 = arith.constant 0 : index
    %c0_178 = arith.constant 0 : index
    %294 = vector.load %arg49[%c0_176, %c0_177, %c0_178] : memref<1x1x32xf32, #tpu.memory_space<vmem>>, vector<1x1x32xf32>
    %295 = vector.shape_cast %294 : vector<1x1x32xf32> to vector<1x32xf32>
    %c0_179 = arith.constant 0 : index
    %c0_180 = arith.constant 0 : index
    %c0_181 = arith.constant 0 : index
    %296 = vector.load %arg50[%c0_179, %c0_180, %c0_181] : memref<1x1x32xf32, #tpu.memory_space<vmem>>, vector<1x1x32xf32>
    %297 = vector.shape_cast %296 : vector<1x1x32xf32> to vector<1x32xf32>
    %298 = arith.truncf %272 : vector<8x32xf32> to vector<8x32xbf16>
    %cst_182 = arith.constant dense<0.000000e+00> : vector<8x96xf32>
    %299 = tpu.matmul %298, %275, %cst_182 {dimension_numbers = #tpu.dot_dimension_numbers<[1], [0], [0], [1], [0, 0, 1, 1], [], []>} : vector<8x32xbf16>, vector<32x96xbf16>, vector<8x96xf32> -> vector<8x96xf32>
    %300 = vector.broadcast %277 : vector<1x96xf32> to vector<8x96xf32>
    %301 = arith.addf %299, %300 : vector<8x96xf32>
    %302 = vector.extract_strided_slice %301 {offsets = [0, 0], sizes = [8, 8], strides = [1, 1]} : vector<8x96xf32> to vector<8x8xf32>
    %303 = vector.extract_strided_slice %301 {offsets = [0, 8], sizes = [8, 8], strides = [1, 1]} : vector<8x96xf32> to vector<8x8xf32>
    %304 = vector.extract_strided_slice %301 {offsets = [0, 16], sizes = [8, 8], strides = [1, 1]} : vector<8x96xf32> to vector<8x8xf32>
    %305 = vector.extract_strided_slice %301 {offsets = [0, 24], sizes = [8, 8], strides = [1, 1]} : vector<8x96xf32> to vector<8x8xf32>
    %306 = tpu.concatenate %302, %303, %304, %305 in 0 : vector<8x8xf32>, vector<8x8xf32>, vector<8x8xf32>, vector<8x8xf32> -> vector<32x8xf32>
    %307 = vector.extract_strided_slice %301 {offsets = [0, 32], sizes = [8, 8], strides = [1, 1]} : vector<8x96xf32> to vector<8x8xf32>
    %308 = vector.extract_strided_slice %301 {offsets = [0, 40], sizes = [8, 8], strides = [1, 1]} : vector<8x96xf32> to vector<8x8xf32>
    %309 = vector.extract_strided_slice %301 {offsets = [0, 48], sizes = [8, 8], strides = [1, 1]} : vector<8x96xf32> to vector<8x8xf32>
    %310 = vector.extract_strided_slice %301 {offsets = [0, 56], sizes = [8, 8], strides = [1, 1]} : vector<8x96xf32> to vector<8x8xf32>
    %311 = tpu.concatenate %307, %308, %309, %310 in 0 : vector<8x8xf32>, vector<8x8xf32>, vector<8x8xf32>, vector<8x8xf32> -> vector<32x8xf32>
    %312 = vector.extract_strided_slice %301 {offsets = [0, 64], sizes = [8, 8], strides = [1, 1]} : vector<8x96xf32> to vector<8x8xf32>
    %313 = vector.extract_strided_slice %301 {offsets = [0, 72], sizes = [8, 8], strides = [1, 1]} : vector<8x96xf32> to vector<8x8xf32>
    %314 = vector.extract_strided_slice %301 {offsets = [0, 80], sizes = [8, 8], strides = [1, 1]} : vector<8x96xf32> to vector<8x8xf32>
    %315 = vector.extract_strided_slice %301 {offsets = [0, 88], sizes = [8, 8], strides = [1, 1]} : vector<8x96xf32> to vector<8x8xf32>
    %316 = tpu.concatenate %312, %313, %314, %315 in 0 : vector<8x8xf32>, vector<8x8xf32>, vector<8x8xf32>, vector<8x8xf32> -> vector<32x8xf32>
    %317 = arith.truncf %306 : vector<32x8xf32> to vector<32x8xbf16>
    %318 = arith.truncf %311 : vector<32x8xf32> to vector<32x8xbf16>
    %cst_183 = arith.constant dense<0.000000e+00> : vector<32x32xf32>
    %319 = tpu.matmul %317, %318, %cst_183 {dimension_numbers = #tpu.dot_dimension_numbers<[1], [1], [0], [0], [0, 0, 1, 0], [], []>} : vector<32x8xbf16>, vector<32x8xbf16>, vector<32x32xf32> -> vector<32x32xf32>
    %cst_184 = arith.constant 0.353553385 : f32
    %320 = vector.broadcast %cst_184 : f32 to vector<32x32xf32>
    %321 = arith.mulf %319, %320 : vector<32x32xf32>
    %322 = arith.addf %321, %273 : vector<32x32xf32>
    %cst_185 = arith.constant dense<0xFF800000> : vector<32xf32>
    %323 = vector.multi_reduction <maximumf>, %322, %cst_185 [1] : vector<32x32xf32> to vector<32xf32>
    %324 = vector.shape_cast %323 : vector<32xf32> to vector<32x1xf32>
    %325 = vector.broadcast %324 : vector<32x1xf32> to vector<32x32xf32>
    %326 = arith.subf %322, %325 : vector<32x32xf32>
    %327 = math.exp %326 : vector<32x32xf32>
    %cst_186 = arith.constant dense<0.000000e+00> : vector<32xf32>
    %328 = vector.multi_reduction <add>, %327, %cst_186 [1] : vector<32x32xf32> to vector<32xf32>
    %329 = vector.shape_cast %328 : vector<32xf32> to vector<32x1xf32>
    %330 = vector.broadcast %329 : vector<32x1xf32> to vector<32x32xf32>
    %331 = arith.divf %327, %330 : vector<32x32xf32>
    %332 = arith.truncf %331 : vector<32x32xf32> to vector<32x32xbf16>
    %333 = arith.truncf %316 : vector<32x8xf32> to vector<32x8xbf16>
    %cst_187 = arith.constant dense<0.000000e+00> : vector<32x8xf32>
    %334 = tpu.matmul %332, %333, %cst_187 {dimension_numbers = #tpu.dot_dimension_numbers<[1], [0], [0], [1], [0, 0, 1, 1], [], []>} : vector<32x32xbf16>, vector<32x8xbf16>, vector<32x8xf32> -> vector<32x8xf32>
    %335 = vector.extract_strided_slice %334 {offsets = [0, 0], sizes = [8, 8], strides = [1, 1]} : vector<32x8xf32> to vector<8x8xf32>
    %336 = vector.extract_strided_slice %334 {offsets = [8, 0], sizes = [8, 8], strides = [1, 1]} : vector<32x8xf32> to vector<8x8xf32>
    %337 = vector.extract_strided_slice %334 {offsets = [16, 0], sizes = [8, 8], strides = [1, 1]} : vector<32x8xf32> to vector<8x8xf32>
    %338 = vector.extract_strided_slice %334 {offsets = [24, 0], sizes = [8, 8], strides = [1, 1]} : vector<32x8xf32> to vector<8x8xf32>
    %339 = tpu.concatenate %335, %336, %337, %338 in 1 : vector<8x8xf32>, vector<8x8xf32>, vector<8x8xf32>, vector<8x8xf32> -> vector<8x32xf32>
    %340 = arith.truncf %339 : vector<8x32xf32> to vector<8x32xbf16>
    %cst_188 = arith.constant dense<0.000000e+00> : vector<8x32xf32>
    %341 = tpu.matmul %340, %279, %cst_188 {dimension_numbers = #tpu.dot_dimension_numbers<[1], [0], [0], [1], [0, 0, 1, 1], [], []>} : vector<8x32xbf16>, vector<32x32xbf16>, vector<8x32xf32> -> vector<8x32xf32>
    %342 = vector.broadcast %281 : vector<1x32xf32> to vector<8x32xf32>
    %343 = arith.addf %341, %342 : vector<8x32xf32>
    %344 = arith.addf %272, %343 : vector<8x32xf32>
    %cst_189 = arith.constant dense<0.000000e+00> : vector<8xf32>
    %345 = vector.multi_reduction <add>, %344, %cst_189 [1] : vector<8x32xf32> to vector<8xf32>
    %346 = vector.shape_cast %345 : vector<8xf32> to vector<8x1xf32>
    %cst_190 = arith.constant 3.200000e+01 : f32
    %347 = vector.broadcast %cst_190 : f32 to vector<8x1xf32>
    %348 = arith.divf %346, %347 : vector<8x1xf32>
    %349 = vector.broadcast %348 : vector<8x1xf32> to vector<8x32xf32>
    %350 = arith.subf %344, %349 : vector<8x32xf32>
    %351 = arith.mulf %350, %350 : vector<8x32xf32>
    %cst_191 = arith.constant dense<0.000000e+00> : vector<8xf32>
    %352 = vector.multi_reduction <add>, %351, %cst_191 [1] : vector<8x32xf32> to vector<8xf32>
    %353 = vector.shape_cast %352 : vector<8xf32> to vector<8x1xf32>
    %cst_192 = arith.constant 3.200000e+01 : f32
    %354 = vector.broadcast %cst_192 : f32 to vector<8x1xf32>
    %355 = arith.divf %353, %354 : vector<8x1xf32>
    %356 = vector.broadcast %348 : vector<8x1xf32> to vector<8x32xf32>
    %357 = arith.subf %344, %356 : vector<8x32xf32>
    %cst_193 = arith.constant 9.99999974E-6 : f32
    %358 = vector.broadcast %cst_193 : f32 to vector<8x1xf32>
    %359 = arith.addf %355, %358 : vector<8x1xf32>
    %360 = math.rsqrt %359 : vector<8x1xf32>
    %361 = vector.broadcast %360 : vector<8x1xf32> to vector<8x32xf32>
    %362 = arith.mulf %357, %361 : vector<8x32xf32>
    %363 = vector.broadcast %283 : vector<1x32xf32> to vector<8x32xf32>
    %364 = arith.mulf %362, %363 : vector<8x32xf32>
    %365 = vector.broadcast %285 : vector<1x32xf32> to vector<8x32xf32>
    %366 = arith.addf %364, %365 : vector<8x32xf32>
    %367 = arith.truncf %366 : vector<8x32xf32> to vector<8x32xbf16>
    %cst_194 = arith.constant dense<0.000000e+00> : vector<8x64xf32>
    %368 = tpu.matmul %367, %287, %cst_194 {dimension_numbers = #tpu.dot_dimension_numbers<[1], [0], [0], [1], [0, 0, 1, 1], [], []>} : vector<8x32xbf16>, vector<32x64xbf16>, vector<8x64xf32> -> vector<8x64xf32>
    %369 = vector.broadcast %289 : vector<1x64xf32> to vector<8x64xf32>
    %370 = arith.addf %368, %369 : vector<8x64xf32>
    %cst_195 = arith.constant 0.000000e+00 : f32
    %371 = vector.broadcast %cst_195 : f32 to vector<8x64xf32>
    %372 = arith.maximumf %370, %371 : vector<8x64xf32>
    %373 = arith.truncf %372 : vector<8x64xf32> to vector<8x64xbf16>
    %cst_196 = arith.constant dense<0.000000e+00> : vector<8x32xf32>
    %374 = tpu.matmul %373, %291, %cst_196 {dimension_numbers = #tpu.dot_dimension_numbers<[1], [0], [0], [1], [0, 0, 1, 1], [], []>} : vector<8x64xbf16>, vector<64x32xbf16>, vector<8x32xf32> -> vector<8x32xf32>
    %375 = vector.broadcast %293 : vector<1x32xf32> to vector<8x32xf32>
    %376 = arith.addf %374, %375 : vector<8x32xf32>
    %377 = arith.addf %366, %376 : vector<8x32xf32>
    %cst_197 = arith.constant dense<0.000000e+00> : vector<8xf32>
    %378 = vector.multi_reduction <add>, %377, %cst_197 [1] : vector<8x32xf32> to vector<8xf32>
    %379 = vector.shape_cast %378 : vector<8xf32> to vector<8x1xf32>
    %cst_198 = arith.constant 3.200000e+01 : f32
    %380 = vector.broadcast %cst_198 : f32 to vector<8x1xf32>
    %381 = arith.divf %379, %380 : vector<8x1xf32>
    %382 = vector.broadcast %381 : vector<8x1xf32> to vector<8x32xf32>
    %383 = arith.subf %377, %382 : vector<8x32xf32>
    %384 = arith.mulf %383, %383 : vector<8x32xf32>
    %cst_199 = arith.constant dense<0.000000e+00> : vector<8xf32>
    %385 = vector.multi_reduction <add>, %384, %cst_199 [1] : vector<8x32xf32> to vector<8xf32>
    %386 = vector.shape_cast %385 : vector<8xf32> to vector<8x1xf32>
    %cst_200 = arith.constant 3.200000e+01 : f32
    %387 = vector.broadcast %cst_200 : f32 to vector<8x1xf32>
    %388 = arith.divf %386, %387 : vector<8x1xf32>
    %389 = vector.broadcast %381 : vector<8x1xf32> to vector<8x32xf32>
    %390 = arith.subf %377, %389 : vector<8x32xf32>
    %cst_201 = arith.constant 9.99999974E-6 : f32
    %391 = vector.broadcast %cst_201 : f32 to vector<8x1xf32>
    %392 = arith.addf %388, %391 : vector<8x1xf32>
    %393 = math.rsqrt %392 : vector<8x1xf32>
    %394 = vector.broadcast %393 : vector<8x1xf32> to vector<8x32xf32>
    %395 = arith.mulf %390, %394 : vector<8x32xf32>
    %396 = vector.broadcast %295 : vector<1x32xf32> to vector<8x32xf32>
    %397 = arith.mulf %395, %396 : vector<8x32xf32>
    %398 = vector.broadcast %297 : vector<1x32xf32> to vector<8x32xf32>
    %399 = arith.addf %397, %398 : vector<8x32xf32>
    %c0_202 = arith.constant 0 : index
    %c0_203 = arith.constant 0 : index
    %400 = vector.load %arg52[%c0_202, %c0_203] : memref<1x512xf32, #tpu.memory_space<vmem>>, vector<1x512xf32>
    %401 = vector.extract_strided_slice %399 {offsets = [0, 0], sizes = [1, 32], strides = [1, 1]} : vector<8x32xf32> to vector<1x32xf32>
    %402 = arith.truncf %401 : vector<1x32xf32> to vector<1x32xbf16>
    %c0_204 = arith.constant 0 : index
    %c0_205 = arith.constant 0 : index
    %c0_206 = arith.constant 0 : index
    %403 = vector.load %arg51[%c0_204, %c0_205, %c0_206] : memref<8x32x512xbf16, #tpu.memory_space<vmem>>, vector<1x32x512xbf16>
    %404 = vector.shape_cast %403 : vector<1x32x512xbf16> to vector<32x512xbf16>
    %cst_207 = arith.constant dense<0.000000e+00> : vector<1x512xf32>
    %405 = tpu.matmul %402, %404, %cst_207 {dimension_numbers = #tpu.dot_dimension_numbers<[1], [0], [0], [1], [0, 0, 1, 1], [], []>} : vector<1x32xbf16>, vector<32x512xbf16>, vector<1x512xf32> -> vector<1x512xf32>
    %406 = arith.addf %400, %405 : vector<1x512xf32>
    %407 = vector.extract_strided_slice %399 {offsets = [1, 0], sizes = [1, 32], strides = [1, 1]} : vector<8x32xf32> to vector<1x32xf32>
    %408 = arith.truncf %407 : vector<1x32xf32> to vector<1x32xbf16>
    %c1 = arith.constant 1 : index
    %c0_208 = arith.constant 0 : index
    %c0_209 = arith.constant 0 : index
    %409 = vector.load %arg51[%c1, %c0_208, %c0_209] : memref<8x32x512xbf16, #tpu.memory_space<vmem>>, vector<1x32x512xbf16>
    %410 = vector.shape_cast %409 : vector<1x32x512xbf16> to vector<32x512xbf16>
    %cst_210 = arith.constant dense<0.000000e+00> : vector<1x512xf32>
    %411 = tpu.matmul %408, %410, %cst_210 {dimension_numbers = #tpu.dot_dimension_numbers<[1], [0], [0], [1], [0, 0, 1, 1], [], []>} : vector<1x32xbf16>, vector<32x512xbf16>, vector<1x512xf32> -> vector<1x512xf32>
    %412 = arith.addf %406, %411 : vector<1x512xf32>
    %413 = vector.extract_strided_slice %399 {offsets = [2, 0], sizes = [1, 32], strides = [1, 1]} : vector<8x32xf32> to vector<1x32xf32>
    %414 = arith.truncf %413 : vector<1x32xf32> to vector<1x32xbf16>
    %c2 = arith.constant 2 : index
    %c0_211 = arith.constant 0 : index
    %c0_212 = arith.constant 0 : index
    %415 = vector.load %arg51[%c2, %c0_211, %c0_212] : memref<8x32x512xbf16, #tpu.memory_space<vmem>>, vector<1x32x512xbf16>
    %416 = vector.shape_cast %415 : vector<1x32x512xbf16> to vector<32x512xbf16>
    %cst_213 = arith.constant dense<0.000000e+00> : vector<1x512xf32>
    %417 = tpu.matmul %414, %416, %cst_213 {dimension_numbers = #tpu.dot_dimension_numbers<[1], [0], [0], [1], [0, 0, 1, 1], [], []>} : vector<1x32xbf16>, vector<32x512xbf16>, vector<1x512xf32> -> vector<1x512xf32>
    %418 = arith.addf %412, %417 : vector<1x512xf32>
    %419 = vector.extract_strided_slice %399 {offsets = [3, 0], sizes = [1, 32], strides = [1, 1]} : vector<8x32xf32> to vector<1x32xf32>
    %420 = arith.truncf %419 : vector<1x32xf32> to vector<1x32xbf16>
    %c3 = arith.constant 3 : index
    %c0_214 = arith.constant 0 : index
    %c0_215 = arith.constant 0 : index
    %421 = vector.load %arg51[%c3, %c0_214, %c0_215] : memref<8x32x512xbf16, #tpu.memory_space<vmem>>, vector<1x32x512xbf16>
    %422 = vector.shape_cast %421 : vector<1x32x512xbf16> to vector<32x512xbf16>
    %cst_216 = arith.constant dense<0.000000e+00> : vector<1x512xf32>
    %423 = tpu.matmul %420, %422, %cst_216 {dimension_numbers = #tpu.dot_dimension_numbers<[1], [0], [0], [1], [0, 0, 1, 1], [], []>} : vector<1x32xbf16>, vector<32x512xbf16>, vector<1x512xf32> -> vector<1x512xf32>
    %424 = arith.addf %418, %423 : vector<1x512xf32>
    %425 = vector.extract_strided_slice %399 {offsets = [4, 0], sizes = [1, 32], strides = [1, 1]} : vector<8x32xf32> to vector<1x32xf32>
    %426 = arith.truncf %425 : vector<1x32xf32> to vector<1x32xbf16>
    %c4 = arith.constant 4 : index
    %c0_217 = arith.constant 0 : index
    %c0_218 = arith.constant 0 : index
    %427 = vector.load %arg51[%c4, %c0_217, %c0_218] : memref<8x32x512xbf16, #tpu.memory_space<vmem>>, vector<1x32x512xbf16>
    %428 = vector.shape_cast %427 : vector<1x32x512xbf16> to vector<32x512xbf16>
    %cst_219 = arith.constant dense<0.000000e+00> : vector<1x512xf32>
    %429 = tpu.matmul %426, %428, %cst_219 {dimension_numbers = #tpu.dot_dimension_numbers<[1], [0], [0], [1], [0, 0, 1, 1], [], []>} : vector<1x32xbf16>, vector<32x512xbf16>, vector<1x512xf32> -> vector<1x512xf32>
    %430 = arith.addf %424, %429 : vector<1x512xf32>
    %431 = vector.extract_strided_slice %399 {offsets = [5, 0], sizes = [1, 32], strides = [1, 1]} : vector<8x32xf32> to vector<1x32xf32>
    %432 = arith.truncf %431 : vector<1x32xf32> to vector<1x32xbf16>
    %c5 = arith.constant 5 : index
    %c0_220 = arith.constant 0 : index
    %c0_221 = arith.constant 0 : index
    %433 = vector.load %arg51[%c5, %c0_220, %c0_221] : memref<8x32x512xbf16, #tpu.memory_space<vmem>>, vector<1x32x512xbf16>
    %434 = vector.shape_cast %433 : vector<1x32x512xbf16> to vector<32x512xbf16>
    %cst_222 = arith.constant dense<0.000000e+00> : vector<1x512xf32>
    %435 = tpu.matmul %432, %434, %cst_222 {dimension_numbers = #tpu.dot_dimension_numbers<[1], [0], [0], [1], [0, 0, 1, 1], [], []>} : vector<1x32xbf16>, vector<32x512xbf16>, vector<1x512xf32> -> vector<1x512xf32>
    %436 = arith.addf %430, %435 : vector<1x512xf32>
    %437 = vector.extract_strided_slice %399 {offsets = [6, 0], sizes = [1, 32], strides = [1, 1]} : vector<8x32xf32> to vector<1x32xf32>
    %438 = arith.truncf %437 : vector<1x32xf32> to vector<1x32xbf16>
    %c6 = arith.constant 6 : index
    %c0_223 = arith.constant 0 : index
    %c0_224 = arith.constant 0 : index
    %439 = vector.load %arg51[%c6, %c0_223, %c0_224] : memref<8x32x512xbf16, #tpu.memory_space<vmem>>, vector<1x32x512xbf16>
    %440 = vector.shape_cast %439 : vector<1x32x512xbf16> to vector<32x512xbf16>
    %cst_225 = arith.constant dense<0.000000e+00> : vector<1x512xf32>
    %441 = tpu.matmul %438, %440, %cst_225 {dimension_numbers = #tpu.dot_dimension_numbers<[1], [0], [0], [1], [0, 0, 1, 1], [], []>} : vector<1x32xbf16>, vector<32x512xbf16>, vector<1x512xf32> -> vector<1x512xf32>
    %442 = arith.addf %436, %441 : vector<1x512xf32>
    %443 = vector.extract_strided_slice %399 {offsets = [7, 0], sizes = [1, 32], strides = [1, 1]} : vector<8x32xf32> to vector<1x32xf32>
    %444 = arith.truncf %443 : vector<1x32xf32> to vector<1x32xbf16>
    %c7 = arith.constant 7 : index
    %c0_226 = arith.constant 0 : index
    %c0_227 = arith.constant 0 : index
    %445 = vector.load %arg51[%c7, %c0_226, %c0_227] : memref<8x32x512xbf16, #tpu.memory_space<vmem>>, vector<1x32x512xbf16>
    %446 = vector.shape_cast %445 : vector<1x32x512xbf16> to vector<32x512xbf16>
    %cst_228 = arith.constant dense<0.000000e+00> : vector<1x512xf32>
    %447 = tpu.matmul %444, %446, %cst_228 {dimension_numbers = #tpu.dot_dimension_numbers<[1], [0], [0], [1], [0, 0, 1, 1], [], []>} : vector<1x32xbf16>, vector<32x512xbf16>, vector<1x512xf32> -> vector<1x512xf32>
    %448 = arith.addf %442, %447 : vector<1x512xf32>
    %cst_229 = arith.constant 0.000000e+00 : f32
    %449 = vector.broadcast %cst_229 : f32 to vector<1x512xf32>
    %450 = arith.maximumf %448, %449 : vector<1x512xf32>
    %451 = arith.truncf %450 : vector<1x512xf32> to vector<1x512xbf16>
    %c0_230 = arith.constant 0 : index
    %c0_231 = arith.constant 0 : index
    %452 = vector.load %arg53[%c0_230, %c0_231] : memref<512x256xbf16, #tpu.memory_space<vmem>>, vector<512x256xbf16>
    %cst_232 = arith.constant dense<0.000000e+00> : vector<1x256xf32>
    %453 = tpu.matmul %451, %452, %cst_232 {dimension_numbers = #tpu.dot_dimension_numbers<[1], [0], [0], [1], [0, 0, 1, 1], [], []>} : vector<1x512xbf16>, vector<512x256xbf16>, vector<1x256xf32> -> vector<1x256xf32>
    %c0_233 = arith.constant 0 : index
    %c0_234 = arith.constant 0 : index
    %454 = vector.load %arg54[%c0_233, %c0_234] : memref<1x256xf32, #tpu.memory_space<vmem>>, vector<1x256xf32>
    %455 = arith.addf %453, %454 : vector<1x256xf32>
    %cst_235 = arith.constant 0.000000e+00 : f32
    %456 = vector.broadcast %cst_235 : f32 to vector<1x256xf32>
    %457 = arith.maximumf %455, %456 : vector<1x256xf32>
    %458 = arith.truncf %457 : vector<1x256xf32> to vector<1x256xbf16>
    %c0_236 = arith.constant 0 : index
    %c0_237 = arith.constant 0 : index
    %459 = vector.load %arg55[%c0_236, %c0_237] : memref<256x5xbf16, #tpu.memory_space<vmem>>, vector<256x5xbf16>
    %cst_238 = arith.constant dense<0.000000e+00> : vector<1x5xf32>
    %460 = tpu.matmul %458, %459, %cst_238 {dimension_numbers = #tpu.dot_dimension_numbers<[1], [0], [0], [1], [0, 0, 1, 1], [], []>} : vector<1x256xbf16>, vector<256x5xbf16>, vector<1x5xf32> -> vector<1x5xf32>
    %c0_239 = arith.constant 0 : index
    %c0_240 = arith.constant 0 : index
    %461 = vector.load %arg56[%c0_239, %c0_240] : memref<1x5xf32, #tpu.memory_space<vmem>>, vector<1x5xf32>
    %462 = arith.addf %460, %461 : vector<1x5xf32>
    %c0_241 = arith.constant 0 : index
    %c0_242 = arith.constant 0 : index
    %c0_243 = arith.constant 0 : index
    %463 = vector.load %arg57[%c0_241, %c0_242, %c0_243] : memref<1x1x5xf32, #tpu.memory_space<vmem>>, vector<1x1x5xf32>
    %464 = vector.shape_cast %463 : vector<1x1x5xf32> to vector<1x5xf32>
    %465 = vector.shape_cast %462 : vector<1x5xf32> to vector<1x1x5xf32>
    tpu.vector_store %arg57[%c0_241, %c0_242, %c0_243], %465 {strides = array<i32>} : memref<1x1x5xf32, #tpu.memory_space<vmem>>, vector<1x1x5xf32>,
    return
  }
  func.func @transform_0(%arg0: i32) -> (i32, i32, i32) {
    %c0_i32 = arith.constant 0 : i32
    %c0_i32_0 = arith.constant 0 : i32
    %c0_i32_1 = arith.constant 0 : i32
    return %arg0, %c0_i32, %c0_i32_0 : i32, i32, i32
  }
  func.func @transform_1(%arg0: i32) -> (i32, i32, i32) {
    %c0_i32 = arith.constant 0 : i32
    %c0_i32_0 = arith.constant 0 : i32
    %c0_i32_1 = arith.constant 0 : i32
    return %arg0, %c0_i32, %c0_i32_0 : i32, i32, i32
  }
  func.func @transform_2(%arg0: i32) -> (i32, i32) {
    %c0_i32 = arith.constant 0 : i32
    %c0_i32_0 = arith.constant 0 : i32
    %c0_i32_1 = arith.constant 0 : i32
    return %c0_i32, %c0_i32_0 : i32, i32
  }
  func.func @transform_3(%arg0: i32) -> (i32, i32) {
    %c0_i32 = arith.constant 0 : i32
    %c0_i32_0 = arith.constant 0 : i32
    %c0_i32_1 = arith.constant 0 : i32
    return %c0_i32, %c0_i32_0 : i32, i32
  }
  func.func @transform_4(%arg0: i32) -> (i32, i32) {
    %c0_i32 = arith.constant 0 : i32
    %c0_i32_0 = arith.constant 0 : i32
    %c0_i32_1 = arith.constant 0 : i32
    return %c0_i32, %c0_i32_0 : i32, i32
  }
  func.func @transform_5(%arg0: i32) -> (i32, i32) {
    %c0_i32 = arith.constant 0 : i32
    %c0_i32_0 = arith.constant 0 : i32
    %c0_i32_1 = arith.constant 0 : i32
    return %c0_i32, %c0_i32_0 : i32, i32
  }
  func.func @transform_6(%arg0: i32) -> (i32, i32) {
    %c0_i32 = arith.constant 0 : i32
    %c0_i32_0 = arith.constant 0 : i32
    %c0_i32_1 = arith.constant 0 : i32
    return %c0_i32, %c0_i32_0 : i32, i32
  }
  func.func @transform_7(%arg0: i32) -> (i32, i32) {
    %c0_i32 = arith.constant 0 : i32
    %c0_i32_0 = arith.constant 0 : i32
    %c0_i32_1 = arith.constant 0 : i32
    return %c0_i32, %c0_i32_0 : i32, i32
  }
  func.func @transform_8(%arg0: i32) -> (i32, i32) {
    %c0_i32 = arith.constant 0 : i32
    %c0_i32_0 = arith.constant 0 : i32
    %c0_i32_1 = arith.constant 0 : i32
    return %c0_i32, %c0_i32_0 : i32, i32
  }
  func.func @transform_9(%arg0: i32) -> (i32, i32) {
    %c0_i32 = arith.constant 0 : i32
    %c0_i32_0 = arith.constant 0 : i32
    %c0_i32_1 = arith.constant 0 : i32
    return %c0_i32, %c0_i32_0 : i32, i32
  }
  func.func @transform_10(%arg0: i32) -> (i32, i32) {
    %c0_i32 = arith.constant 0 : i32
    %c0_i32_0 = arith.constant 0 : i32
    %c0_i32_1 = arith.constant 0 : i32
    return %c0_i32, %c0_i32_0 : i32, i32
  }
  func.func @transform_11(%arg0: i32) -> (i32, i32) {
    %c0_i32 = arith.constant 0 : i32
    %c0_i32_0 = arith.constant 0 : i32
    %c0_i32_1 = arith.constant 0 : i32
    return %c0_i32, %c0_i32_0 : i32, i32
  }
  func.func @transform_12(%arg0: i32) -> (i32, i32) {
    %c0_i32 = arith.constant 0 : i32
    %c0_i32_0 = arith.constant 0 : i32
    %c0_i32_1 = arith.constant 0 : i32
    return %c0_i32, %c0_i32_0 : i32, i32
  }
  func.func @transform_13(%arg0: i32) -> (i32, i32) {
    %c0_i32 = arith.constant 0 : i32
    %c0_i32_0 = arith.constant 0 : i32
    %c0_i32_1 = arith.constant 0 : i32
    return %c0_i32, %c0_i32_0 : i32, i32
  }
  func.func @transform_14(%arg0: i32) -> (i32, i32, i32) {
    %c0_i32 = arith.constant 0 : i32
    %c0_i32_0 = arith.constant 0 : i32
    %c0_i32_1 = arith.constant 0 : i32
    %c0_i32_2 = arith.constant 0 : i32
    return %c0_i32, %c0_i32_0, %c0_i32_1 : i32, i32, i32
  }
  func.func @transform_15(%arg0: i32) -> (i32, i32, i32) {
    %c0_i32 = arith.constant 0 : i32
    %c0_i32_0 = arith.constant 0 : i32
    %c0_i32_1 = arith.constant 0 : i32
    %c0_i32_2 = arith.constant 0 : i32
    return %c0_i32, %c0_i32_0, %c0_i32_1 : i32, i32, i32
  }
  func.func @transform_16(%arg0: i32) -> (i32, i32, i32) {
    %c0_i32 = arith.constant 0 : i32
    %c0_i32_0 = arith.constant 0 : i32
    %c0_i32_1 = arith.constant 0 : i32
    %c0_i32_2 = arith.constant 0 : i32
    return %c0_i32, %c0_i32_0, %c0_i32_1 : i32, i32, i32
  }
  func.func @transform_17(%arg0: i32) -> (i32, i32, i32) {
    %c0_i32 = arith.constant 0 : i32
    %c0_i32_0 = arith.constant 0 : i32
    %c0_i32_1 = arith.constant 0 : i32
    %c0_i32_2 = arith.constant 0 : i32
    return %c0_i32, %c0_i32_0, %c0_i32_1 : i32, i32, i32
  }
  func.func @transform_18(%arg0: i32) -> (i32, i32, i32) {
    %c0_i32 = arith.constant 0 : i32
    %c0_i32_0 = arith.constant 0 : i32
    %c0_i32_1 = arith.constant 0 : i32
    %c0_i32_2 = arith.constant 0 : i32
    return %c0_i32, %c0_i32_0, %c0_i32_1 : i32, i32, i32
  }
  func.func @transform_19(%arg0: i32) -> (i32, i32, i32) {
    %c0_i32 = arith.constant 0 : i32
    %c0_i32_0 = arith.constant 0 : i32
    %c0_i32_1 = arith.constant 0 : i32
    %c0_i32_2 = arith.constant 0 : i32
    return %c0_i32, %c0_i32_0, %c0_i32_1 : i32, i32, i32
  }
  func.func @transform_20(%arg0: i32) -> (i32, i32, i32) {
    %c0_i32 = arith.constant 0 : i32
    %c0_i32_0 = arith.constant 0 : i32
    %c0_i32_1 = arith.constant 0 : i32
    %c0_i32_2 = arith.constant 0 : i32
    return %c0_i32, %c0_i32_0, %c0_i32_1 : i32, i32, i32
  }
  func.func @transform_21(%arg0: i32) -> (i32, i32, i32) {
    %c0_i32 = arith.constant 0 : i32
    %c0_i32_0 = arith.constant 0 : i32
    %c0_i32_1 = arith.constant 0 : i32
    %c0_i32_2 = arith.constant 0 : i32
    return %c0_i32, %c0_i32_0, %c0_i32_1 : i32, i32, i32
  }
  func.func @transform_22(%arg0: i32) -> (i32, i32, i32) {
    %c0_i32 = arith.constant 0 : i32
    %c0_i32_0 = arith.constant 0 : i32
    %c0_i32_1 = arith.constant 0 : i32
    %c0_i32_2 = arith.constant 0 : i32
    return %c0_i32, %c0_i32_0, %c0_i32_1 : i32, i32, i32
  }
  func.func @transform_23(%arg0: i32) -> (i32, i32, i32) {
    %c0_i32 = arith.constant 0 : i32
    %c0_i32_0 = arith.constant 0 : i32
    %c0_i32_1 = arith.constant 0 : i32
    %c0_i32_2 = arith.constant 0 : i32
    return %c0_i32, %c0_i32_0, %c0_i32_1 : i32, i32, i32
  }
  func.func @transform_24(%arg0: i32) -> (i32, i32, i32) {
    %c0_i32 = arith.constant 0 : i32
    %c0_i32_0 = arith.constant 0 : i32
    %c0_i32_1 = arith.constant 0 : i32
    %c0_i32_2 = arith.constant 0 : i32
    return %c0_i32, %c0_i32_0, %c0_i32_1 : i32, i32, i32
  }
  func.func @transform_25(%arg0: i32) -> (i32, i32, i32) {
    %c0_i32 = arith.constant 0 : i32
    %c0_i32_0 = arith.constant 0 : i32
    %c0_i32_1 = arith.constant 0 : i32
    %c0_i32_2 = arith.constant 0 : i32
    return %c0_i32, %c0_i32_0, %c0_i32_1 : i32, i32, i32
  }
  func.func @transform_26(%arg0: i32) -> (i32, i32, i32) {
    %c0_i32 = arith.constant 0 : i32
    %c0_i32_0 = arith.constant 0 : i32
    %c0_i32_1 = arith.constant 0 : i32
    %c0_i32_2 = arith.constant 0 : i32
    return %c0_i32, %c0_i32_0, %c0_i32_1 : i32, i32, i32
  }
  func.func @transform_27(%arg0: i32) -> (i32, i32, i32) {
    %c0_i32 = arith.constant 0 : i32
    %c0_i32_0 = arith.constant 0 : i32
    %c0_i32_1 = arith.constant 0 : i32
    %c0_i32_2 = arith.constant 0 : i32
    return %c0_i32, %c0_i32_0, %c0_i32_1 : i32, i32, i32
  }
  func.func @transform_28(%arg0: i32) -> (i32, i32, i32) {
    %c0_i32 = arith.constant 0 : i32
    %c0_i32_0 = arith.constant 0 : i32
    %c0_i32_1 = arith.constant 0 : i32
    %c0_i32_2 = arith.constant 0 : i32
    return %c0_i32, %c0_i32_0, %c0_i32_1 : i32, i32, i32
  }
  func.func @transform_29(%arg0: i32) -> (i32, i32, i32) {
    %c0_i32 = arith.constant 0 : i32
    %c0_i32_0 = arith.constant 0 : i32
    %c0_i32_1 = arith.constant 0 : i32
    %c0_i32_2 = arith.constant 0 : i32
    return %c0_i32, %c0_i32_0, %c0_i32_1 : i32, i32, i32
  }
  func.func @transform_30(%arg0: i32) -> (i32, i32, i32) {
    %c0_i32 = arith.constant 0 : i32
    %c0_i32_0 = arith.constant 0 : i32
    %c0_i32_1 = arith.constant 0 : i32
    %c0_i32_2 = arith.constant 0 : i32
    return %c0_i32, %c0_i32_0, %c0_i32_1 : i32, i32, i32
  }
  func.func @transform_31(%arg0: i32) -> (i32, i32, i32) {
    %c0_i32 = arith.constant 0 : i32
    %c0_i32_0 = arith.constant 0 : i32
    %c0_i32_1 = arith.constant 0 : i32
    %c0_i32_2 = arith.constant 0 : i32
    return %c0_i32, %c0_i32_0, %c0_i32_1 : i32, i32, i32
  }
  func.func @transform_32(%arg0: i32) -> (i32, i32, i32) {
    %c0_i32 = arith.constant 0 : i32
    %c0_i32_0 = arith.constant 0 : i32
    %c0_i32_1 = arith.constant 0 : i32
    %c0_i32_2 = arith.constant 0 : i32
    return %c0_i32, %c0_i32_0, %c0_i32_1 : i32, i32, i32
  }
  func.func @transform_33(%arg0: i32) -> (i32, i32, i32) {
    %c0_i32 = arith.constant 0 : i32
    %c0_i32_0 = arith.constant 0 : i32
    %c0_i32_1 = arith.constant 0 : i32
    %c0_i32_2 = arith.constant 0 : i32
    return %c0_i32, %c0_i32_0, %c0_i32_1 : i32, i32, i32
  }
  func.func @transform_34(%arg0: i32) -> (i32, i32, i32) {
    %c0_i32 = arith.constant 0 : i32
    %c0_i32_0 = arith.constant 0 : i32
    %c0_i32_1 = arith.constant 0 : i32
    %c0_i32_2 = arith.constant 0 : i32
    return %c0_i32, %c0_i32_0, %c0_i32_1 : i32, i32, i32
  }
  func.func @transform_35(%arg0: i32) -> (i32, i32, i32) {
    %c0_i32 = arith.constant 0 : i32
    %c0_i32_0 = arith.constant 0 : i32
    %c0_i32_1 = arith.constant 0 : i32
    %c0_i32_2 = arith.constant 0 : i32
    return %c0_i32, %c0_i32_0, %c0_i32_1 : i32, i32, i32
  }
  func.func @transform_36(%arg0: i32) -> (i32, i32, i32) {
    %c0_i32 = arith.constant 0 : i32
    %c0_i32_0 = arith.constant 0 : i32
    %c0_i32_1 = arith.constant 0 : i32
    %c0_i32_2 = arith.constant 0 : i32
    return %c0_i32, %c0_i32_0, %c0_i32_1 : i32, i32, i32
  }
  func.func @transform_37(%arg0: i32) -> (i32, i32, i32) {
    %c0_i32 = arith.constant 0 : i32
    %c0_i32_0 = arith.constant 0 : i32
    %c0_i32_1 = arith.constant 0 : i32
    %c0_i32_2 = arith.constant 0 : i32
    return %c0_i32, %c0_i32_0, %c0_i32_1 : i32, i32, i32
  }
  func.func @transform_38(%arg0: i32) -> (i32, i32, i32) {
    %c0_i32 = arith.constant 0 : i32
    %c0_i32_0 = arith.constant 0 : i32
    %c0_i32_1 = arith.constant 0 : i32
    %c0_i32_2 = arith.constant 0 : i32
    return %c0_i32, %c0_i32_0, %c0_i32_1 : i32, i32, i32
  }
  func.func @transform_39(%arg0: i32) -> (i32, i32, i32) {
    %c0_i32 = arith.constant 0 : i32
    %c0_i32_0 = arith.constant 0 : i32
    %c0_i32_1 = arith.constant 0 : i32
    %c0_i32_2 = arith.constant 0 : i32
    return %c0_i32, %c0_i32_0, %c0_i32_1 : i32, i32, i32
  }
  func.func @transform_40(%arg0: i32) -> (i32, i32, i32) {
    %c0_i32 = arith.constant 0 : i32
    %c0_i32_0 = arith.constant 0 : i32
    %c0_i32_1 = arith.constant 0 : i32
    %c0_i32_2 = arith.constant 0 : i32
    return %c0_i32, %c0_i32_0, %c0_i32_1 : i32, i32, i32
  }
  func.func @transform_41(%arg0: i32) -> (i32, i32, i32) {
    %c0_i32 = arith.constant 0 : i32
    %c0_i32_0 = arith.constant 0 : i32
    %c0_i32_1 = arith.constant 0 : i32
    %c0_i32_2 = arith.constant 0 : i32
    return %c0_i32, %c0_i32_0, %c0_i32_1 : i32, i32, i32
  }
  func.func @transform_42(%arg0: i32) -> (i32, i32, i32) {
    %c0_i32 = arith.constant 0 : i32
    %c0_i32_0 = arith.constant 0 : i32
    %c0_i32_1 = arith.constant 0 : i32
    %c0_i32_2 = arith.constant 0 : i32
    return %c0_i32, %c0_i32_0, %c0_i32_1 : i32, i32, i32
  }
  func.func @transform_43(%arg0: i32) -> (i32, i32, i32) {
    %c0_i32 = arith.constant 0 : i32
    %c0_i32_0 = arith.constant 0 : i32
    %c0_i32_1 = arith.constant 0 : i32
    %c0_i32_2 = arith.constant 0 : i32
    return %c0_i32, %c0_i32_0, %c0_i32_1 : i32, i32, i32
  }
  func.func @transform_44(%arg0: i32) -> (i32, i32, i32) {
    %c0_i32 = arith.constant 0 : i32
    %c0_i32_0 = arith.constant 0 : i32
    %c0_i32_1 = arith.constant 0 : i32
    %c0_i32_2 = arith.constant 0 : i32
    return %c0_i32, %c0_i32_0, %c0_i32_1 : i32, i32, i32
  }
  func.func @transform_45(%arg0: i32) -> (i32, i32, i32) {
    %c0_i32 = arith.constant 0 : i32
    %c0_i32_0 = arith.constant 0 : i32
    %c0_i32_1 = arith.constant 0 : i32
    %c0_i32_2 = arith.constant 0 : i32
    return %c0_i32, %c0_i32_0, %c0_i32_1 : i32, i32, i32
  }
  func.func @transform_46(%arg0: i32) -> (i32, i32, i32) {
    %c0_i32 = arith.constant 0 : i32
    %c0_i32_0 = arith.constant 0 : i32
    %c0_i32_1 = arith.constant 0 : i32
    %c0_i32_2 = arith.constant 0 : i32
    return %c0_i32, %c0_i32_0, %c0_i32_1 : i32, i32, i32
  }
  func.func @transform_47(%arg0: i32) -> (i32, i32, i32) {
    %c0_i32 = arith.constant 0 : i32
    %c0_i32_0 = arith.constant 0 : i32
    %c0_i32_1 = arith.constant 0 : i32
    %c0_i32_2 = arith.constant 0 : i32
    return %c0_i32, %c0_i32_0, %c0_i32_1 : i32, i32, i32
  }
  func.func @transform_48(%arg0: i32) -> (i32, i32, i32) {
    %c0_i32 = arith.constant 0 : i32
    %c0_i32_0 = arith.constant 0 : i32
    %c0_i32_1 = arith.constant 0 : i32
    %c0_i32_2 = arith.constant 0 : i32
    return %c0_i32, %c0_i32_0, %c0_i32_1 : i32, i32, i32
  }
  func.func @transform_49(%arg0: i32) -> (i32, i32, i32) {
    %c0_i32 = arith.constant 0 : i32
    %c0_i32_0 = arith.constant 0 : i32
    %c0_i32_1 = arith.constant 0 : i32
    %c0_i32_2 = arith.constant 0 : i32
    return %c0_i32, %c0_i32_0, %c0_i32_1 : i32, i32, i32
  }
  func.func @transform_50(%arg0: i32) -> (i32, i32, i32) {
    %c0_i32 = arith.constant 0 : i32
    %c0_i32_0 = arith.constant 0 : i32
    %c0_i32_1 = arith.constant 0 : i32
    %c0_i32_2 = arith.constant 0 : i32
    return %c0_i32, %c0_i32_0, %c0_i32_1 : i32, i32, i32
  }
  func.func @transform_51(%arg0: i32) -> (i32, i32) {
    %c0_i32 = arith.constant 0 : i32
    %c0_i32_0 = arith.constant 0 : i32
    %c0_i32_1 = arith.constant 0 : i32
    return %c0_i32, %c0_i32_0 : i32, i32
  }
  func.func @transform_52(%arg0: i32) -> (i32, i32) {
    %c0_i32 = arith.constant 0 : i32
    %c0_i32_0 = arith.constant 0 : i32
    %c0_i32_1 = arith.constant 0 : i32
    return %c0_i32, %c0_i32_0 : i32, i32
  }
  func.func @transform_53(%arg0: i32) -> (i32, i32) {
    %c0_i32 = arith.constant 0 : i32
    %c0_i32_0 = arith.constant 0 : i32
    %c0_i32_1 = arith.constant 0 : i32
    return %c0_i32, %c0_i32_0 : i32, i32
  }
  func.func @transform_54(%arg0: i32) -> (i32, i32) {
    %c0_i32 = arith.constant 0 : i32
    %c0_i32_0 = arith.constant 0 : i32
    %c0_i32_1 = arith.constant 0 : i32
    return %c0_i32, %c0_i32_0 : i32, i32
  }
  func.func @transform_55(%arg0: i32) -> (i32, i32) {
    %c0_i32 = arith.constant 0 : i32
    %c0_i32_0 = arith.constant 0 : i32
    %c0_i32_1 = arith.constant 0 : i32
    return %c0_i32, %c0_i32_0 : i32, i32
  }
  func.func @transform_56(%arg0: i32) -> (i32, i32, i32) {
    %c0_i32 = arith.constant 0 : i32
    %c0_i32_0 = arith.constant 0 : i32
    %c0_i32_1 = arith.constant 0 : i32
    return %arg0, %c0_i32, %c0_i32_0 : i32, i32, i32
  }
}

</mosaic_0001>

<llo_original>
// kernel: irms_forward.1
$region0: #{irms_forward.1}
  #allocation0 [shape = 'u32[]', space=smem, size = 0x4, offset = 0x4, fixed_abs, tag = 'smem constant byte address 0x4 - core index']
  #allocation1 [shape = 'u32[72,128]{1,0:T(1,128)}', space=vmem, size = 0x9000, scoped, tag = 'internal scratch']
  %s0 = inlined_call_operand.smem [shape: u32[57], index: -1, kind: input, shape index: {}]
  %s1 = sld [smem:[%s0]]
  %s2 = scalar_lea.smem %s0, 1
  %s3 = sld [smem:[%s2]]
  %s4 = scalar_lea.smem %s0, 2
  %s5 = sld [smem:[%s4]]
  %s6 = scalar_lea.smem %s0, 3
  %s7 = sld [smem:[%s6]]
  %s8 = scalar_lea.smem %s0, 4
  %s9 = sld [smem:[%s8]]
  %s10 = scalar_lea.smem %s0, 5
  %s11 = sld [smem:[%s10]]
  %s12 = scalar_lea.smem %s0, 6
  %s13 = sld [smem:[%s12]]
  %s14 = scalar_lea.smem %s0, 7
  %s15 = sld [smem:[%s14]]
  %s16 = scalar_lea.smem %s0, 8
  %s17 = sld [smem:[%s16]]
  %s18 = scalar_lea.smem %s0, 9
  %s19 = sld [smem:[%s18]]
  %s20 = scalar_lea.smem %s0, 10
  %s21 = sld [smem:[%s20]]
  %s22 = scalar_lea.smem %s0, 11
  %s23 = sld [smem:[%s22]]
  %s24 = scalar_lea.smem %s0, 12
  %s25 = sld [smem:[%s24]]
  %s26 = scalar_lea.smem %s0, 13
  %s27 = sld [smem:[%s26]]
  %s28 = scalar_lea.smem %s0, 14
  %s29 = sld [smem:[%s28]]
  %s30 = scalar_lea.smem %s0, 15
  %s31 = sld [smem:[%s30]]
  %s32 = scalar_lea.smem %s0, 16
  %s33 = sld [smem:[%s32]]
  %s34 = scalar_lea.smem %s0, 17
  %s35 = sld [smem:[%s34]]
  %s36 = scalar_lea.smem %s0, 18
  %s37 = sld [smem:[%s36]]
  %s38 = scalar_lea.smem %s0, 19
  %s39 = sld [smem:[%s38]]
  %s40 = scalar_lea.smem %s0, 20
  %s41 = sld [smem:[%s40]]
  %s42 = scalar_lea.smem %s0, 21
  %s43 = sld [smem:[%s42]]
  %s44 = scalar_lea.smem %s0, 22
  %s45 = sld [smem:[%s44]]
  %s46 = scalar_lea.smem %s0, 23
  %s47 = sld [smem:[%s46]]
  %s48 = scalar_lea.smem %s0, 24
  %s49 = sld [smem:[%s48]]
  %s50 = scalar_lea.smem %s0, 25
  %s51 = sld [smem:[%s50]]
  %s52 = scalar_lea.smem %s0, 26
  %s53 = sld [smem:[%s52]]
  %s54 = scalar_lea.smem %s0, 27
  %s55 = sld [smem:[%s54]]
  %s56 = scalar_lea.smem %s0, 28
  %s57 = sld [smem:[%s56]]
  %s58 = scalar_lea.smem %s0, 29
  %s59 = sld [smem:[%s58]]
  %s60 = scalar_lea.smem %s0, 30
  %s61 = sld [smem:[%s60]]
  %s62 = scalar_lea.smem %s0, 31
  %s63 = sld [smem:[%s62]]
  %s64 = scalar_lea.smem %s0, 32
  %s65 = sld [smem:[%s64]]
  %s66 = scalar_lea.smem %s0, 33
  %s67 = sld [smem:[%s66]]
  %s68 = scalar_lea.smem %s0, 34
  %s69 = sld [smem:[%s68]]
  %s70 = scalar_lea.smem %s0, 35
  %s71 = sld [smem:[%s70]]
  %s72 = scalar_lea.smem %s0, 36
  %s73 = sld [smem:[%s72]]
  %s74 = scalar_lea.smem %s0, 37
  %s75 = sld [smem:[%s74]]
  %s76 = scalar_lea.smem %s0, 38
  %s77 = sld [smem:[%s76]]
  %s78 = scalar_lea.smem %s0, 39
  %s79 = sld [smem:[%s78]]
  %s80 = scalar_lea.smem %s0, 40
  %s81 = sld [smem:[%s80]]
  %s82 = scalar_lea.smem %s0, 41
  %s83 = sld [smem:[%s82]]
  %s84 = scalar_lea.smem %s0, 42
  %s85 = sld [smem:[%s84]]
  %s86 = scalar_lea.smem %s0, 43
  %s87 = sld [smem:[%s86]]
  %s88 = scalar_lea.smem %s0, 44
  %s89 = sld [smem:[%s88]]
  %s90 = scalar_lea.smem %s0, 45
  %s91 = sld [smem:[%s90]]
  %s92 = scalar_lea.smem %s0, 46
  %s93 = sld [smem:[%s92]]
  %s94 = scalar_lea.smem %s0, 47
  %s95 = sld [smem:[%s94]]
  %s96 = scalar_lea.smem %s0, 48
  %s97 = sld [smem:[%s96]]
  %s98 = scalar_lea.smem %s0, 49
  %s99 = sld [smem:[%s98]]
  %s100 = scalar_lea.smem %s0, 50
  %s101 = sld [smem:[%s100]]
  %s102 = scalar_lea.smem %s0, 51
  %s103 = sld [smem:[%s102]]
  %s104 = scalar_lea.smem %s0, 52
  %s105 = sld [smem:[%s104]]
  %s106 = scalar_lea.smem %s0, 53
  %s107 = sld [smem:[%s106]]
  %s108 = scalar_lea.smem %s0, 54
  %s109 = sld [smem:[%s108]]
  %s110 = scalar_lea.smem %s0, 55
  %s111 = sld [smem:[%s110]]
  %s112 = scalar_lea.smem %s0, 56
  %s113 = sld [smem:[%s112]]
  %s114 = sld [smem:[#allocation0]]
  $region309: #{irms_forward.1} parent=0
    _
  %s116 = ssub.s32 1, %s114
  %s117 = scalar_select 0, %s116, %s114
  $region1: #{irms_forward.1} parent=0
    #allocation2 [shape = 'u8[512]{0}', space=vmem, size = 0x400, scoped, tag = 'input window, operand 36, single buffered']
    #allocation3 [shape = 's32[2]{0}', space=sflag, size = 0x8, scoped, tag = 'scoped memory for irms_forward.1']
    #allocation4 [shape = 's32[2]{0}', space=sflag, size = 0x8, scoped, tag = 'scoped memory for irms_forward.1']
    #allocation5 [shape = 'u8[512]{0}', space=vmem, size = 0x400, scoped, tag = 'input window, operand 37, single buffered']
    #allocation6 [shape = 's32[1]{0}', space=sflag, size = 0x4, scoped, tag = 'scoped memory for irms_forward.1']
    #allocation7 [shape = 'u8[512]{0}', space=vmem, size = 0x400, scoped, tag = 'input window, operand 39, single buffered']
    #allocation8 [shape = 'u8[512]{0}', space=vmem, size = 0x400, scoped, tag = 'input window, operand 41, single buffered']
    #allocation9 [shape = 's32[1]{0}', space=sflag, size = 0x4, scoped, tag = 'scoped memory for irms_forward.1']
    #allocation10 [shape = 'u8[512]{0}', space=vmem, size = 0x400, scoped, tag = 'input window, operand 42, single buffered']
    #allocation11 [shape = 'u8[512]{0}', space=vmem, size = 0x400, scoped, tag = 'input window, operand 43, single buffered']
    #allocation12 [shape = 's32[1]{0}', space=sflag, size = 0x4, scoped, tag = 'scoped memory for irms_forward.1']
    #allocation13 [shape = 'u8[512]{0}', space=vmem, size = 0x400, scoped, tag = 'input window, operand 45, single buffered']
    #allocation14 [shape = 'u8[512]{0}', space=vmem, size = 0x400, scoped, tag = 'input window, operand 47, single buffered']
    #allocation15 [shape = 's32[1]{0}', space=sflag, size = 0x4, scoped, tag = 'scoped memory for irms_forward.1']
    #allocation16 [shape = 'u8[512]{0}', space=vmem, size = 0x400, scoped, tag = 'input window, operand 48, single buffered']
    #allocation17 [shape = 'u8[512]{0}', space=vmem, size = 0x400, scoped, tag = 'input window, operand 49, single buffered']
    #allocation18 [shape = 's32[1]{0}', space=sflag, size = 0x4, scoped, tag = 'scoped memory for irms_forward.1']
    #allocation19 [shape = 'u8[262144]{0}', space=vmem, size = 0x40000, scoped, tag = 'input window, operand 50, single buffered']
    #allocation20 [shape = 'u8[262144]{0}', space=vmem, size = 0x40000, scoped, tag = 'input window, operand 52, single buffered']
    #allocation21 [shape = 's32[1]{0}', space=sflag, size = 0x4, scoped, tag = 'scoped memory for irms_forward.1']
    #allocation22 [shape = 'u8[512]{0}', space=vmem, size = 0x400, scoped, tag = 'input window, operand 55, single buffered']
    #allocation23 [shape = 'u8[1024]{0}', space=vmem, size = 0x400, scoped, tag = 'output window, operand 0']
    %118 = vsyncpa [#allocation3], 0
    %119 = vsyncpa [#allocation6], 0
    %120 = vsyncpa [#allocation9], 0
    %121 = vsyncpa [#allocation12], 0
    %122 = vsyncpa [#allocation15], 0
    %123 = vsyncpa [#allocation18], 0
    %124 = vsyncpa [#allocation21], 0
    %125 = vsyncpa [#allocation4], 0
    %s126 = scalar_lea.sflag [#allocation4], 1
    %127 = vsyncpa %s126, 0
    loop: start=0, step=1, limit=4
    $region2: #{irms_forward.1} parent=1 // loop_pre_header
      _
    $region3: #{irms_forward.1} parent=1 // loop_header
      %s129 = sphi 0, %s133
      %p130 = scmp.ge.s32.totalorder %s129, 4
      %s139 = sphi 0, %s141
      %s142 = sphi 0, %s139
      %s143 = sphi 0, %s142
      %s159 = sphi 0, %s143
      %s165 = sphi 0, %s167
      %s168 = sphi 0, %s165
      %s169 = sphi 0, %s168
      %s185 = sphi 0, %s169
      %s189 = sphi 0, %s189
      %s191 = sphi 0, %s189
      %s192 = sphi 0, %s191
      %s206 = sphi 0, %s192
      %s210 = sphi 0, %s210
      %s212 = sphi 0, %s210
      %s213 = sphi 0, %s212
      %s227 = sphi 0, %s213
      %s231 = sphi 0, %s231
      %s233 = sphi 0, %s231
      %s234 = sphi 0, %s233
      %s248 = sphi 0, %s234
      %s252 = sphi 0, %s252
      %s254 = sphi 0, %s252
      %s255 = sphi 0, %s254
      %s269 = sphi 0, %s255
      %s273 = sphi 0, %s273
      %s275 = sphi 0, %s273
      %s276 = sphi 0, %s275
      %s290 = sphi 0, %s276
      %s294 = sphi 0, %s294
      %s296 = sphi 0, %s294
      %s297 = sphi 0, %s296
      %s311 = sphi 0, %s297
      %s315 = sphi 0, %s315
      %s317 = sphi 0, %s315
      %s318 = sphi 0, %s317
      %s332 = sphi 0, %s318
      %s336 = sphi 0, %s336
      %s338 = sphi 0, %s336
      %s339 = sphi 0, %s338
      %s353 = sphi 0, %s339
      %s357 = sphi 0, %s357
      %s359 = sphi 0, %s357
      %s360 = sphi 0, %s359
      %s374 = sphi 0, %s360
      %s378 = sphi 0, %s378
      %s380 = sphi 0, %s378
      %s381 = sphi 0, %s380
      %s395 = sphi 0, %s381
      %s399 = sphi 0, %s399
      %s401 = sphi 0, %s399
      %s402 = sphi 0, %s401
      %s416 = sphi 0, %s402
      %s420 = sphi 0, %s420
      %s422 = sphi 0, %s420
      %s423 = sphi 0, %s422
      %s437 = sphi 0, %s423
      %s441 = sphi 0, %s441
      %s443 = sphi 0, %s441
      %s444 = sphi 0, %s443
      %s458 = sphi 0, %s444
      %s462 = sphi 0, %s462
      %s464 = sphi 0, %s462
      %s465 = sphi 0, %s464
      %s479 = sphi 0, %s465
      %s483 = sphi 0, %s483
      %s485 = sphi 0, %s483
      %s486 = sphi 0, %s485
      %s500 = sphi 0, %s486
      %s504 = sphi 0, %s504
      %s506 = sphi 0, %s504
      %s507 = sphi 0, %s506
      %s521 = sphi 0, %s507
      %s525 = sphi 0, %s525
      %s527 = sphi 0, %s525
      %s528 = sphi 0, %s527
      %s542 = sphi 0, %s528
      %s546 = sphi 0, %s546
      %s548 = sphi 0, %s546
      %s549 = sphi 0, %s548
      %s563 = sphi 0, %s549
      %s567 = sphi 0, %s567
      %s569 = sphi 0, %s567
      %s570 = sphi 0, %s569
      %s584 = sphi 0, %s570
      %s588 = sphi 0, %s588
      %s590 = sphi 0, %s588
      %s591 = sphi 0, %s590
      %s605 = sphi 0, %s591
      %s609 = sphi 0, %s609
      %s611 = sphi 0, %s609
      %s612 = sphi 0, %s611
      %s626 = sphi 0, %s612
      %s630 = sphi 0, %s630
      %s632 = sphi 0, %s630
      %s633 = sphi 0, %s632
      %s647 = sphi 0, %s633
      %s651 = sphi 0, %s651
      %s653 = sphi 0, %s651
      %s654 = sphi 0, %s653
      %s668 = sphi 0, %s654
      %s672 = sphi 0, %s672
      %s674 = sphi 0, %s672
      %s675 = sphi 0, %s674
      %s689 = sphi 0, %s675
      %s693 = sphi 0, %s693
      %s695 = sphi 0, %s693
      %s696 = sphi 0, %s695
      %s710 = sphi 0, %s696
      %s714 = sphi 0, %s714
      %s716 = sphi 0, %s714
      %s717 = sphi 0, %s716
      %s731 = sphi 0, %s717
      %s735 = sphi 0, %s735
      %s737 = sphi 0, %s735
      %s738 = sphi 0, %s737
      %s752 = sphi 0, %s738
      %s756 = sphi 0, %s756
      %s758 = sphi 0, %s756
      %s759 = sphi 0, %s758
      %s773 = sphi 0, %s759
      %s777 = sphi 0, %s777
      %s779 = sphi 0, %s777
      %s780 = sphi 0, %s779
      %s794 = sphi 0, %s780
      %s798 = sphi 0, %s798
      %s800 = sphi 0, %s798
      %s801 = sphi 0, %s800
      %s815 = sphi 0, %s801
      %s819 = sphi 0, %s819
      %s821 = sphi 0, %s819
      %s822 = sphi 0, %s821
      %s836 = sphi 0, %s822
      %s840 = sphi 0, %s840
      %s842 = sphi 0, %s840
      %s843 = sphi 0, %s842
      %s857 = sphi 0, %s843
      %s861 = sphi 0, %s861
      %s863 = sphi 0, %s861
      %s864 = sphi 0, %s863
      %s878 = sphi 0, %s864
      %s882 = sphi 0, %s882
      %s884 = sphi 0, %s882
      %s885 = sphi 0, %s884
      %s899 = sphi 0, %s885
      %s903 = sphi 0, %s903
      %s905 = sphi 0, %s903
      %s906 = sphi 0, %s905
      %s920 = sphi 0, %s906
      %s924 = sphi 0, %s924
      %s926 = sphi 0, %s924
      %s927 = sphi 0, %s926
      %s941 = sphi 0, %s927
      %s945 = sphi 0, %s945
      %s947 = sphi 0, %s945
      %s948 = sphi 0, %s947
      %s962 = sphi 0, %s948
      %s966 = sphi 0, %s966
      %s968 = sphi 0, %s966
      %s969 = sphi 0, %s968
      %s983 = sphi 0, %s969
      %s987 = sphi 0, %s987
      %s989 = sphi 0, %s987
      %s990 = sphi 0, %s989
      %s1004 = sphi 0, %s990
      %s1008 = sphi 0, %s1008
      %s1010 = sphi 0, %s1008
      %s1011 = sphi 0, %s1010
      %s1025 = sphi 0, %s1011
      %s1029 = sphi 0, %s1029
      %s1031 = sphi 0, %s1029
      %s1032 = sphi 0, %s1031
      %s1046 = sphi 0, %s1032
      %s1050 = sphi 0, %s1050
      %s1052 = sphi 0, %s1050
      %s1053 = sphi 0, %s1052
      %s1067 = sphi 0, %s1053
      %s1071 = sphi 0, %s1071
      %s1073 = sphi 0, %s1071
      %s1074 = sphi 0, %s1073
      %s1088 = sphi 0, %s1074
      %s1092 = sphi 0, %s1092
      %s1094 = sphi 0, %s1092
      %s1095 = sphi 0, %s1094
      %s1109 = sphi 0, %s1095
      %s1113 = sphi 0, %s1113
      %s1115 = sphi 0, %s1113
      %s1116 = sphi 0, %s1115
      %s1130 = sphi 0, %s1116
      %s1134 = sphi 0, %s1134
      %s1136 = sphi 0, %s1134
      %s1137 = sphi 0, %s1136
      %s1151 = sphi 0, %s1137
      %s1155 = sphi 0, %s1155
      %s1157 = sphi 0, %s1155
      %s1158 = sphi 0, %s1157
      %s1172 = sphi 0, %s1158
      %s1176 = sphi 0, %s1176
      %s1178 = sphi 0, %s1176
      %s1179 = sphi 0, %s1178
      %s1193 = sphi 0, %s1179
      %s1197 = sphi 0, %s1197
      %s1199 = sphi 0, %s1197
      %s1200 = sphi 0, %s1199
      %s1214 = sphi 0, %s1200
      %s1218 = sphi 0, %s1218
      %s1220 = sphi 0, %s1218
      %s1221 = sphi 0, %s1220
      %s1235 = sphi 0, %s1221
      %s1239 = sphi 0, %s1239
      %s1241 = sphi 0, %s1239
      %s1242 = sphi 0, %s1241
      %s1256 = sphi 0, %s1242
      %s1260 = sphi 0, %s1260
      %s1262 = sphi 0, %s1260
      %s1263 = sphi 0, %s1262
      %s1277 = sphi 0, %s1263
      %s1281 = sphi 0, %s1281
      %s1283 = sphi 0, %s1281
      %s1284 = sphi 0, %s1283
      %s1298 = sphi 0, %s1284
      %s1302 = sphi 0, %s1302
      %s1304 = sphi 0, %s1302
      %s1305 = sphi 0, %s1304
      %s1319 = sphi 0, %s1305
      %s1325 = sphi 0, %s1327
      %s1328 = sphi 0, %s1325
      %s1329 = sphi 0, %s1328
      %s1345 = sphi 0, %s1329
    $region4: #{irms_forward.1} parent=1 // loop_header_branch
      %132 = sbr.rel (%p130) target = $region8
    $region5: #{irms_forward.1} parent=1 // loop_body
      %s134 = ssub.s32 %s129, 1
      %s135 = ssub.s32 %s129, 2
      %s136 = sadd.s32 %s129, 1
      %s137 = ssub.s32 %s129, %s136
      %p138 = scmp.eq.s32.totalorder %s137, 0
      %s140 = sadd.s32 %s139, 1
      %s141 = scalar_select %p138, %s139, %s140
      %p144 = pneg %p138
      %p145 = scmp.eq.s32.totalorder %s129, 1
      %p146 = por %p144, %p145
      %p147 = scmp.ne.s32.totalorder %s139, %s142
      %p148 = scmp.eq.s32.totalorder %s129, 0
      %p149 = por %p147, %p148
      %p150 = scmp.ne.s32.totalorder %s139, %s142
      %p151 = scmp.eq.s32.totalorder %s134, 1
      %p152 = por %p150, %p151
      %p153 = scmp.ne.s32.totalorder %s142, %s143
      %p154 = scmp.eq.s32.totalorder %s134, 0
      %p155 = por %p153, %p154
      %p156 = scmp.ne.s32.totalorder %s142, %s143
      %p157 = scmp.eq.s32.totalorder %s135, 1
      %p158 = por %p156, %p157
      %p160 = scmp.ne.s32.totalorder %s143, %s159
      %p161 = scmp.eq.s32.totalorder %s135, 0
      %p162 = por %p160, %p161
      %s163 = ssub.s32 %s129, %s136
      %p164 = scmp.eq.s32.totalorder %s163, 0
      %s166 = sadd.s32 %s165, 1
      %s167 = scalar_select %p164, %s165, %s166
      %p170 = pneg %p164
      %p171 = scmp.eq.s32.totalorder %s129, 1
      %p172 = por %p170, %p171
      %p173 = scmp.ne.s32.totalorder %s165, %s168
      %p174 = scmp.eq.s32.totalorder %s129, 0
      %p175 = por %p173, %p174
      %p176 = scmp.ne.s32.totalorder %s165, %s168
      %p177 = scmp.eq.s32.totalorder %s134, 1
      %p178 = por %p176, %p177
      %p179 = scmp.ne.s32.totalorder %s168, %s169
      %p180 = scmp.eq.s32.totalorder %s134, 0
      %p181 = por %p179, %p180
      %p182 = scmp.ne.s32.totalorder %s168, %s169
      %p183 = scmp.eq.s32.totalorder %s135, 1
      %p184 = por %p182, %p183
      %p186 = scmp.ne.s32.totalorder %s169, %s185
      %p187 = scmp.eq.s32.totalorder %s135, 0
      %p188 = por %p186, %p187
      %s190 = sadd.s32 %s189, 1
      %p193 = scmp.eq.s32.totalorder %s129, 1
      %p194 = scmp.ne.s32.totalorder %s189, %s191
      %p195 = scmp.eq.s32.totalorder %s129, 0
      %p196 = por %p194, %p195
      %p197 = scmp.ne.s32.totalorder %s189, %s191
      %p198 = scmp.eq.s32.totalorder %s134, 1
      %p199 = por %p197, %p198
      %p200 = scmp.ne.s32.totalorder %s191, %s192
      %p201 = scmp.eq.s32.totalorder %s134, 0
      %p202 = por %p200, %p201
      %p203 = scmp.ne.s32.totalorder %s191, %s192
      %p204 = scmp.eq.s32.totalorder %s135, 1
      %p205 = por %p203, %p204
      %p207 = scmp.ne.s32.totalorder %s192, %s206
      %p208 = scmp.eq.s32.totalorder %s135, 0
      %p209 = por %p207, %p208
      %s211 = sadd.s32 %s210, 1
      %p214 = scmp.eq.s32.totalorder %s129, 1
      %p215 = scmp.ne.s32.totalorder %s210, %s212
      %p216 = scmp.eq.s32.totalorder %s129, 0
      %p217 = por %p215, %p216
      %p218 = scmp.ne.s32.totalorder %s210, %s212
      %p219 = scmp.eq.s32.totalorder %s134, 1
      %p220 = por %p218, %p219
      %p221 = scmp.ne.s32.totalorder %s212, %s213
      %p222 = scmp.eq.s32.totalorder %s134, 0
      %p223 = por %p221, %p222
      %p224 = scmp.ne.s32.totalorder %s212, %s213
      %p225 = scmp.eq.s32.totalorder %s135, 1
      %p226 = por %p224, %p225
      %p228 = scmp.ne.s32.totalorder %s213, %s227
      %p229 = scmp.eq.s32.totalorder %s135, 0
      %p230 = por %p228, %p229
      %s232 = sadd.s32 %s231, 1
      %p235 = scmp.eq.s32.totalorder %s129, 1
      %p236 = scmp.ne.s32.totalorder %s231, %s233
      %p237 = scmp.eq.s32.totalorder %s129, 0
      %p238 = por %p236, %p237
      %p239 = scmp.ne.s32.totalorder %s231, %s233
      %p240 = scmp.eq.s32.totalorder %s134, 1
      %p241 = por %p239, %p240
      %p242 = scmp.ne.s32.totalorder %s233, %s234
      %p243 = scmp.eq.s32.totalorder %s134, 0
      %p244 = por %p242, %p243
      %p245 = scmp.ne.s32.totalorder %s233, %s234
      %p246 = scmp.eq.s32.totalorder %s135, 1
      %p247 = por %p245, %p246
      %p249 = scmp.ne.s32.totalorder %s234, %s248
      %p250 = scmp.eq.s32.totalorder %s135, 0
      %p251 = por %p249, %p250
      %s253 = sadd.s32 %s252, 1
      %p256 = scmp.eq.s32.totalorder %s129, 1
      %p257 = scmp.ne.s32.totalorder %s252, %s254
      %p258 = scmp.eq.s32.totalorder %s129, 0
      %p259 = por %p257, %p258
      %p260 = scmp.ne.s32.totalorder %s252, %s254
      %p261 = scmp.eq.s32.totalorder %s134, 1
      %p262 = por %p260, %p261
      %p263 = scmp.ne.s32.totalorder %s254, %s255
      %p264 = scmp.eq.s32.totalorder %s134, 0
      %p265 = por %p263, %p264
      %p266 = scmp.ne.s32.totalorder %s254, %s255
      %p267 = scmp.eq.s32.totalorder %s135, 1
      %p268 = por %p266, %p267
      %p270 = scmp.ne.s32.totalorder %s255, %s269
      %p271 = scmp.eq.s32.totalorder %s135, 0
      %p272 = por %p270, %p271
      %s274 = sadd.s32 %s273, 1
      %p277 = scmp.eq.s32.totalorder %s129, 1
      %p278 = scmp.ne.s32.totalorder %s273, %s275
      %p279 = scmp.eq.s32.totalorder %s129, 0
      %p280 = por %p278, %p279
      %p281 = scmp.ne.s32.totalorder %s273, %s275
      %p282 = scmp.eq.s32.totalorder %s134, 1
      %p283 = por %p281, %p282
      %p284 = scmp.ne.s32.totalorder %s275, %s276
      %p285 = scmp.eq.s32.totalorder %s134, 0
      %p286 = por %p284, %p285
      %p287 = scmp.ne.s32.totalorder %s275, %s276
      %p288 = scmp.eq.s32.totalorder %s135, 1
      %p289 = por %p287, %p288
      %p291 = scmp.ne.s32.totalorder %s276, %s290
      %p292 = scmp.eq.s32.totalorder %s135, 0
      %p293 = por %p291, %p292
      %s295 = sadd.s32 %s294, 1
      %p298 = scmp.eq.s32.totalorder %s129, 1
      %p299 = scmp.ne.s32.totalorder %s294, %s296
      %p300 = scmp.eq.s32.totalorder %s129, 0
      %p301 = por %p299, %p300
      %p302 = scmp.ne.s32.totalorder %s294, %s296
      %p303 = scmp.eq.s32.totalorder %s134, 1
      %p304 = por %p302, %p303
      %p305 = scmp.ne.s32.totalorder %s296, %s297
      %p306 = scmp.eq.s32.totalorder %s134, 0
      %p307 = por %p305, %p306
      %p308 = scmp.ne.s32.totalorder %s296, %s297
      %p309 = scmp.eq.s32.totalorder %s135, 1
      %p310 = por %p308, %p309
      %p312 = scmp.ne.s32.totalorder %s297, %s311
      %p313 = scmp.eq.s32.totalorder %s135, 0
      %p314 = por %p312, %p313
      %s316 = sadd.s32 %s315, 1
      %p319 = scmp.eq.s32.totalorder %s129, 1
      %p320 = scmp.ne.s32.totalorder %s315, %s317
      %p321 = scmp.eq.s32.totalorder %s129, 0
      %p322 = por %p320, %p321
      %p323 = scmp.ne.s32.totalorder %s315, %s317
      %p324 = scmp.eq.s32.totalorder %s134, 1
      %p325 = por %p323, %p324
      %p326 = scmp.ne.s32.totalorder %s317, %s318
      %p327 = scmp.eq.s32.totalorder %s134, 0
      %p328 = por %p326, %p327
      %p329 = scmp.ne.s32.totalorder %s317, %s318
      %p330 = scmp.eq.s32.totalorder %s135, 1
      %p331 = por %p329, %p330
      %p333 = scmp.ne.s32.totalorder %s318, %s332
      %p334 = scmp.eq.s32.totalorder %s135, 0
      %p335 = por %p333, %p334
      %s337 = sadd.s32 %s336, 1
      %p340 = scmp.eq.s32.totalorder %s129, 1
      %p341 = scmp.ne.s32.totalorder %s336, %s338
      %p342 = scmp.eq.s32.totalorder %s129, 0
      %p343 = por %p341, %p342
      %p344 = scmp.ne.s32.totalorder %s336, %s338
      %p345 = scmp.eq.s32.totalorder %s134, 1
      %p346 = por %p344, %p345
      %p347 = scmp.ne.s32.totalorder %s338, %s339
      %p348 = scmp.eq.s32.totalorder %s134, 0
      %p349 = por %p347, %p348
      %p350 = scmp.ne.s32.totalorder %s338, %s339
      %p351 = scmp.eq.s32.totalorder %s135, 1
      %p352 = por %p350, %p351
      %p354 = scmp.ne.s32.totalorder %s339, %s353
      %p355 = scmp.eq.s32.totalorder %s135, 0
      %p356 = por %p354, %p355
      %s358 = sadd.s32 %s357, 1
      %p361 = scmp.eq.s32.totalorder %s129, 1
      %p362 = scmp.ne.s32.totalorder %s357, %s359
      %p363 = scmp.eq.s32.totalorder %s129, 0
      %p364 = por %p362, %p363
      %p365 = scmp.ne.s32.totalorder %s357, %s359
      %p366 = scmp.eq.s32.totalorder %s134, 1
      %p367 = por %p365, %p366
      %p368 = scmp.ne.s32.totalorder %s359, %s360
      %p369 = scmp.eq.s32.totalorder %s134, 0
      %p370 = por %p368, %p369
      %p371 = scmp.ne.s32.totalorder %s359, %s360
      %p372 = scmp.eq.s32.totalorder %s135, 1
      %p373 = por %p371, %p372
      %p375 = scmp.ne.s32.totalorder %s360, %s374
      %p376 = scmp.eq.s32.totalorder %s135, 0
      %p377 = por %p375, %p376
      %s379 = sadd.s32 %s378, 1
      %p382 = scmp.eq.s32.totalorder %s129, 1
      %p383 = scmp.ne.s32.totalorder %s378, %s380
      %p384 = scmp.eq.s32.totalorder %s129, 0
      %p385 = por %p383, %p384
      %p386 = scmp.ne.s32.totalorder %s378, %s380
      %p387 = scmp.eq.s32.totalorder %s134, 1
      %p388 = por %p386, %p387
      %p389 = scmp.ne.s32.totalorder %s380, %s381
      %p390 = scmp.eq.s32.totalorder %s134, 0
      %p391 = por %p389, %p390
      %p392 = scmp.ne.s32.totalorder %s380, %s381
      %p393 = scmp.eq.s32.totalorder %s135, 1
      %p394 = por %p392, %p393
      %p396 = scmp.ne.s32.totalorder %s381, %s395
      %p397 = scmp.eq.s32.totalorder %s135, 0
      %p398 = por %p396, %p397
      %s400 = sadd.s32 %s399, 1
      %p403 = scmp.eq.s32.totalorder %s129, 1
      %p404 = scmp.ne.s32.totalorder %s399, %s401
      %p405 = scmp.eq.s32.totalorder %s129, 0
      %p406 = por %p404, %p405
      %p407 = scmp.ne.s32.totalorder %s399, %s401
      %p408 = scmp.eq.s32.totalorder %s134, 1
      %p409 = por %p407, %p408
      %p410 = scmp.ne.s32.totalorder %s401, %s402
      %p411 = scmp.eq.s32.totalorder %s134, 0
      %p412 = por %p410, %p411
      %p413 = scmp.ne.s32.totalorder %s401, %s402
      %p414 = scmp.eq.s32.totalorder %s135, 1
      %p415 = por %p413, %p414
      %p417 = scmp.ne.s32.totalorder %s402, %s416
      %p418 = scmp.eq.s32.totalorder %s135, 0
      %p419 = por %p417, %p418
      %s421 = sadd.s32 %s420, 1
      %p424 = scmp.eq.s32.totalorder %s129, 1
      %p425 = scmp.ne.s32.totalorder %s420, %s422
      %p426 = scmp.eq.s32.totalorder %s129, 0
      %p427 = por %p425, %p426
      %p428 = scmp.ne.s32.totalorder %s420, %s422
      %p429 = scmp.eq.s32.totalorder %s134, 1
      %p430 = por %p428, %p429
      %p431 = scmp.ne.s32.totalorder %s422, %s423
      %p432 = scmp.eq.s32.totalorder %s134, 0
      %p433 = por %p431, %p432
      %p434 = scmp.ne.s32.totalorder %s422, %s423
      %p435 = scmp.eq.s32.totalorder %s135, 1
      %p436 = por %p434, %p435
      %p438 = scmp.ne.s32.totalorder %s423, %s437
      %p439 = scmp.eq.s32.totalorder %s135, 0
      %p440 = por %p438, %p439
      %s442 = sadd.s32 %s441, 1
      %p445 = scmp.eq.s32.totalorder %s129, 1
      %p446 = scmp.ne.s32.totalorder %s441, %s443
      %p447 = scmp.eq.s32.totalorder %s129, 0
      %p448 = por %p446, %p447
      %p449 = scmp.ne.s32.totalorder %s441, %s443
      %p450 = scmp.eq.s32.totalorder %s134, 1
      %p451 = por %p449, %p450
      %p452 = scmp.ne.s32.totalorder %s443, %s444
      %p453 = scmp.eq.s32.totalorder %s134, 0
      %p454 = por %p452, %p453
      %p455 = scmp.ne.s32.totalorder %s443, %s444
      %p456 = scmp.eq.s32.totalorder %s135, 1
      %p457 = por %p455, %p456
      %p459 = scmp.ne.s32.totalorder %s444, %s458
      %p460 = scmp.eq.s32.totalorder %s135, 0
      %p461 = por %p459, %p460
      %s463 = sadd.s32 %s462, 1
      %p466 = scmp.eq.s32.totalorder %s129, 1
      %p467 = scmp.ne.s32.totalorder %s462, %s464
      %p468 = scmp.eq.s32.totalorder %s129, 0
      %p469 = por %p467, %p468
      %p470 = scmp.ne.s32.totalorder %s462, %s464
      %p471 = scmp.eq.s32.totalorder %s134, 1
      %p472 = por %p470, %p471
      %p473 = scmp.ne.s32.totalorder %s464, %s465
      %p474 = scmp.eq.s32.totalorder %s134, 0
      %p475 = por %p473, %p474
      %p476 = scmp.ne.s32.totalorder %s464, %s465
      %p477 = scmp.eq.s32.totalorder %s135, 1
      %p478 = por %p476, %p477
      %p480 = scmp.ne.s32.totalorder %s465, %s479
      %p481 = scmp.eq.s32.totalorder %s135, 0
      %p482 = por %p480, %p481
      %s484 = sadd.s32 %s483, 1
      %p487 = scmp.eq.s32.totalorder %s129, 1
      %p488 = scmp.ne.s32.totalorder %s483, %s485
      %p489 = scmp.eq.s32.totalorder %s129, 0
      %p490 = por %p488, %p489
      %p491 = scmp.ne.s32.totalorder %s483, %s485
      %p492 = scmp.eq.s32.totalorder %s134, 1
      %p493 = por %p491, %p492
      %p494 = scmp.ne.s32.totalorder %s485, %s486
      %p495 = scmp.eq.s32.totalorder %s134, 0
      %p496 = por %p494, %p495
      %p497 = scmp.ne.s32.totalorder %s485, %s486
      %p498 = scmp.eq.s32.totalorder %s135, 1
      %p499 = por %p497, %p498
      %p501 = scmp.ne.s32.totalorder %s486, %s500
      %p502 = scmp.eq.s32.totalorder %s135, 0
      %p503 = por %p501, %p502
      %s505 = sadd.s32 %s504, 1
      %p508 = scmp.eq.s32.totalorder %s129, 1
      %p509 = scmp.ne.s32.totalorder %s504, %s506
      %p510 = scmp.eq.s32.totalorder %s129, 0
      %p511 = por %p509, %p510
      %p512 = scmp.ne.s32.totalorder %s504, %s506
      %p513 = scmp.eq.s32.totalorder %s134, 1
      %p514 = por %p512, %p513
      %p515 = scmp.ne.s32.totalorder %s506, %s507
      %p516 = scmp.eq.s32.totalorder %s134, 0
      %p517 = por %p515, %p516
      %p518 = scmp.ne.s32.totalorder %s506, %s507
      %p519 = scmp.eq.s32.totalorder %s135, 1
      %p520 = por %p518, %p519
      %p522 = scmp.ne.s32.totalorder %s507, %s521
      %p523 = scmp.eq.s32.totalorder %s135, 0
      %p524 = por %p522, %p523
      %s526 = sadd.s32 %s525, 1
      %p529 = scmp.eq.s32.totalorder %s129, 1
      %p530 = scmp.ne.s32.totalorder %s525, %s527
      %p531 = scmp.eq.s32.totalorder %s129, 0
      %p532 = por %p530, %p531
      %p533 = scmp.ne.s32.totalorder %s525, %s527
      %p534 = scmp.eq.s32.totalorder %s134, 1
      %p535 = por %p533, %p534
      %p536 = scmp.ne.s32.totalorder %s527, %s528
      %p537 = scmp.eq.s32.totalorder %s134, 0
      %p538 = por %p536, %p537
      %p539 = scmp.ne.s32.totalorder %s527, %s528
      %p540 = scmp.eq.s32.totalorder %s135, 1
      %p541 = por %p539, %p540
      %p543 = scmp.ne.s32.totalorder %s528, %s542
      %p544 = scmp.eq.s32.totalorder %s135, 0
      %p545 = por %p543, %p544
      %s547 = sadd.s32 %s546, 1
      %p550 = scmp.eq.s32.totalorder %s129, 1
      %p551 = scmp.ne.s32.totalorder %s546, %s548
      %p552 = scmp.eq.s32.totalorder %s129, 0
      %p553 = por %p551, %p552
      %p554 = scmp.ne.s32.totalorder %s546, %s548
      %p555 = scmp.eq.s32.totalorder %s134, 1
      %p556 = por %p554, %p555
      %p557 = scmp.ne.s32.totalorder %s548, %s549
      %p558 = scmp.eq.s32.totalorder %s134, 0
      %p559 = por %p557, %p558
      %p560 = scmp.ne.s32.totalorder %s548, %s549
      %p561 = scmp.eq.s32.totalorder %s135, 1
      %p562 = por %p560, %p561
      %p564 = scmp.ne.s32.totalorder %s549, %s563
      %p565 = scmp.eq.s32.totalorder %s135, 0
      %p566 = por %p564, %p565
      %s568 = sadd.s32 %s567, 1
      %p571 = scmp.eq.s32.totalorder %s129, 1
      %p572 = scmp.ne.s32.totalorder %s567, %s569
      %p573 = scmp.eq.s32.totalorder %s129, 0
      %p574 = por %p572, %p573
      %p575 = scmp.ne.s32.totalorder %s567, %s569
      %p576 = scmp.eq.s32.totalorder %s134, 1
      %p577 = por %p575, %p576
      %p578 = scmp.ne.s32.totalorder %s569, %s570
      %p579 = scmp.eq.s32.totalorder %s134, 0
      %p580 = por %p578, %p579
      %p581 = scmp.ne.s32.totalorder %s569, %s570
      %p582 = scmp.eq.s32.totalorder %s135, 1
      %p583 = por %p581, %p582
      %p585 = scmp.ne.s32.totalorder %s570, %s584
      %p586 = scmp.eq.s32.totalorder %s135, 0
      %p587 = por %p585, %p586
      %s589 = sadd.s32 %s588, 1
      %p592 = scmp.eq.s32.totalorder %s129, 1
      %p593 = scmp.ne.s32.totalorder %s588, %s590
      %p594 = scmp.eq.s32.totalorder %s129, 0
      %p595 = por %p593, %p594
      %p596 = scmp.ne.s32.totalorder %s588, %s590
      %p597 = scmp.eq.s32.totalorder %s134, 1
      %p598 = por %p596, %p597
      %p599 = scmp.ne.s32.totalorder %s590, %s591
      %p600 = scmp.eq.s32.totalorder %s134, 0
      %p601 = por %p599, %p600
      %p602 = scmp.ne.s32.totalorder %s590, %s591
      %p603 = scmp.eq.s32.totalorder %s135, 1
      %p604 = por %p602, %p603
      %p606 = scmp.ne.s32.totalorder %s591, %s605
      %p607 = scmp.eq.s32.totalorder %s135, 0
      %p608 = por %p606, %p607
      %s610 = sadd.s32 %s609, 1
      %p613 = scmp.eq.s32.totalorder %s129, 1
      %p614 = scmp.ne.s32.totalorder %s609, %s611
      %p615 = scmp.eq.s32.totalorder %s129, 0
      %p616 = por %p614, %p615
      %p617 = scmp.ne.s32.totalorder %s609, %s611
      %p618 = scmp.eq.s32.totalorder %s134, 1
      %p619 = por %p617, %p618
      %p620 = scmp.ne.s32.totalorder %s611, %s612
      %p621 = scmp.eq.s32.totalorder %s134, 0
      %p622 = por %p620, %p621
      %p623 = scmp.ne.s32.totalorder %s611, %s612
      %p624 = scmp.eq.s32.totalorder %s135, 1
      %p625 = por %p623, %p624
      %p627 = scmp.ne.s32.totalorder %s612, %s626
      %p628 = scmp.eq.s32.totalorder %s135, 0
      %p629 = por %p627, %p628
      %s631 = sadd.s32 %s630, 1
      %p634 = scmp.eq.s32.totalorder %s129, 1
      %p635 = scmp.ne.s32.totalorder %s630, %s632
      %p636 = scmp.eq.s32.totalorder %s129, 0
      %p637 = por %p635, %p636
      %p638 = scmp.ne.s32.totalorder %s630, %s632
      %p639 = scmp.eq.s32.totalorder %s134, 1
      %p640 = por %p638, %p639
      %p641 = scmp.ne.s32.totalorder %s632, %s633
      %p642 = scmp.eq.s32.totalorder %s134, 0
      %p643 = por %p641, %p642
      %p644 = scmp.ne.s32.totalorder %s632, %s633
      %p645 = scmp.eq.s32.totalorder %s135, 1
      %p646 = por %p644, %p645
      %p648 = scmp.ne.s32.totalorder %s633, %s647
      %p649 = scmp.eq.s32.totalorder %s135, 0
      %p650 = por %p648, %p649
      %s652 = sadd.s32 %s651, 1
      %p655 = scmp.eq.s32.totalorder %s129, 1
      %p656 = scmp.ne.s32.totalorder %s651, %s653
      %p657 = scmp.eq.s32.totalorder %s129, 0
      %p658 = por %p656, %p657
      %p659 = scmp.ne.s32.totalorder %s651, %s653
      %p660 = scmp.eq.s32.totalorder %s134, 1
      %p661 = por %p659, %p660
      %p662 = scmp.ne.s32.totalorder %s653, %s654
      %p663 = scmp.eq.s32.totalorder %s134, 0
      %p664 = por %p662, %p663
      %p665 = scmp.ne.s32.totalorder %s653, %s654
      %p666 = scmp.eq.s32.totalorder %s135, 1
      %p667 = por %p665, %p666
      %p669 = scmp.ne.s32.totalorder %s654, %s668
      %p670 = scmp.eq.s32.totalorder %s135, 0
      %p671 = por %p669, %p670
      %s673 = sadd.s32 %s672, 1
      %p676 = scmp.eq.s32.totalorder %s129, 1
      %p677 = scmp.ne.s32.totalorder %s672, %s674
      %p678 = scmp.eq.s32.totalorder %s129, 0
      %p679 = por %p677, %p678
      %p680 = scmp.ne.s32.totalorder %s672, %s674
      %p681 = scmp.eq.s32.totalorder %s134, 1
      %p682 = por %p680, %p681
      %p683 = scmp.ne.s32.totalorder %s674, %s675
      %p684 = scmp.eq.s32.totalorder %s134, 0
      %p685 = por %p683, %p684
      %p686 = scmp.ne.s32.totalorder %s674, %s675
      %p687 = scmp.eq.s32.totalorder %s135, 1
      %p688 = por %p686, %p687
      %p690 = scmp.ne.s32.totalorder %s675, %s689
      %p691 = scmp.eq.s32.totalorder %s135, 0
      %p692 = por %p690, %p691
      %s694 = sadd.s32 %s693, 1
      %p697 = scmp.eq.s32.totalorder %s129, 1
      %p698 = scmp.ne.s32.totalorder %s693, %s695
      %p699 = scmp.eq.s32.totalorder %s129, 0
      %p700 = por %p698, %p699
      %p701 = scmp.ne.s32.totalorder %s693, %s695
      %p702 = scmp.eq.s32.totalorder %s134, 1
      %p703 = por %p701, %p702
      %p704 = scmp.ne.s32.totalorder %s695, %s696
      %p705 = scmp.eq.s32.totalorder %s134, 0
      %p706 = por %p704, %p705
      %p707 = scmp.ne.s32.totalorder %s695, %s696
      %p708 = scmp.eq.s32.totalorder %s135, 1
      %p709 = por %p707, %p708
      %p711 = scmp.ne.s32.totalorder %s696, %s710
      %p712 = scmp.eq.s32.totalorder %s135, 0
      %p713 = por %p711, %p712
      %s715 = sadd.s32 %s714, 1
      %p718 = scmp.eq.s32.totalorder %s129, 1
      %p719 = scmp.ne.s32.totalorder %s714, %s716
      %p720 = scmp.eq.s32.totalorder %s129, 0
      %p721 = por %p719, %p720
      %p722 = scmp.ne.s32.totalorder %s714, %s716
      %p723 = scmp.eq.s32.totalorder %s134, 1
      %p724 = por %p722, %p723
      %p725 = scmp.ne.s32.totalorder %s716, %s717
      %p726 = scmp.eq.s32.totalorder %s134, 0
      %p727 = por %p725, %p726
      %p728 = scmp.ne.s32.totalorder %s716, %s717
      %p729 = scmp.eq.s32.totalorder %s135, 1
      %p730 = por %p728, %p729
      %p732 = scmp.ne.s32.totalorder %s717, %s731
      %p733 = scmp.eq.s32.totalorder %s135, 0
      %p734 = por %p732, %p733
      %s736 = sadd.s32 %s735, 1
      %p739 = scmp.eq.s32.totalorder %s129, 1
      %p740 = scmp.ne.s32.totalorder %s735, %s737
      %p741 = scmp.eq.s32.totalorder %s129, 0
      %p742 = por %p740, %p741
      %p743 = scmp.ne.s32.totalorder %s735, %s737
      %p744 = scmp.eq.s32.totalorder %s134, 1
      %p745 = por %p743, %p744
      %p746 = scmp.ne.s32.totalorder %s737, %s738
      %p747 = scmp.eq.s32.totalorder %s134, 0
      %p748 = por %p746, %p747
      %p749 = scmp.ne.s32.totalorder %s737, %s738
      %p750 = scmp.eq.s32.totalorder %s135, 1
      %p751 = por %p749, %p750
      %p753 = scmp.ne.s32.totalorder %s738, %s752
      %p754 = scmp.eq.s32.totalorder %s135, 0
      %p755 = por %p753, %p754
      %s757 = sadd.s32 %s756, 1
      %p760 = scmp.eq.s32.totalorder %s129, 1
      %p761 = scmp.ne.s32.totalorder %s756, %s758
      %p762 = scmp.eq.s32.totalorder %s129, 0
      %p763 = por %p761, %p762
      %p764 = scmp.ne.s32.totalorder %s756, %s758
      %p765 = scmp.eq.s32.totalorder %s134, 1
      %p766 = por %p764, %p765
      %p767 = scmp.ne.s32.totalorder %s758, %s759
      %p768 = scmp.eq.s32.totalorder %s134, 0
      %p769 = por %p767, %p768
      %p770 = scmp.ne.s32.totalorder %s758, %s759
      %p771 = scmp.eq.s32.totalorder %s135, 1
      %p772 = por %p770, %p771
      %p774 = scmp.ne.s32.totalorder %s759, %s773
      %p775 = scmp.eq.s32.totalorder %s135, 0
      %p776 = por %p774, %p775
      %s778 = sadd.s32 %s777, 1
      %p781 = scmp.eq.s32.totalorder %s129, 1
      %p782 = scmp.ne.s32.totalorder %s777, %s779
      %p783 = scmp.eq.s32.totalorder %s129, 0
      %p784 = por %p782, %p783
      %p785 = scmp.ne.s32.totalorder %s777, %s779
      %p786 = scmp.eq.s32.totalorder %s134, 1
      %p787 = por %p785, %p786
      %p788 = scmp.ne.s32.totalorder %s779, %s780
      %p789 = scmp.eq.s32.totalorder %s134, 0
      %p790 = por %p788, %p789
      %p791 = scmp.ne.s32.totalorder %s779, %s780
      %p792 = scmp.eq.s32.totalorder %s135, 1
      %p793 = por %p791, %p792
      %p795 = scmp.ne.s32.totalorder %s780, %s794
      %p796 = scmp.eq.s32.totalorder %s135, 0
      %p797 = por %p795, %p796
      %s799 = sadd.s32 %s798, 1
      %p802 = scmp.eq.s32.totalorder %s129, 1
      %p803 = scmp.ne.s32.totalorder %s798, %s800
      %p804 = scmp.eq.s32.totalorder %s129, 0
      %p805 = por %p803, %p804
      %p806 = scmp.ne.s32.totalorder %s798, %s800
      %p807 = scmp.eq.s32.totalorder %s134, 1
      %p808 = por %p806, %p807
      %p809 = scmp.ne.s32.totalorder %s800, %s801
      %p810 = scmp.eq.s32.totalorder %s134, 0
      %p811 = por %p809, %p810
      %p812 = scmp.ne.s32.totalorder %s800, %s801
      %p813 = scmp.eq.s32.totalorder %s135, 1
      %p814 = por %p812, %p813
      %p816 = scmp.ne.s32.totalorder %s801, %s815
      %p817 = scmp.eq.s32.totalorder %s135, 0
      %p818 = por %p816, %p817
      %s820 = sadd.s32 %s819, 1
      %p823 = scmp.eq.s32.totalorder %s129, 1
      %p824 = scmp.ne.s32.totalorder %s819, %s821
      %p825 = scmp.eq.s32.totalorder %s129, 0
      %p826 = por %p824, %p825
      %p827 = scmp.ne.s32.totalorder %s819, %s821
      %p828 = scmp.eq.s32.totalorder %s134, 1
      %p829 = por %p827, %p828
      %p830 = scmp.ne.s32.totalorder %s821, %s822
      %p831 = scmp.eq.s32.totalorder %s134, 0
      %p832 = por %p830, %p831
      %p833 = scmp.ne.s32.totalorder %s821, %s822
      %p834 = scmp.eq.s32.totalorder %s135, 1
      %p835 = por %p833, %p834
      %p837 = scmp.ne.s32.totalorder %s822, %s836
      %p838 = scmp.eq.s32.totalorder %s135, 0
      %p839 = por %p837, %p838
      %s841 = sadd.s32 %s840, 1
      %p844 = scmp.eq.s32.totalorder %s129, 1
      %p845 = scmp.ne.s32.totalorder %s840, %s842
      %p846 = scmp.eq.s32.totalorder %s129, 0
      %p847 = por %p845, %p846
      %p848 = scmp.ne.s32.totalorder %s840, %s842
      %p849 = scmp.eq.s32.totalorder %s134, 1
      %p850 = por %p848, %p849
      %p851 = scmp.ne.s32.totalorder %s842, %s843
      %p852 = scmp.eq.s32.totalorder %s134, 0
      %p853 = por %p851, %p852
      %p854 = scmp.ne.s32.totalorder %s842, %s843
      %p855 = scmp.eq.s32.totalorder %s135, 1
      %p856 = por %p854, %p855
      %p858 = scmp.ne.s32.totalorder %s843, %s857
      %p859 = scmp.eq.s32.totalorder %s135, 0
      %p860 = por %p858, %p859
      %s862 = sadd.s32 %s861, 1
      %p865 = scmp.eq.s32.totalorder %s129, 1
      %p866 = scmp.ne.s32.totalorder %s861, %s863
      %p867 = scmp.eq.s32.totalorder %s129, 0
      %p868 = por %p866, %p867
      %p869 = scmp.ne.s32.totalorder %s861, %s863
      %p870 = scmp.eq.s32.totalorder %s134, 1
      %p871 = por %p869, %p870
      %p872 = scmp.ne.s32.totalorder %s863, %s864
      %p873 = scmp.eq.s32.totalorder %s134, 0
      %p874 = por %p872, %p873
      %p875 = scmp.ne.s32.totalorder %s863, %s864
      %p876 = scmp.eq.s32.totalorder %s135, 1
      %p877 = por %p875, %p876
      %p879 = scmp.ne.s32.totalorder %s864, %s878
      %p880 = scmp.eq.s32.totalorder %s135, 0
      %p881 = por %p879, %p880
      %s883 = sadd.s32 %s882, 1
      %p886 = scmp.eq.s32.totalorder %s129, 1
      %p887 = scmp.ne.s32.totalorder %s882, %s884
      %p888 = scmp.eq.s32.totalorder %s129, 0
      %p889 = por %p887, %p888
      %p890 = scmp.ne.s32.totalorder %s882, %s884
      %p891 = scmp.eq.s32.totalorder %s134, 1
      %p892 = por %p890, %p891
      %p893 = scmp.ne.s32.totalorder %s884, %s885
      %p894 = scmp.eq.s32.totalorder %s134, 0
      %p895 = por %p893, %p894
      %p896 = scmp.ne.s32.totalorder %s884, %s885
      %p897 = scmp.eq.s32.totalorder %s135, 1
      %p898 = por %p896, %p897
      %p900 = scmp.ne.s32.totalorder %s885, %s899
      %p901 = scmp.eq.s32.totalorder %s135, 0
      %p902 = por %p900, %p901
      %s904 = sadd.s32 %s903, 1
      %p907 = scmp.eq.s32.totalorder %s129, 1
      %p908 = scmp.ne.s32.totalorder %s903, %s905
      %p909 = scmp.eq.s32.totalorder %s129, 0
      %p910 = por %p908, %p909
      %p911 = scmp.ne.s32.totalorder %s903, %s905
      %p912 = scmp.eq.s32.totalorder %s134, 1
      %p913 = por %p911, %p912
      %p914 = scmp.ne.s32.totalorder %s905, %s906
      %p915 = scmp.eq.s32.totalorder %s134, 0
      %p916 = por %p914, %p915
      %p917 = scmp.ne.s32.totalorder %s905, %s906
      %p918 = scmp.eq.s32.totalorder %s135, 1
      %p919 = por %p917, %p918
      %p921 = scmp.ne.s32.totalorder %s906, %s920
      %p922 = scmp.eq.s32.totalorder %s135, 0
      %p923 = por %p921, %p922
      %s925 = sadd.s32 %s924, 1
      %p928 = scmp.eq.s32.totalorder %s129, 1
      %p929 = scmp.ne.s32.totalorder %s924, %s926
      %p930 = scmp.eq.s32.totalorder %s129, 0
      %p931 = por %p929, %p930
      %p932 = scmp.ne.s32.totalorder %s924, %s926
      %p933 = scmp.eq.s32.totalorder %s134, 1
      %p934 = por %p932, %p933
      %p935 = scmp.ne.s32.totalorder %s926, %s927
      %p936 = scmp.eq.s32.totalorder %s134, 0
      %p937 = por %p935, %p936
      %p938 = scmp.ne.s32.totalorder %s926, %s927
      %p939 = scmp.eq.s32.totalorder %s135, 1
      %p940 = por %p938, %p939
      %p942 = scmp.ne.s32.totalorder %s927, %s941
      %p943 = scmp.eq.s32.totalorder %s135, 0
      %p944 = por %p942, %p943
      %s946 = sadd.s32 %s945, 1
      %p949 = scmp.eq.s32.totalorder %s129, 1
      %p950 = scmp.ne.s32.totalorder %s945, %s947
      %p951 = scmp.eq.s32.totalorder %s129, 0
      %p952 = por %p950, %p951
      %p953 = scmp.ne.s32.totalorder %s945, %s947
      %p954 = scmp.eq.s32.totalorder %s134, 1
      %p955 = por %p953, %p954
      %p956 = scmp.ne.s32.totalorder %s947, %s948
      %p957 = scmp.eq.s32.totalorder %s134, 0
      %p958 = por %p956, %p957
      %p959 = scmp.ne.s32.totalorder %s947, %s948
      %p960 = scmp.eq.s32.totalorder %s135, 1
      %p961 = por %p959, %p960
      %p963 = scmp.ne.s32.totalorder %s948, %s962
      %p964 = scmp.eq.s32.totalorder %s135, 0
      %p965 = por %p963, %p964
      %s967 = sadd.s32 %s966, 1
      %p970 = scmp.eq.s32.totalorder %s129, 1
      %p971 = scmp.ne.s32.totalorder %s966, %s968
      %p972 = scmp.eq.s32.totalorder %s129, 0
      %p973 = por %p971, %p972
      %p974 = scmp.ne.s32.totalorder %s966, %s968
      %p975 = scmp.eq.s32.totalorder %s134, 1
      %p976 = por %p974, %p975
      %p977 = scmp.ne.s32.totalorder %s968, %s969
      %p978 = scmp.eq.s32.totalorder %s134, 0
      %p979 = por %p977, %p978
      %p980 = scmp.ne.s32.totalorder %s968, %s969
      %p981 = scmp.eq.s32.totalorder %s135, 1
      %p982 = por %p980, %p981
      %p984 = scmp.ne.s32.totalorder %s969, %s983
      %p985 = scmp.eq.s32.totalorder %s135, 0
      %p986 = por %p984, %p985
      %s988 = sadd.s32 %s987, 1
      %p991 = scmp.eq.s32.totalorder %s129, 1
      %p992 = scmp.ne.s32.totalorder %s987, %s989
      %p993 = scmp.eq.s32.totalorder %s129, 0
      %p994 = por %p992, %p993
      %p995 = scmp.ne.s32.totalorder %s987, %s989
      %p996 = scmp.eq.s32.totalorder %s134, 1
      %p997 = por %p995, %p996
      %p998 = scmp.ne.s32.totalorder %s989, %s990
      %p999 = scmp.eq.s32.totalorder %s134, 0
      %p1000 = por %p998, %p999
      %p1001 = scmp.ne.s32.totalorder %s989, %s990
      %p1002 = scmp.eq.s32.totalorder %s135, 1
      %p1003 = por %p1001, %p1002
      %p1005 = scmp.ne.s32.totalorder %s990, %s1004
      %p1006 = scmp.eq.s32.totalorder %s135, 0
      %p1007 = por %p1005, %p1006
      %s1009 = sadd.s32 %s1008, 1
      %p1012 = scmp.eq.s32.totalorder %s129, 1
      %p1013 = scmp.ne.s32.totalorder %s1008, %s1010
      %p1014 = scmp.eq.s32.totalorder %s129, 0
      %p1015 = por %p1013, %p1014
      %p1016 = scmp.ne.s32.totalorder %s1008, %s1010
      %p1017 = scmp.eq.s32.totalorder %s134, 1
      %p1018 = por %p1016, %p1017
      %p1019 = scmp.ne.s32.totalorder %s1010, %s1011
      %p1020 = scmp.eq.s32.totalorder %s134, 0
      %p1021 = por %p1019, %p1020
      %p1022 = scmp.ne.s32.totalorder %s1010, %s1011
      %p1023 = scmp.eq.s32.totalorder %s135, 1
      %p1024 = por %p1022, %p1023
      %p1026 = scmp.ne.s32.totalorder %s1011, %s1025
      %p1027 = scmp.eq.s32.totalorder %s135, 0
      %p1028 = por %p1026, %p1027
      %s1030 = sadd.s32 %s1029, 1
      %p1033 = scmp.eq.s32.totalorder %s129, 1
      %p1034 = scmp.ne.s32.totalorder %s1029, %s1031
      %p1035 = scmp.eq.s32.totalorder %s129, 0
      %p1036 = por %p1034, %p1035
      %p1037 = scmp.ne.s32.totalorder %s1029, %s1031
      %p1038 = scmp.eq.s32.totalorder %s134, 1
      %p1039 = por %p1037, %p1038
      %p1040 = scmp.ne.s32.totalorder %s1031, %s1032
      %p1041 = scmp.eq.s32.totalorder %s134, 0
      %p1042 = por %p1040, %p1041
      %p1043 = scmp.ne.s32.totalorder %s1031, %s1032
      %p1044 = scmp.eq.s32.totalorder %s135, 1
      %p1045 = por %p1043, %p1044
      %p1047 = scmp.ne.s32.totalorder %s1032, %s1046
      %p1048 = scmp.eq.s32.totalorder %s135, 0
      %p1049 = por %p1047, %p1048
      %s1051 = sadd.s32 %s1050, 1
      %p1054 = scmp.eq.s32.totalorder %s129, 1
      %p1055 = scmp.ne.s32.totalorder %s1050, %s1052
      %p1056 = scmp.eq.s32.totalorder %s129, 0
      %p1057 = por %p1055, %p1056
      %p1058 = scmp.ne.s32.totalorder %s1050, %s1052
      %p1059 = scmp.eq.s32.totalorder %s134, 1
      %p1060 = por %p1058, %p1059
      %p1061 = scmp.ne.s32.totalorder %s1052, %s1053
      %p1062 = scmp.eq.s32.totalorder %s134, 0
      %p1063 = por %p1061, %p1062
      %p1064 = scmp.ne.s32.totalorder %s1052, %s1053
      %p1065 = scmp.eq.s32.totalorder %s135, 1
      %p1066 = por %p1064, %p1065
      %p1068 = scmp.ne.s32.totalorder %s1053, %s1067
      %p1069 = scmp.eq.s32.totalorder %s135, 0
      %p1070 = por %p1068, %p1069
      %s1072 = sadd.s32 %s1071, 1
      %p1075 = scmp.eq.s32.totalorder %s129, 1
      %p1076 = scmp.ne.s32.totalorder %s1071, %s1073
      %p1077 = scmp.eq.s32.totalorder %s129, 0
      %p1078 = por %p1076, %p1077
      %p1079 = scmp.ne.s32.totalorder %s1071, %s1073
      %p1080 = scmp.eq.s32.totalorder %s134, 1
      %p1081 = por %p1079, %p1080
      %p1082 = scmp.ne.s32.totalorder %s1073, %s1074
      %p1083 = scmp.eq.s32.totalorder %s134, 0
      %p1084 = por %p1082, %p1083
      %p1085 = scmp.ne.s32.totalorder %s1073, %s1074
      %p1086 = scmp.eq.s32.totalorder %s135, 1
      %p1087 = por %p1085, %p1086
      %p1089 = scmp.ne.s32.totalorder %s1074, %s1088
      %p1090 = scmp.eq.s32.totalorder %s135, 0
      %p1091 = por %p1089, %p1090
      %s1093 = sadd.s32 %s1092, 1
      %p1096 = scmp.eq.s32.totalorder %s129, 1
      %p1097 = scmp.ne.s32.totalorder %s1092, %s1094
      %p1098 = scmp.eq.s32.totalorder %s129, 0
      %p1099 = por %p1097, %p1098
      %p1100 = scmp.ne.s32.totalorder %s1092, %s1094
      %p1101 = scmp.eq.s32.totalorder %s134, 1
      %p1102 = por %p1100, %p1101
      %p1103 = scmp.ne.s32.totalorder %s1094, %s1095
      %p1104 = scmp.eq.s32.totalorder %s134, 0
      %p1105 = por %p1103, %p1104
      %p1106 = scmp.ne.s32.totalorder %s1094, %s1095
      %p1107 = scmp.eq.s32.totalorder %s135, 1
      %p1108 = por %p1106, %p1107
      %p1110 = scmp.ne.s32.totalorder %s1095, %s1109
      %p1111 = scmp.eq.s32.totalorder %s135, 0
      %p1112 = por %p1110, %p1111
      %s1114 = sadd.s32 %s1113, 1
      %p1117 = scmp.eq.s32.totalorder %s129, 1
      %p1118 = scmp.ne.s32.totalorder %s1113, %s1115
      %p1119 = scmp.eq.s32.totalorder %s129, 0
      %p1120 = por %p1118, %p1119
      %p1121 = scmp.ne.s32.totalorder %s1113, %s1115
      %p1122 = scmp.eq.s32.totalorder %s134, 1
      %p1123 = por %p1121, %p1122
      %p1124 = scmp.ne.s32.totalorder %s1115, %s1116
      %p1125 = scmp.eq.s32.totalorder %s134, 0
      %p1126 = por %p1124, %p1125
      %p1127 = scmp.ne.s32.totalorder %s1115, %s1116
      %p1128 = scmp.eq.s32.totalorder %s135, 1
      %p1129 = por %p1127, %p1128
      %p1131 = scmp.ne.s32.totalorder %s1116, %s1130
      %p1132 = scmp.eq.s32.totalorder %s135, 0
      %p1133 = por %p1131, %p1132
      %s1135 = sadd.s32 %s1134, 1
      %p1138 = scmp.eq.s32.totalorder %s129, 1
      %p1139 = scmp.ne.s32.totalorder %s1134, %s1136
      %p1140 = scmp.eq.s32.totalorder %s129, 0
      %p1141 = por %p1139, %p1140
      %p1142 = scmp.ne.s32.totalorder %s1134, %s1136
      %p1143 = scmp.eq.s32.totalorder %s134, 1
      %p1144 = por %p1142, %p1143
      %p1145 = scmp.ne.s32.totalorder %s1136, %s1137
      %p1146 = scmp.eq.s32.totalorder %s134, 0
      %p1147 = por %p1145, %p1146
      %p1148 = scmp.ne.s32.totalorder %s1136, %s1137
      %p1149 = scmp.eq.s32.totalorder %s135, 1
      %p1150 = por %p1148, %p1149
      %p1152 = scmp.ne.s32.totalorder %s1137, %s1151
      %p1153 = scmp.eq.s32.totalorder %s135, 0
      %p1154 = por %p1152, %p1153
      %s1156 = sadd.s32 %s1155, 1
      %p1159 = scmp.eq.s32.totalorder %s129, 1
      %p1160 = scmp.ne.s32.totalorder %s1155, %s1157
      %p1161 = scmp.eq.s32.totalorder %s129, 0
      %p1162 = por %p1160, %p1161
      %p1163 = scmp.ne.s32.totalorder %s1155, %s1157
      %p1164 = scmp.eq.s32.totalorder %s134, 1
      %p1165 = por %p1163, %p1164
      %p1166 = scmp.ne.s32.totalorder %s1157, %s1158
      %p1167 = scmp.eq.s32.totalorder %s134, 0
      %p1168 = por %p1166, %p1167
      %p1169 = scmp.ne.s32.totalorder %s1157, %s1158
      %p1170 = scmp.eq.s32.totalorder %s135, 1
      %p1171 = por %p1169, %p1170
      %p1173 = scmp.ne.s32.totalorder %s1158, %s1172
      %p1174 = scmp.eq.s32.totalorder %s135, 0
      %p1175 = por %p1173, %p1174
      %s1177 = sadd.s32 %s1176, 1
      %p1180 = scmp.eq.s32.totalorder %s129, 1
      %p1181 = scmp.ne.s32.totalorder %s1176, %s1178
      %p1182 = scmp.eq.s32.totalorder %s129, 0
      %p1183 = por %p1181, %p1182
      %p1184 = scmp.ne.s32.totalorder %s1176, %s1178
      %p1185 = scmp.eq.s32.totalorder %s134, 1
      %p1186 = por %p1184, %p1185
      %p1187 = scmp.ne.s32.totalorder %s1178, %s1179
      %p1188 = scmp.eq.s32.totalorder %s134, 0
      %p1189 = por %p1187, %p1188
      %p1190 = scmp.ne.s32.totalorder %s1178, %s1179
      %p1191 = scmp.eq.s32.totalorder %s135, 1
      %p1192 = por %p1190, %p1191
      %p1194 = scmp.ne.s32.totalorder %s1179, %s1193
      %p1195 = scmp.eq.s32.totalorder %s135, 0
      %p1196 = por %p1194, %p1195
      %s1198 = sadd.s32 %s1197, 1
      %p1201 = scmp.eq.s32.totalorder %s129, 1
      %p1202 = scmp.ne.s32.totalorder %s1197, %s1199
      %p1203 = scmp.eq.s32.totalorder %s129, 0
      %p1204 = por %p1202, %p1203
      %p1205 = scmp.ne.s32.totalorder %s1197, %s1199
      %p1206 = scmp.eq.s32.totalorder %s134, 1
      %p1207 = por %p1205, %p1206
      %p1208 = scmp.ne.s32.totalorder %s1199, %s1200
      %p1209 = scmp.eq.s32.totalorder %s134, 0
      %p1210 = por %p1208, %p1209
      %p1211 = scmp.ne.s32.totalorder %s1199, %s1200
      %p1212 = scmp.eq.s32.totalorder %s135, 1
      %p1213 = por %p1211, %p1212
      %p1215 = scmp.ne.s32.totalorder %s1200, %s1214
      %p1216 = scmp.eq.s32.totalorder %s135, 0
      %p1217 = por %p1215, %p1216
      %s1219 = sadd.s32 %s1218, 1
      %p1222 = scmp.eq.s32.totalorder %s129, 1
      %p1223 = scmp.ne.s32.totalorder %s1218, %s1220
      %p1224 = scmp.eq.s32.totalorder %s129, 0
      %p1225 = por %p1223, %p1224
      %p1226 = scmp.ne.s32.totalorder %s1218, %s1220
      %p1227 = scmp.eq.s32.totalorder %s134, 1
      %p1228 = por %p1226, %p1227
      %p1229 = scmp.ne.s32.totalorder %s1220, %s1221
      %p1230 = scmp.eq.s32.totalorder %s134, 0
      %p1231 = por %p1229, %p1230
      %p1232 = scmp.ne.s32.totalorder %s1220, %s1221
      %p1233 = scmp.eq.s32.totalorder %s135, 1
      %p1234 = por %p1232, %p1233
      %p1236 = scmp.ne.s32.totalorder %s1221, %s1235
      %p1237 = scmp.eq.s32.totalorder %s135, 0
      %p1238 = por %p1236, %p1237
      %s1240 = sadd.s32 %s1239, 1
      %p1243 = scmp.eq.s32.totalorder %s129, 1
      %p1244 = scmp.ne.s32.totalorder %s1239, %s1241
      %p1245 = scmp.eq.s32.totalorder %s129, 0
      %p1246 = por %p1244, %p1245
      %p1247 = scmp.ne.s32.totalorder %s1239, %s1241
      %p1248 = scmp.eq.s32.totalorder %s134, 1
      %p1249 = por %p1247, %p1248
      %p1250 = scmp.ne.s32.totalorder %s1241, %s1242
      %p1251 = scmp.eq.s32.totalorder %s134, 0
      %p1252 = por %p1250, %p1251
      %p1253 = scmp.ne.s32.totalorder %s1241, %s1242
      %p1254 = scmp.eq.s32.totalorder %s135, 1
      %p1255 = por %p1253, %p1254
      %p1257 = scmp.ne.s32.totalorder %s1242, %s1256
      %p1258 = scmp.eq.s32.totalorder %s135, 0
      %p1259 = por %p1257, %p1258
      %s1261 = sadd.s32 %s1260, 1
      %p1264 = scmp.eq.s32.totalorder %s129, 1
      %p1265 = scmp.ne.s32.totalorder %s1260, %s1262
      %p1266 = scmp.eq.s32.totalorder %s129, 0
      %p1267 = por %p1265, %p1266
      %p1268 = scmp.ne.s32.totalorder %s1260, %s1262
      %p1269 = scmp.eq.s32.totalorder %s134, 1
      %p1270 = por %p1268, %p1269
      %p1271 = scmp.ne.s32.totalorder %s1262, %s1263
      %p1272 = scmp.eq.s32.totalorder %s134, 0
      %p1273 = por %p1271, %p1272
      %p1274 = scmp.ne.s32.totalorder %s1262, %s1263
      %p1275 = scmp.eq.s32.totalorder %s135, 1
      %p1276 = por %p1274, %p1275
      %p1278 = scmp.ne.s32.totalorder %s1263, %s1277
      %p1279 = scmp.eq.s32.totalorder %s135, 0
      %p1280 = por %p1278, %p1279
      %s1282 = sadd.s32 %s1281, 1
      %p1285 = scmp.eq.s32.totalorder %s129, 1
      %p1286 = scmp.ne.s32.totalorder %s1281, %s1283
      %p1287 = scmp.eq.s32.totalorder %s129, 0
      %p1288 = por %p1286, %p1287
      %p1289 = scmp.ne.s32.totalorder %s1281, %s1283
      %p1290 = scmp.eq.s32.totalorder %s134, 1
      %p1291 = por %p1289, %p1290
      %p1292 = scmp.ne.s32.totalorder %s1283, %s1284
      %p1293 = scmp.eq.s32.totalorder %s134, 0
      %p1294 = por %p1292, %p1293
      %p1295 = scmp.ne.s32.totalorder %s1283, %s1284
      %p1296 = scmp.eq.s32.totalorder %s135, 1
      %p1297 = por %p1295, %p1296
      %p1299 = scmp.ne.s32.totalorder %s1284, %s1298
      %p1300 = scmp.eq.s32.totalorder %s135, 0
      %p1301 = por %p1299, %p1300
      %s1303 = sadd.s32 %s1302, 1
      %p1306 = scmp.eq.s32.totalorder %s129, 1
      %p1307 = scmp.ne.s32.totalorder %s1302, %s1304
      %p1308 = scmp.eq.s32.totalorder %s129, 0
      %p1309 = por %p1307, %p1308
      %p1310 = scmp.ne.s32.totalorder %s1302, %s1304
      %p1311 = scmp.eq.s32.totalorder %s134, 1
      %p1312 = por %p1310, %p1311
      %p1313 = scmp.ne.s32.totalorder %s1304, %s1305
      %p1314 = scmp.eq.s32.totalorder %s134, 0
      %p1315 = por %p1313, %p1314
      %p1316 = scmp.ne.s32.totalorder %s1304, %s1305
      %p1317 = scmp.eq.s32.totalorder %s135, 1
      %p1318 = por %p1316, %p1317
      %p1320 = scmp.ne.s32.totalorder %s1305, %s1319
      %p1321 = scmp.eq.s32.totalorder %s135, 0
      %p1322 = por %p1320, %p1321
      %s1323 = ssub.s32 %s129, %s136
      %p1324 = scmp.eq.s32.totalorder %s1323, 0
      %s1326 = sadd.s32 %s1325, 1
      %s1327 = scalar_select %p1324, %s1325, %s1326
      %p1330 = pneg %p1324
      %p1331 = scmp.eq.s32.totalorder %s129, 1
      %p1332 = por %p1330, %p1331
      %p1333 = scmp.ne.s32.totalorder %s1325, %s1328
      %p1334 = scmp.eq.s32.totalorder %s129, 0
      %p1335 = por %p1333, %p1334
      %p1336 = scmp.ne.s32.totalorder %s1325, %s1328
      %p1337 = scmp.eq.s32.totalorder %s134, 1
      %p1338 = por %p1336, %p1337
      %p1339 = scmp.ne.s32.totalorder %s1328, %s1329
      %p1340 = scmp.eq.s32.totalorder %s134, 0
      %p1341 = por %p1339, %p1340
      %p1342 = scmp.ne.s32.totalorder %s1328, %s1329
      %p1343 = scmp.eq.s32.totalorder %s135, 1
      %p1344 = por %p1342, %p1343
      %p1346 = scmp.ne.s32.totalorder %s1329, %s1345
      %p1347 = scmp.eq.s32.totalorder %s135, 0
      %p1348 = por %p1346, %p1347
      %p1349 = scmp.le.s32.totalorder 1, %s129
      %p1350 = scmp.lt.s32.totalorder %s129, 3
      %p1351 = pnand %p1349, %p1350
      %p1352 = pneg %p1351
      // Predicated region
      $region9: #{irms_forward.1} parent=5 // pred_check
        _
      $region10: #{irms_forward.1} parent=5 // pred_check_branch
        %1354 = sbr.rel (%p1351) target = $region12
      $region11: #{irms_forward.1} parent=5 // pred_region
        %s1355 = ssub.s32 %s129, 1
        // Predicated region
        $region13: #{irms_forward.1} parent=11 // pred_check
          %p1356 = pneg %p202
        $region14: #{irms_forward.1} parent=11 // pred_check_branch
          %1358 = sbr.rel (%p1356) target = $region16
        $region15: #{irms_forward.1} parent=11 // pred_region
          _
        $region16: #{irms_forward.1} parent=11 // pred_fallthru
          _
        // Predicated region
        $region17: #{irms_forward.1} parent=11 // pred_check
          %p1359 = pneg %p223
        $region18: #{irms_forward.1} parent=11 // pred_check_branch
          %1361 = sbr.rel (%p1359) target = $region20
        $region19: #{irms_forward.1} parent=11 // pred_region
          _
        $region20: #{irms_forward.1} parent=11 // pred_fallthru
          _
        // Predicated region
        $region21: #{irms_forward.1} parent=11 // pred_check
          %p1362 = pneg %p244
        $region22: #{irms_forward.1} parent=11 // pred_check_branch
          %1364 = sbr.rel (%p1362) target = $region24
        $region23: #{irms_forward.1} parent=11 // pred_region
          _
        $region24: #{irms_forward.1} parent=11 // pred_fallthru
          _
        // Predicated region
        $region25: #{irms_forward.1} parent=11 // pred_check
          %p1365 = pneg %p265
        $region26: #{irms_forward.1} parent=11 // pred_check_branch
          %1367 = sbr.rel (%p1365) target = $region28
        $region27: #{irms_forward.1} parent=11 // pred_region
          _
        $region28: #{irms_forward.1} parent=11 // pred_fallthru
          _
        // Predicated region
        $region29: #{irms_forward.1} parent=11 // pred_check
          %p1368 = pneg %p286
        $region30: #{irms_forward.1} parent=11 // pred_check_branch
          %1370 = sbr.rel (%p1368) target = $region32
        $region31: #{irms_forward.1} parent=11 // pred_region
          _
        $region32: #{irms_forward.1} parent=11 // pred_fallthru
          _
        // Predicated region
        $region33: #{irms_forward.1} parent=11 // pred_check
          %p1371 = pneg %p307
        $region34: #{irms_forward.1} parent=11 // pred_check_branch
          %1373 = sbr.rel (%p1371) target = $region36
        $region35: #{irms_forward.1} parent=11 // pred_region
          _
        $region36: #{irms_forward.1} parent=11 // pred_fallthru
          _
        // Predicated region
        $region37: #{irms_forward.1} parent=11 // pred_check
          %p1374 = pneg %p328
        $region38: #{irms_forward.1} parent=11 // pred_check_branch
          %1376 = sbr.rel (%p1374) target = $region40
        $region39: #{irms_forward.1} parent=11 // pred_region
          _
        $region40: #{irms_forward.1} parent=11 // pred_fallthru
          _
        // Predicated region
        $region41: #{irms_forward.1} parent=11 // pred_check
          %p1377 = pneg %p349
        $region42: #{irms_forward.1} parent=11 // pred_check_branch
          %1379 = sbr.rel (%p1377) target = $region44
        $region43: #{irms_forward.1} parent=11 // pred_region
          _
        $region44: #{irms_forward.1} parent=11 // pred_fallthru
          _
        // Predicated region
        $region45: #{irms_forward.1} parent=11 // pred_check
          %p1380 = pneg %p370
        $region46: #{irms_forward.1} parent=11 // pred_check_branch
          %1382 = sbr.rel (%p1380) target = $region48
        $region47: #{irms_forward.1} parent=11 // pred_region
          _
        $region48: #{irms_forward.1} parent=11 // pred_fallthru
          _
        // Predicated region
        $region49: #{irms_forward.1} parent=11 // pred_check
          %p1383 = pneg %p391
        $region50: #{irms_forward.1} parent=11 // pred_check_branch
          %1385 = sbr.rel (%p1383) target = $region52
        $region51: #{irms_forward.1} parent=11 // pred_region
          _
        $region52: #{irms_forward.1} parent=11 // pred_fallthru
          _
        // Predicated region
        $region53: #{irms_forward.1} parent=11 // pred_check
          %p1386 = pneg %p412
        $region54: #{irms_forward.1} parent=11 // pred_check_branch
          %1388 = sbr.rel (%p1386) target = $region56
        $region55: #{irms_forward.1} parent=11 // pred_region
          _
        $region56: #{irms_forward.1} parent=11 // pred_fallthru
          _
        // Predicated region
        $region57: #{irms_forward.1} parent=11 // pred_check
          %p1389 = pneg %p433
        $region58: #{irms_forward.1} parent=11 // pred_check_branch
          %1391 = sbr.rel (%p1389) target = $region60
        $region59: #{irms_forward.1} parent=11 // pred_region
          _
        $region60: #{irms_forward.1} parent=11 // pred_fallthru
          _
        // Predicated region
        $region61: #{irms_forward.1} parent=11 // pred_check
          %p1392 = pneg %p454
        $region62: #{irms_forward.1} parent=11 // pred_check_branch
          %1394 = sbr.rel (%p1392) target = $region64
        $region63: #{irms_forward.1} parent=11 // pred_region
          _
        $region64: #{irms_forward.1} parent=11 // pred_fallthru
          _
        // Predicated region
        $region65: #{irms_forward.1} parent=11 // pred_check
          %p1395 = pneg %p475
        $region66: #{irms_forward.1} parent=11 // pred_check_branch
          %1397 = sbr.rel (%p1395) target = $region68
        $region67: #{irms_forward.1} parent=11 // pred_region
          _
        $region68: #{irms_forward.1} parent=11 // pred_fallthru
          _
        // Predicated region
        $region69: #{irms_forward.1} parent=11 // pred_check
          %p1398 = pneg %p496
        $region70: #{irms_forward.1} parent=11 // pred_check_branch
          %1400 = sbr.rel (%p1398) target = $region72
        $region71: #{irms_forward.1} parent=11 // pred_region
          _
        $region72: #{irms_forward.1} parent=11 // pred_fallthru
          _
        // Predicated region
        $region73: #{irms_forward.1} parent=11 // pred_check
          %p1401 = pneg %p517
        $region74: #{irms_forward.1} parent=11 // pred_check_branch
          %1403 = sbr.rel (%p1401) target = $region76
        $region75: #{irms_forward.1} parent=11 // pred_region
          _
        $region76: #{irms_forward.1} parent=11 // pred_fallthru
          _
        // Predicated region
        $region77: #{irms_forward.1} parent=11 // pred_check
          %p1404 = pneg %p538
        $region78: #{irms_forward.1} parent=11 // pred_check_branch
          %1406 = sbr.rel (%p1404) target = $region80
        $region79: #{irms_forward.1} parent=11 // pred_region
          _
        $region80: #{irms_forward.1} parent=11 // pred_fallthru
          _
        // Predicated region
        $region81: #{irms_forward.1} parent=11 // pred_check
          %p1407 = pneg %p559
        $region82: #{irms_forward.1} parent=11 // pred_check_branch
          %1409 = sbr.rel (%p1407) target = $region84
        $region83: #{irms_forward.1} parent=11 // pred_region
          _
        $region84: #{irms_forward.1} parent=11 // pred_fallthru
          _
        // Predicated region
        $region85: #{irms_forward.1} parent=11 // pred_check
          %p1410 = pneg %p580
        $region86: #{irms_forward.1} parent=11 // pred_check_branch
          %1412 = sbr.rel (%p1410) target = $region88
        $region87: #{irms_forward.1} parent=11 // pred_region
          _
        $region88: #{irms_forward.1} parent=11 // pred_fallthru
          _
        // Predicated region
        $region89: #{irms_forward.1} parent=11 // pred_check
          %p1413 = pneg %p601
        $region90: #{irms_forward.1} parent=11 // pred_check_branch
          %1415 = sbr.rel (%p1413) target = $region92
        $region91: #{irms_forward.1} parent=11 // pred_region
          _
        $region92: #{irms_forward.1} parent=11 // pred_fallthru
          _
        // Predicated region
        $region93: #{irms_forward.1} parent=11 // pred_check
          %p1416 = pneg %p622
        $region94: #{irms_forward.1} parent=11 // pred_check_branch
          %1418 = sbr.rel (%p1416) target = $region96
        $region95: #{irms_forward.1} parent=11 // pred_region
          _
        $region96: #{irms_forward.1} parent=11 // pred_fallthru
          _
        // Predicated region
        $region97: #{irms_forward.1} parent=11 // pred_check
          %p1419 = pneg %p643
        $region98: #{irms_forward.1} parent=11 // pred_check_branch
          %1421 = sbr.rel (%p1419) target = $region100
        $region99: #{irms_forward.1} parent=11 // pred_region
          _
        $region100: #{irms_forward.1} parent=11 // pred_fallthru
          _
        // Predicated region
        $region101: #{irms_forward.1} parent=11 // pred_check
          %p1422 = pneg %p664
        $region102: #{irms_forward.1} parent=11 // pred_check_branch
          %1424 = sbr.rel (%p1422) target = $region104
        $region103: #{irms_forward.1} parent=11 // pred_region
          _
        $region104: #{irms_forward.1} parent=11 // pred_fallthru
          _
        // Predicated region
        $region105: #{irms_forward.1} parent=11 // pred_check
          %p1425 = pneg %p685
        $region106: #{irms_forward.1} parent=11 // pred_check_branch
          %1427 = sbr.rel (%p1425) target = $region108
        $region107: #{irms_forward.1} parent=11 // pred_region
          _
        $region108: #{irms_forward.1} parent=11 // pred_fallthru
          _
        // Predicated region
        $region109: #{irms_forward.1} parent=11 // pred_check
          %p1428 = pneg %p706
        $region110: #{irms_forward.1} parent=11 // pred_check_branch
          %1430 = sbr.rel (%p1428) target = $region112
        $region111: #{irms_forward.1} parent=11 // pred_region
          _
        $region112: #{irms_forward.1} parent=11 // pred_fallthru
          _
        // Predicated region
        $region113: #{irms_forward.1} parent=11 // pred_check
          %p1431 = pneg %p727
        $region114: #{irms_forward.1} parent=11 // pred_check_branch
          %1433 = sbr.rel (%p1431) target = $region116
        $region115: #{irms_forward.1} parent=11 // pred_region
          _
        $region116: #{irms_forward.1} parent=11 // pred_fallthru
          _
        // Predicated region
        $region117: #{irms_forward.1} parent=11 // pred_check
          %p1434 = pneg %p748
        $region118: #{irms_forward.1} parent=11 // pred_check_branch
          %1436 = sbr.rel (%p1434) target = $region120
        $region119: #{irms_forward.1} parent=11 // pred_region
          _
        $region120: #{irms_forward.1} parent=11 // pred_fallthru
          _
        // Predicated region
        $region121: #{irms_forward.1} parent=11 // pred_check
          %p1437 = pneg %p769
        $region122: #{irms_forward.1} parent=11 // pred_check_branch
          %1439 = sbr.rel (%p1437) target = $region124
        $region123: #{irms_forward.1} parent=11 // pred_region
          _
        $region124: #{irms_forward.1} parent=11 // pred_fallthru
          _
        // Predicated region
        $region125: #{irms_forward.1} parent=11 // pred_check
          %p1440 = pneg %p790
        $region126: #{irms_forward.1} parent=11 // pred_check_branch
          %1442 = sbr.rel (%p1440) target = $region128
        $region127: #{irms_forward.1} parent=11 // pred_region
          _
        $region128: #{irms_forward.1} parent=11 // pred_fallthru
          _
        // Predicated region
        $region129: #{irms_forward.1} parent=11 // pred_check
          %p1443 = pneg %p811
        $region130: #{irms_forward.1} parent=11 // pred_check_branch
          %1445 = sbr.rel (%p1443) target = $region132
        $region131: #{irms_forward.1} parent=11 // pred_region
          _
        $region132: #{irms_forward.1} parent=11 // pred_fallthru
          _
        // Predicated region
        $region133: #{irms_forward.1} parent=11 // pred_check
          %p1446 = pneg %p832
        $region134: #{irms_forward.1} parent=11 // pred_check_branch
          %1448 = sbr.rel (%p1446) target = $region136
        $region135: #{irms_forward.1} parent=11 // pred_region
          _
        $region136: #{irms_forward.1} parent=11 // pred_fallthru
          _
        // Predicated region
        $region137: #{irms_forward.1} parent=11 // pred_check
          %p1449 = pneg %p853
        $region138: #{irms_forward.1} parent=11 // pred_check_branch
          %1451 = sbr.rel (%p1449) target = $region140
        $region139: #{irms_forward.1} parent=11 // pred_region
          _
        $region140: #{irms_forward.1} parent=11 // pred_fallthru
          _
        // Predicated region
        $region141: #{irms_forward.1} parent=11 // pred_check
          %p1452 = pneg %p874
        $region142: #{irms_forward.1} parent=11 // pred_check_branch
          %1454 = sbr.rel (%p1452) target = $region144
        $region143: #{irms_forward.1} parent=11 // pred_region
          _
        $region144: #{irms_forward.1} parent=11 // pred_fallthru
          _
        // Predicated region
        $region145: #{irms_forward.1} parent=11 // pred_check
          %p1455 = pneg %p895
        $region146: #{irms_forward.1} parent=11 // pred_check_branch
          %1457 = sbr.rel (%p1455) target = $region148
        $region147: #{irms_forward.1} parent=11 // pred_region
          _
        $region148: #{irms_forward.1} parent=11 // pred_fallthru
          _
        // Predicated region
        $region149: #{irms_forward.1} parent=11 // pred_check
          %p1458 = pneg %p916
        $region150: #{irms_forward.1} parent=11 // pred_check_branch
          %1460 = sbr.rel (%p1458) target = $region152
        $region151: #{irms_forward.1} parent=11 // pred_region
          %1462 = vsyncadd [#allocation3], 0
          %s1464 = sshll.u32 %s73, 4
          %s1465 = int_to_ptr.hbm [resolvable:$true] %s1464
          %s1466 = sshll.u32 [#allocation2], 4
          %s1467 = int_to_ptr.vmem [resolvable:$true] %s1466
          %1469 = dma.hbm_to_vmem [thread:$0]  %s1465, 16, %s1467, [#allocation3]
        $region152: #{irms_forward.1} parent=11 // pred_fallthru
          _
        // Predicated region
        $region153: #{irms_forward.1} parent=11 // pred_check
          %p1470 = pneg %p937
        $region154: #{irms_forward.1} parent=11 // pred_check_branch
          %1472 = sbr.rel (%p1470) target = $region156
        $region155: #{irms_forward.1} parent=11 // pred_region
          %1474 = vsyncadd [#allocation6], 0
          %s1476 = sshll.u32 %s75, 4
          %s1477 = int_to_ptr.hbm [resolvable:$true] %s1476
          %s1478 = sshll.u32 [#allocation5], 4
          %s1479 = int_to_ptr.vmem [resolvable:$true] %s1478
          %1481 = dma.hbm_to_vmem [thread:$0]  %s1477, 16, %s1479, [#allocation6]
        $region156: #{irms_forward.1} parent=11 // pred_fallthru
          _
        // Predicated region
        $region157: #{irms_forward.1} parent=11 // pred_check
          %p1482 = pneg %p958
        $region158: #{irms_forward.1} parent=11 // pred_check_branch
          %1484 = sbr.rel (%p1482) target = $region160
        $region159: #{irms_forward.1} parent=11 // pred_region
          _
        $region160: #{irms_forward.1} parent=11 // pred_fallthru
          _
        // Predicated region
        $region161: #{irms_forward.1} parent=11 // pred_check
          %p1485 = pneg %p979
        $region162: #{irms_forward.1} parent=11 // pred_check_branch
          %1487 = sbr.rel (%p1485) target = $region164
        $region163: #{irms_forward.1} parent=11 // pred_region
          %1489 = vsyncadd [#allocation6], 0
          %s1491 = sshll.u32 %s79, 4
          %s1492 = int_to_ptr.hbm [resolvable:$true] %s1491
          %s1493 = sshll.u32 [#allocation7], 4
          %s1494 = int_to_ptr.vmem [resolvable:$true] %s1493
          %1496 = dma.hbm_to_vmem [thread:$0]  %s1492, 16, %s1494, [#allocation6]
        $region164: #{irms_forward.1} parent=11 // pred_fallthru
          _
        // Predicated region
        $region165: #{irms_forward.1} parent=11 // pred_check
          %p1497 = pneg %p1000
        $region166: #{irms_forward.1} parent=11 // pred_check_branch
          %1499 = sbr.rel (%p1497) target = $region168
        $region167: #{irms_forward.1} parent=11 // pred_region
          _
        $region168: #{irms_forward.1} parent=11 // pred_fallthru
          _
        // Predicated region
        $region169: #{irms_forward.1} parent=11 // pred_check
          %p1500 = pneg %p1021
        $region170: #{irms_forward.1} parent=11 // pred_check_branch
          %1502 = sbr.rel (%p1500) target = $region172
        $region171: #{irms_forward.1} parent=11 // pred_region
          %1504 = vsyncadd [#allocation9], 0
          %s1506 = sshll.u32 %s83, 4
          %s1507 = int_to_ptr.hbm [resolvable:$true] %s1506
          %s1508 = sshll.u32 [#allocation8], 4
          %s1509 = int_to_ptr.vmem [resolvable:$true] %s1508
          %1511 = dma.hbm_to_vmem [thread:$0]  %s1507, 16, %s1509, [#allocation9]
        $region172: #{irms_forward.1} parent=11 // pred_fallthru
          _
        // Predicated region
        $region173: #{irms_forward.1} parent=11 // pred_check
          %p1512 = pneg %p1042
        $region174: #{irms_forward.1} parent=11 // pred_check_branch
          %1514 = sbr.rel (%p1512) target = $region176
        $region175: #{irms_forward.1} parent=11 // pred_region
          %1516 = vsyncadd [#allocation9], 0
          %s1518 = sshll.u32 %s85, 4
          %s1519 = int_to_ptr.hbm [resolvable:$true] %s1518
          %s1520 = sshll.u32 [#allocation10], 4
          %s1521 = int_to_ptr.vmem [resolvable:$true] %s1520
          %1523 = dma.hbm_to_vmem [thread:$0]  %s1519, 16, %s1521, [#allocation9]
        $region176: #{irms_forward.1} parent=11 // pred_fallthru
          _
        // Predicated region
        $region177: #{irms_forward.1} parent=11 // pred_check
          %p1524 = pneg %p1063
        $region178: #{irms_forward.1} parent=11 // pred_check_branch
          %1526 = sbr.rel (%p1524) target = $region180
        $region179: #{irms_forward.1} parent=11 // pred_region
          %1528 = vsyncadd [#allocation12], 0
          %s1530 = sshll.u32 %s87, 4
          %s1531 = int_to_ptr.hbm [resolvable:$true] %s1530
          %s1532 = sshll.u32 [#allocation11], 4
          %s1533 = int_to_ptr.vmem [resolvable:$true] %s1532
          %1535 = dma.hbm_to_vmem [thread:$0]  %s1531, 16, %s1533, [#allocation12]
        $region180: #{irms_forward.1} parent=11 // pred_fallthru
          _
        // Predicated region
        $region181: #{irms_forward.1} parent=11 // pred_check
          %p1536 = pneg %p1084
        $region182: #{irms_forward.1} parent=11 // pred_check_branch
          %1538 = sbr.rel (%p1536) target = $region184
        $region183: #{irms_forward.1} parent=11 // pred_region
          _
        $region184: #{irms_forward.1} parent=11 // pred_fallthru
          _
        // Predicated region
        $region185: #{irms_forward.1} parent=11 // pred_check
          %p1539 = pneg %p1105
        $region186: #{irms_forward.1} parent=11 // pred_check_branch
          %1541 = sbr.rel (%p1539) target = $region188
        $region187: #{irms_forward.1} parent=11 // pred_region
          %1543 = vsyncadd [#allocation12], 0
          %s1545 = sshll.u32 %s91, 4
          %s1546 = int_to_ptr.hbm [resolvable:$true] %s1545
          %s1547 = sshll.u32 [#allocation13], 4
          %s1548 = int_to_ptr.vmem [resolvable:$true] %s1547
          %1550 = dma.hbm_to_vmem [thread:$0]  %s1546, 16, %s1548, [#allocation12]
        $region188: #{irms_forward.1} parent=11 // pred_fallthru
          _
        // Predicated region
        $region189: #{irms_forward.1} parent=11 // pred_check
          %p1551 = pneg %p1126
        $region190: #{irms_forward.1} parent=11 // pred_check_branch
          %1553 = sbr.rel (%p1551) target = $region192
        $region191: #{irms_forward.1} parent=11 // pred_region
          _
        $region192: #{irms_forward.1} parent=11 // pred_fallthru
          _
        // Predicated region
        $region193: #{irms_forward.1} parent=11 // pred_check
          %p1554 = pneg %p1147
        $region194: #{irms_forward.1} parent=11 // pred_check_branch
          %1556 = sbr.rel (%p1554) target = $region196
        $region195: #{irms_forward.1} parent=11 // pred_region
          %1558 = vsyncadd [#allocation15], 0
          %s1560 = sshll.u32 %s95, 4
          %s1561 = int_to_ptr.hbm [resolvable:$true] %s1560
          %s1562 = sshll.u32 [#allocation14], 4
          %s1563 = int_to_ptr.vmem [resolvable:$true] %s1562
          %1565 = dma.hbm_to_vmem [thread:$0]  %s1561, 16, %s1563, [#allocation15]
        $region196: #{irms_forward.1} parent=11 // pred_fallthru
          _
        // Predicated region
        $region197: #{irms_forward.1} parent=11 // pred_check
          %p1566 = pneg %p1168
        $region198: #{irms_forward.1} parent=11 // pred_check_branch
          %1568 = sbr.rel (%p1566) target = $region200
        $region199: #{irms_forward.1} parent=11 // pred_region
          %1570 = vsyncadd [#allocation15], 0
          %s1572 = sshll.u32 %s97, 4
          %s1573 = int_to_ptr.hbm [resolvable:$true] %s1572
          %s1574 = sshll.u32 [#allocation16], 4
          %s1575 = int_to_ptr.vmem [resolvable:$true] %s1574
          %1577 = dma.hbm_to_vmem [thread:$0]  %s1573, 16, %s1575, [#allocation15]
        $region200: #{irms_forward.1} parent=11 // pred_fallthru
          _
        // Predicated region
        $region201: #{irms_forward.1} parent=11 // pred_check
          %p1578 = pneg %p1189
        $region202: #{irms_forward.1} parent=11 // pred_check_branch
          %1580 = sbr.rel (%p1578) target = $region204
        $region203: #{irms_forward.1} parent=11 // pred_region
          %1582 = vsyncadd [#allocation18], 0
          %s1584 = sshll.u32 %s99, 4
          %s1585 = int_to_ptr.hbm [resolvable:$true] %s1584
          %s1586 = sshll.u32 [#allocation17], 4
          %s1587 = int_to_ptr.vmem [resolvable:$true] %s1586
          %1589 = dma.hbm_to_vmem [thread:$0]  %s1585, 16, %s1587, [#allocation18]
        $region204: #{irms_forward.1} parent=11 // pred_fallthru
          _
        // Predicated region
        $region205: #{irms_forward.1} parent=11 // pred_check
          %p1590 = pneg %p1210
        $region206: #{irms_forward.1} parent=11 // pred_check_branch
          %1592 = sbr.rel (%p1590) target = $region208
        $region207: #{irms_forward.1} parent=11 // pred_region
          %1594 = vsyncadd [#allocation18], 0
          %s1595 = sshll.u32 %s101, 4
          %s1596 = int_to_ptr.hbm [resolvable:$true] %s1595
          %s1597 = sshll.u32 [#allocation19], 4
          %s1598 = int_to_ptr.vmem [resolvable:$true] %s1597
          %1603 = dma.hbm_to_vmem [thread:$0]  %s1596, 8192, %s1598, [#allocation18], 256, 256, 16
        $region208: #{irms_forward.1} parent=11 // pred_fallthru
          _
        // Predicated region
        $region209: #{irms_forward.1} parent=11 // pred_check
          %p1604 = pneg %p1231
        $region210: #{irms_forward.1} parent=11 // pred_check_branch
          %1606 = sbr.rel (%p1604) target = $region212
        $region211: #{irms_forward.1} parent=11 // pred_region
          _
        $region212: #{irms_forward.1} parent=11 // pred_fallthru
          _
        // Predicated region
        $region213: #{irms_forward.1} parent=11 // pred_check
          %p1607 = pneg %p1252
        $region214: #{irms_forward.1} parent=11 // pred_check_branch
          %1609 = sbr.rel (%p1607) target = $region216
        $region215: #{irms_forward.1} parent=11 // pred_region
          %1611 = vsyncadd [#allocation21], 0
          %s1612 = sshll.u32 %s105, 4
          %s1613 = int_to_ptr.hbm [resolvable:$true] %s1612
          %s1614 = sshll.u32 [#allocation20], 4
          %s1615 = int_to_ptr.vmem [resolvable:$true] %s1614
          %1620 = dma.hbm_to_vmem [thread:$0]  %s1613, 8192, %s1615, [#allocation21], 128, 128, 8
        $region216: #{irms_forward.1} parent=11 // pred_fallthru
          _
        // Predicated region
        $region217: #{irms_forward.1} parent=11 // pred_check
          %p1621 = pneg %p1273
        $region218: #{irms_forward.1} parent=11 // pred_check_branch
          %1623 = sbr.rel (%p1621) target = $region220
        $region219: #{irms_forward.1} parent=11 // pred_region
          _
        $region220: #{irms_forward.1} parent=11 // pred_fallthru
          _
        // Predicated region
        $region221: #{irms_forward.1} parent=11 // pred_check
          %p1624 = pneg %p1294
        $region222: #{irms_forward.1} parent=11 // pred_check_branch
          %1626 = sbr.rel (%p1624) target = $region224
        $region223: #{irms_forward.1} parent=11 // pred_region
          _
        $region224: #{irms_forward.1} parent=11 // pred_fallthru
          _
        // Predicated region
        $region225: #{irms_forward.1} parent=11 // pred_check
          %p1627 = pneg %p1315
        $region226: #{irms_forward.1} parent=11 // pred_check_branch
          %1629 = sbr.rel (%p1627) target = $region228
        $region227: #{irms_forward.1} parent=11 // pred_region
          %1631 = vsyncadd [#allocation21], 0
          %s1633 = sshll.u32 %s111, 4
          %s1634 = int_to_ptr.hbm [resolvable:$true] %s1633
          %s1635 = sshll.u32 [#allocation22], 4
          %s1636 = int_to_ptr.vmem [resolvable:$true] %s1635
          %1638 = dma.hbm_to_vmem [thread:$0]  %s1634, 16, %s1636, [#allocation21]
        $region228: #{irms_forward.1} parent=11 // pred_fallthru
          _
      $region12: #{irms_forward.1} parent=5 // pred_fallthru
        _
      %p1639 = scmp.lt.s32.totalorder %s129, 2
      // Predicated region
      $region229: #{irms_forward.1} parent=5 // pred_check
        %p1640 = pneg %p1639
      $region230: #{irms_forward.1} parent=5 // pred_check_branch
        %1642 = sbr.rel (%p1640) target = $region232
      $region231: #{irms_forward.1} parent=5 // pred_region
        // Predicated region
        $region233: #{irms_forward.1} parent=231 // pred_check
          %p1643 = pneg %p149
        $region234: #{irms_forward.1} parent=231 // pred_check_branch
          %1645 = sbr.rel (%p1643) target = $region236
        $region235: #{irms_forward.1} parent=231 // pred_region
          %p1646 = scmp.lt.s32.totalorder %s129, 1
          %s1647 = scalar_select %p1646, %s129, 1
          %s1648 = smul.addr %s1647, 2
          %s1649 = smul.addr %s1648, 8
          %s1650 = scalar_lea.vmem %s1, %s1649
        $region236: #{irms_forward.1} parent=231 // pred_fallthru
          _
        // Predicated region
        $region237: #{irms_forward.1} parent=231 // pred_check
          %p1651 = pneg %p175
        $region238: #{irms_forward.1} parent=231 // pred_check_branch
          %1653 = sbr.rel (%p1651) target = $region240
        $region239: #{irms_forward.1} parent=231 // pred_region
          %p1654 = scmp.lt.s32.totalorder %s129, 1
          %s1655 = scalar_select %p1654, %s129, 1
          %s1656 = smul.addr %s1655, 8
          %s1657 = scalar_lea.vmem %s3, %s1656
        $region240: #{irms_forward.1} parent=231 // pred_fallthru
          _
      $region232: #{irms_forward.1} parent=5 // pred_fallthru
        _
      %p1658 = scmp.le.s32.totalorder 1, %s129
      %p1659 = scmp.lt.s32.totalorder %s129, 3
      %p1660 = pnand %p1658, %p1659
      %p1661 = pneg %p1660
      // Predicated region
      $region241: #{irms_forward.1} parent=5 // pred_check
        _
      $region242: #{irms_forward.1} parent=5 // pred_check_branch
        %1663 = sbr.rel (%p1660) target = $region244
      $region243: #{irms_forward.1} parent=5 // pred_region
        %s1664 = ssub.s32 %s129, 1
        // Predicated region
        $region245: #{irms_forward.1} parent=243 // pred_check
          %p1665 = pneg %p916
        $region246: #{irms_forward.1} parent=243 // pred_check_branch
          %1667 = sbr.rel (%p1665) target = $region248
        $region247: #{irms_forward.1} parent=243 // pred_region
          %1669 = dma.done [#allocation3], 16
        $region248: #{irms_forward.1} parent=243 // pred_fallthru
          _
        // Predicated region
        $region249: #{irms_forward.1} parent=243 // pred_check
          %p1670 = pneg %p937
        $region250: #{irms_forward.1} parent=243 // pred_check_branch
          %1672 = sbr.rel (%p1670) target = $region252
        $region251: #{irms_forward.1} parent=243 // pred_region
          %1674 = dma.done [#allocation6], 16
        $region252: #{irms_forward.1} parent=243 // pred_fallthru
          _
        // Predicated region
        $region253: #{irms_forward.1} parent=243 // pred_check
          %p1675 = pneg %p979
        $region254: #{irms_forward.1} parent=243 // pred_check_branch
          %1677 = sbr.rel (%p1675) target = $region256
        $region255: #{irms_forward.1} parent=243 // pred_region
          %1679 = dma.done [#allocation6], 16
        $region256: #{irms_forward.1} parent=243 // pred_fallthru
          _
        // Predicated region
        $region257: #{irms_forward.1} parent=243 // pred_check
          %p1680 = pneg %p1021
        $region258: #{irms_forward.1} parent=243 // pred_check_branch
          %1682 = sbr.rel (%p1680) target = $region260
        $region259: #{irms_forward.1} parent=243 // pred_region
          %1684 = dma.done [#allocation9], 16
        $region260: #{irms_forward.1} parent=243 // pred_fallthru
          _
        // Predicated region
        $region261: #{irms_forward.1} parent=243 // pred_check
          %p1685 = pneg %p1042
        $region262: #{irms_forward.1} parent=243 // pred_check_branch
          %1687 = sbr.rel (%p1685) target = $region264
        $region263: #{irms_forward.1} parent=243 // pred_region
          %1689 = dma.done [#allocation9], 16
        $region264: #{irms_forward.1} parent=243 // pred_fallthru
          _
        // Predicated region
        $region265: #{irms_forward.1} parent=243 // pred_check
          %p1690 = pneg %p1063
        $region266: #{irms_forward.1} parent=243 // pred_check_branch
          %1692 = sbr.rel (%p1690) target = $region268
        $region267: #{irms_forward.1} parent=243 // pred_region
          %1694 = dma.done [#allocation12], 16
        $region268: #{irms_forward.1} parent=243 // pred_fallthru
          _
        // Predicated region
        $region269: #{irms_forward.1} parent=243 // pred_check
          %p1695 = pneg %p1105
        $region270: #{irms_forward.1} parent=243 // pred_check_branch
          %1697 = sbr.rel (%p1695) target = $region272
        $region271: #{irms_forward.1} parent=243 // pred_region
          %1699 = dma.done [#allocation12], 16
        $region272: #{irms_forward.1} parent=243 // pred_fallthru
          _
        // Predicated region
        $region273: #{irms_forward.1} parent=243 // pred_check
          %p1700 = pneg %p1147
        $region274: #{irms_forward.1} parent=243 // pred_check_branch
          %1702 = sbr.rel (%p1700) target = $region276
        $region275: #{irms_forward.1} parent=243 // pred_region
          %1704 = dma.done [#allocation15], 16
        $region276: #{irms_forward.1} parent=243 // pred_fallthru
          _
        // Predicated region
        $region277: #{irms_forward.1} parent=243 // pred_check
          %p1705 = pneg %p1168
        $region278: #{irms_forward.1} parent=243 // pred_check_branch
          %1707 = sbr.rel (%p1705) target = $region280
        $region279: #{irms_forward.1} parent=243 // pred_region
          %1709 = dma.done [#allocation15], 16
        $region280: #{irms_forward.1} parent=243 // pred_fallthru
          _
        // Predicated region
        $region281: #{irms_forward.1} parent=243 // pred_check
          %p1710 = pneg %p1189
        $region282: #{irms_forward.1} parent=243 // pred_check_branch
          %1712 = sbr.rel (%p1710) target = $region284
        $region283: #{irms_forward.1} parent=243 // pred_region
          %1714 = dma.done [#allocation18], 16
        $region284: #{irms_forward.1} parent=243 // pred_fallthru
          _
        // Predicated region
        $region285: #{irms_forward.1} parent=243 // pred_check
          %p1715 = pneg %p1210
        $region286: #{irms_forward.1} parent=243 // pred_check_branch
          %1717 = sbr.rel (%p1715) target = $region288
        $region287: #{irms_forward.1} parent=243 // pred_region
          %1719 = dma.done [#allocation18], 8192
        $region288: #{irms_forward.1} parent=243 // pred_fallthru
          _
        // Predicated region
        $region289: #{irms_forward.1} parent=243 // pred_check
          %p1720 = pneg %p1252
        $region290: #{irms_forward.1} parent=243 // pred_check_branch
          %1722 = sbr.rel (%p1720) target = $region292
        $region291: #{irms_forward.1} parent=243 // pred_region
          %1724 = dma.done [#allocation21], 8192
        $region292: #{irms_forward.1} parent=243 // pred_fallthru
          _
        // Predicated region
        $region293: #{irms_forward.1} parent=243 // pred_check
          %p1725 = pneg %p1315
        $region294: #{irms_forward.1} parent=243 // pred_check_branch
          %1727 = sbr.rel (%p1725) target = $region296
        $region295: #{irms_forward.1} parent=243 // pred_region
          %1729 = dma.done [#allocation21], 16
        $region296: #{irms_forward.1} parent=243 // pred_fallthru
          _
        %p1730 = scmp.lt.s32.totalorder %s134, 1
        %s1731 = scalar_select %p1730, %s134, 1
        %s1732 = smul.addr %s1731, 2
        %s1733 = smul.addr %s1732, 8
        %s1734 = scalar_lea.vmem %s1, %s1733
        %p1735 = pneg %p155
        %p1736 = pneg %p152
        %p1737 = scmp.lt.s32.totalorder %s134, 1
        %s1738 = scalar_select %p1737, %s134, 1
        %s1739 = smul.addr %s1738, 8
        %s1740 = scalar_lea.vmem %s3, %s1739
        %p1741 = pneg %p181
        %p1742 = pneg %p178
        %p1743 = pneg %p202
        %p1744 = pneg %p199
        %p1745 = pneg %p223
        %p1746 = pneg %p220
        %p1747 = pneg %p244
        %p1748 = pneg %p241
        %p1749 = pneg %p265
        %p1750 = pneg %p262
        %p1751 = pneg %p286
        %p1752 = pneg %p283
        %p1753 = pneg %p307
        %p1754 = pneg %p304
        %p1755 = pneg %p328
        %p1756 = pneg %p325
        %p1757 = pneg %p349
        %p1758 = pneg %p346
        %p1759 = pneg %p370
        %p1760 = pneg %p367
        %p1761 = pneg %p391
        %p1762 = pneg %p388
        %p1763 = pneg %p412
        %p1764 = pneg %p409
        %p1765 = pneg %p433
        %p1766 = pneg %p430
        %p1767 = pneg %p454
        %p1768 = pneg %p451
        %p1769 = pneg %p475
        %p1770 = pneg %p472
        %p1771 = pneg %p496
        %p1772 = pneg %p493
        %p1773 = pneg %p517
        %p1774 = pneg %p514
        %p1775 = pneg %p538
        %p1776 = pneg %p535
        %p1777 = pneg %p559
        %p1778 = pneg %p556
        %p1779 = pneg %p580
        %p1780 = pneg %p577
        %p1781 = pneg %p601
        %p1782 = pneg %p598
        %p1783 = pneg %p622
        %p1784 = pneg %p619
        %p1785 = pneg %p643
        %p1786 = pneg %p640
        %p1787 = pneg %p664
        %p1788 = pneg %p661
        %p1789 = pneg %p685
        %p1790 = pneg %p682
        %p1791 = pneg %p706
        %p1792 = pneg %p703
        %p1793 = pneg %p727
        %p1794 = pneg %p724
        %p1795 = pneg %p748
        %p1796 = pneg %p745
        %p1797 = pneg %p769
        %p1798 = pneg %p766
        %p1799 = pneg %p790
        %p1800 = pneg %p787
        %p1801 = pneg %p811
        %p1802 = pneg %p808
        %p1803 = pneg %p832
        %p1804 = pneg %p829
        %p1805 = pneg %p853
        %p1806 = pneg %p850
        %p1807 = pneg %p874
        %p1808 = pneg %p871
        %p1809 = pneg %p895
        %p1810 = pneg %p892
        %p1811 = pneg %p916
        %p1812 = pneg %p913
        %p1813 = pneg %p937
        %p1814 = pneg %p934
        %p1815 = pneg %p958
        %p1816 = pneg %p955
        %p1817 = pneg %p979
        %p1818 = pneg %p976
        %p1819 = pneg %p1000
        %p1820 = pneg %p997
        %p1821 = pneg %p1021
        %p1822 = pneg %p1018
        %p1823 = pneg %p1042
        %p1824 = pneg %p1039
        %p1825 = pneg %p1063
        %p1826 = pneg %p1060
        %p1827 = pneg %p1084
        %p1828 = pneg %p1081
        %p1829 = pneg %p1105
        %p1830 = pneg %p1102
        %p1831 = pneg %p1126
        %p1832 = pneg %p1123
        %p1833 = pneg %p1147
        %p1834 = pneg %p1144
        %p1835 = pneg %p1168
        %p1836 = pneg %p1165
        %p1837 = pneg %p1189
        %p1838 = pneg %p1186
        %p1839 = pneg %p1210
        %p1840 = pneg %p1207
        %p1841 = pneg %p1231
        %p1842 = pneg %p1228
        %p1843 = pneg %p1252
        %p1844 = pneg %p1249
        %p1845 = pneg %p1273
        %p1846 = pneg %p1270
        %p1847 = pneg %p1294
        %p1848 = pneg %p1291
        %p1849 = pneg %p1315
        %p1850 = pneg %p1312
        %p1851 = pneg %p1341
        %p1852 = pneg %p1338
        %s1853 = sand.u32 %s1328, 1
        %s1854 = scalar_lea.sflag [#allocation4], %s1853
        %s1855 = sand.u32 %s1328, 1
        %s1856 = scalar_lea.vmem [#allocation23], %s1855
        %p1857 = scmp.lt.s32.totalorder %s134, 1
        %s1858 = scalar_select %p1857, %s134, 1
        %s1859 = smul.addr %s1858, 2
        %s1860 = smul.addr %s1859, 8
        %s1861 = scalar_lea.vmem %s1, %s1860
        %p1862 = scmp.lt.s32.totalorder %s134, 1
        %s1863 = scalar_select %p1862, %s134, 1
        %s1864 = smul.addr %s1863, 8
        %s1865 = scalar_lea.vmem %s3, %s1864
        %v1867 = vld [vmem:[%s1861] sm:$0xff]
        %v1868 = vld [vmem:[%s1861 + $0x8] sm:$0x3]
        %v1869 = vpack.c.bf16 %v1868, %v1867
        %v1870 = vld [vmem:[%s7] sm:$0x7]
        %v1871 = vld [vmem:[%s9] sm:$0x1]
        %v1873 = vperm.slane %v1871, 0
        %vm1875 = vcmask 48128
        %v1877 = vsel %vm1875, %v1869, 0
        %vm1879 = vcmask 1042432
        %v1881 = vsel %vm1879, %v1870, 0
        %1883 = vmatpush.bf16.msra.mxu0 0
        %1884 = vmatpush.bf16.msra.mxu0 0
        %1885 = vmatpush.bf16.msra.mxu0 0
        %1886 = vmatpush.bf16.msra.mxu0 0
        %1887 = vmatpush.bf16.msra.mxu0 0
        %1888 = vmatpush.bf16.msra.mxu0 0
        %1889 = vmatpush.bf16.msra.mxu0 0
        %1890 = vmatpush.bf16.msra.mxu0 %v1881
        %1891 = vmatmul.bf16.gmra.mxu0 %v1877
        %v1892 = vpop.f32.mrf.mxu0
        %v1893 = vadd.f32 %v1873, %v1892
        %v1894 = vpop.f32.mrf.mxu0
        %v1895 = vadd.f32 %v1873, %v1894
        %1896 = vdwg.mxu0
        %v1897 = vmul.f32 %v1893, 2.0
        %v1898 = vmul.f32 %v1895, 2.0
        %v1899 = vld [vmem:[%s5] sm:$0xff]
        %v1900 = vld [vmem:[%s5 + $0x8] sm:$0x3]
        %v1901 = vadd.f32 %v1897, %v1899
        %v1902 = vadd.f32 %v1898, %v1900
        %v1903 = vld [vmem:[%s23] sm:$0xff]
        %v1904 = vld [vmem:[%s23 + $0x8] sm:$0xff]
        %v1905 = vld [vmem:[%s23 + $0x10] sm:$0xf]
        %v1906 = vld [vmem:[%s29] sm:$0xf]
        %v1907 = vld [vmem:[%s29 + $0x4] sm:$0xf]
        %v1908 = vld [vmem:[%s31] sm:$0x1]
        %v1909 = vld [vmem:[%s33] sm:$0xf]
        %v1910 = vld [vmem:[%s33 + $0x4] sm:$0xf]
        %v1911 = vld [vmem:[%s35] sm:$0x1]
        %v1912 = vld [vmem:[%s37] sm:$0x1]
        %v1913 = vld [vmem:[%s39] sm:$0x1]
        %v1914 = vld [vmem:[%s41] sm:$0xf]
        %v1915 = vld [vmem:[%s41 + $0x4] sm:$0xf]
        %v1916 = vld [vmem:[%s43] sm:$0x1]
        %v1917 = vld [vmem:[%s45] sm:$0xf]
        %v1918 = vld [vmem:[%s45 + $0x4] sm:$0xf]
        %v1919 = vld [vmem:[%s45 + $0x8] sm:$0xf]
        %v1920 = vld [vmem:[%s45 + $0xc] sm:$0xf]
        %v1921 = vld [vmem:[%s47] sm:$0x1]
        %v1922 = vld [vmem:[%s49] sm:$0x1]
        %v1923 = vld [vmem:[%s51] sm:$0x1]
        %v1924 = vpack.c.bf16 %v1902, %v1901
        %v1926 = vperm.slane %v1908, 0
        %v1930 = vunpack.c.l.b16 %v1906
        %v1931 = vunpack.c.l.b16 %v1907
        %v1932 = vpack.c.b16 %v1931, %v1930
        %vm1934 = vcmask 130048
        %v1936 = vsel %vm1934, %v1924, 0
        %1938 = vmatpush.bf16.msra.mxu0 0
        %1939 = vmatpush.bf16.msra.mxu0 0
        %1940 = vmatpush.bf16.msra.mxu0 0
        %1941 = vmatpush.bf16.msra.mxu0 0
        %1942 = vmatpush.bf16.msra.mxu0 0
        %1943 = vmatpush.bf16.msra.mxu0 0
        %1944 = vmatpush.bf16.msra.mxu0 0
        %1945 = vmatpush.bf16.msra.mxu0 %v1932
        %1946 = vmatmul.bf16.gmra.mxu0 %v1936
        %v1947 = vpop.f32.mrf.mxu0
        %v1948 = vadd.f32 %v1926, %v1947
        %v1949 = vpop.f32.mrf.mxu0
        %v1950 = vadd.f32 %v1926, %v1949
        %1951 = vdwg.mxu0
        %vm1954 = vcmask 1041408
        %v1955 = vrot.slane %v1948, 6
        %v1956 = vrot.slane %v1950, 6
        %v1957 = vsel %vm1954, %v1955, %v1956
        %1958 = vrot.lane.b32.xlu0 %v1955, 120
        %v1959 = vpop.permute.xlu0 %1958
        %1960 = vrot.lane.b32.xlu0 %v1957, 120
        %v1961 = vpop.permute.xlu0 %1960
        %v1964 = vsel %vm1954, %v1950, %v1959
        %v1965 = vpack.c.bf16 %v1964, %v1948
        %v1966 = vpack.c.bf16 %v1961, %v1961
        %1969 = vrot.lane.b32.xlu0 %v1965, 112
        %v1970 = vpop.permute.xlu0 %1969
        %1971 = vrot.lane.b32.xlu0 %v1966, 112
        %v1972 = vpop.permute.xlu0 %1971
        %vm1973 = vcmask 64512
        %v1975 = vsel %vm1973, %v1965, 0
        %v1978 = vsel %vm1973, %v1966, 0
        %v1981 = vsel %vm1973, %v1970, 0
        %v1984 = vsel %vm1973, %v1972, 0
        %1986 = vmatpush.bf16.xpose.msra.mxu0 0
        %1987 = vmatpush.bf16.xpose.msra.mxu0 0
        %1988 = vmatpush.bf16.xpose.msra.mxu0 0
        %1989 = vmatpush.bf16.xpose.msra.mxu0 0
        %1990 = vmatpush.bf16.xpose.msra.mxu0 0
        %1991 = vmatpush.bf16.xpose.msra.mxu0 0
        %1992 = vmatpush.bf16.xpose.msra.mxu0 %v1984
        %1993 = vmatpush.bf16.xpose.msra.mxu0 %v1981
        %1994 = vmatmul.bf16.gmra.mxu0 %v1975
        %v1995 = vpop.f32.mrf.mxu0
        %v1996 = vadd.f32 0.0, %v1995
        %v1997 = vpop.f32.mrf.mxu0
        %v1998 = vadd.f32 0.0, %v1997
        %1999 = vmatmul.bf16.gmra.mxu0 %v1978
        %v2000 = vpop.f32.mrf.mxu0
        %v2001 = vadd.f32 0.0, %v2000
        %v2002 = vpop.f32.mrf.mxu0
        %2003 = vdwg.mxu0
        %v2004 = vmul.f32 %v1996, 0.35355338
        %v2005 = vmul.f32 %v1998, 0.35355338
        %v2006 = vmul.f32 %v2001, 0.35355338
        %v2007 = vadd.f32 %v2004, %v1903
        %v2008 = vadd.f32 %v2005, %v1904
        %v2009 = vadd.f32 %v2006, %v1905
        %vm2010 = vcmask 162816
        %v2011 = vsel %vm2010, %v2007, -inf
        %2012 = vmax.xlane.f32.xlu0 %v2011
        %v2013 = vpop.xlane.xlu0 %2012
        %v2014 = vsel %vm2010, %v2008, -inf
        %2015 = vmax.xlane.f32.xlu0 %v2014
        %v2016 = vpop.xlane.xlu0 %2015
        %vm2017 = vcmask 158720
        %v2018 = vsel %vm2017, %v2009, -inf
        %2019 = vmax.xlane.f32.xlu0 %v2018
        %v2020 = vpop.xlane.xlu0 %2019
        %v2021 = vsub.f32 %v2007, %v2013
        %v2022 = vsub.f32 %v2008, %v2016
        %v2023 = vsub.f32 %v2009, %v2020
        %v2024 = vmul.f32 %v2021, 1.442695
        %v2025 = vpow.pop %v2024
        %v2026 = vmul.f32 %v2022, 1.442695
        %v2027 = vpow.pop %v2026
        %v2028 = vmul.f32 %v2023, 1.442695
        %v2029 = vpow.pop %v2028
        %v2030 = vsel %vm2010, %v2025, 0.0
        %2031 = vadd.xlane.f32.xlu0 %v2030
        %v2032 = vpop.xlane.xlu0 %2031
        %v2033 = vsel %vm2010, %v2027, 0.0
        %2034 = vadd.xlane.f32.xlu0 %v2033
        %v2035 = vpop.xlane.xlu0 %2034
        %v2036 = vsel %vm2017, %v2029, 0.0
        %2037 = vadd.xlane.f32.xlu0 %v2036
        %v2038 = vpop.xlane.xlu0 %2037
        %v2039 = vrcp.pop %v2032
        %v2040 = vmul.f32 %v2032, %v2039
        %v2041 = vsub.f32 1.0, %v2040
        %v2042 = vmul.f32 %v2039, %v2041
        %v2043 = vadd.f32 %v2039, %v2042
        %vm2044 = vweird.f32 %v2032
        %vm2045 = vweird.f32 %v2039
        %vm2046 = vmor %vm2044, %vm2045
        %v2047 = vsel %vm2046, %v2039, %v2043
        %v2048 = vand.u32 2147483647, %v2032
        %vm2049 = vcmp.eq.f32.partialorder %v2048, 8.507059e+37
        %v2050 = vand.u32 %v2032, 2147483648
        %v2051 = vor.u32 1.1754944e-38, %v2050
        %v2052 = vsel %vm2049, %v2051, %v2047
        %v2053 = vmul.f32 %v2025, %v2052
        %v2054 = vrcp.pop %v2035
        %v2055 = vmul.f32 %v2035, %v2054
        %v2056 = vsub.f32 1.0, %v2055
        %v2057 = vmul.f32 %v2054, %v2056
        %v2058 = vadd.f32 %v2054, %v2057
        %vm2059 = vweird.f32 %v2035
        %vm2060 = vweird.f32 %v2054
        %vm2061 = vmor %vm2059, %vm2060
        %v2062 = vsel %vm2061, %v2054, %v2058
        %v2063 = vand.u32 2147483647, %v2035
        %vm2064 = vcmp.eq.f32.partialorder %v2063, 8.507059e+37
        %v2065 = vand.u32 %v2035, 2147483648
        %v2066 = vor.u32 1.1754944e-38, %v2065
        %v2067 = vsel %vm2064, %v2066, %v2062
        %v2068 = vmul.f32 %v2027, %v2067
        %v2069 = vrcp.pop %v2038
        %v2070 = vmul.f32 %v2038, %v2069
        %v2071 = vsub.f32 1.0, %v2070
        %v2072 = vmul.f32 %v2069, %v2071
        %v2073 = vadd.f32 %v2069, %v2072
        %vm2074 = vweird.f32 %v2038
        %vm2075 = vweird.f32 %v2069
        %vm2076 = vmor %vm2074, %vm2075
        %v2077 = vsel %vm2076, %v2069, %v2073
        %v2078 = vand.u32 2147483647, %v2038
        %vm2079 = vcmp.eq.f32.partialorder %v2078, 8.507059e+37
        %v2080 = vand.u32 %v2038, 2147483648
        %v2081 = vor.u32 1.1754944e-38, %v2080
        %v2082 = vsel %vm2079, %v2081, %v2077
        %v2083 = vmul.f32 %v2029, %v2082
        %v2084 = vpack.c.bf16 %v2068, %v2053
        %v2085 = vpack.c.bf16 %v2083, %v2083
        %2086 = vrot.lane.b32.xlu0 %v1965, 96
        %v2087 = vpop.permute.xlu0 %2086
        %2088 = vrot.lane.b32.xlu0 %v1966, 96
        %v2089 = vpop.permute.xlu0 %2088
        %v2092 = vsel %vm2010, %v2084, 0
        %v2095 = vsel %vm2010, %v2085, 0
        %v2098 = vsel %vm1954, %v2089, 0
        %2100 = vmatpush.bf16.msra.mxu0 0
        %2101 = vmatpush.bf16.msra.mxu0 0
        %2102 = vmatpush.bf16.msra.mxu0 0
        %2103 = vmatpush.bf16.msra.mxu0 0
        %2104 = vmatpush.bf16.msra.mxu0 0
        %2105 = vmatpush.bf16.msra.mxu0 0
        %2106 = vmatpush.bf16.msra.mxu0 %v2098
        %2107 = vmatpush.bf16.msra.mxu0 %v2087
        %2108 = vmatmul.bf16.gmra.mxu0 %v2092
        %v2109 = vpop.f32.mrf.mxu0
        %v2110 = vadd.f32 0.0, %v2109
        %v2111 = vpop.f32.mrf.mxu0
        %v2112 = vadd.f32 0.0, %v2111
        %2113 = vmatmul.bf16.gmra.mxu0 %v2095
        %v2114 = vpop.f32.mrf.mxu0
        %v2115 = vadd.f32 0.0, %v2114
        %v2116 = vpop.f32.mrf.mxu0
        %2117 = vdwg.mxu0
        %vm2120 = vcmask 1045504
        %v2121 = vrot.slane %v2112, 2
        %v2122 = vrot.slane %v2115, 2
        %v2123 = vsel %vm2120, %v2121, %v2122
        %2124 = vrot.lane.b32.xlu0 %v2123, 8
        %v2125 = vpop.permute.xlu0 %2124
        %2126 = vrot.lane.b32.xlu0 %v2122, 8
        %v2127 = vpop.permute.xlu0 %2126
        %v2130 = vsel %vm1973, %v2110, %v2125
        %v2131 = vsel %vm1973, %v2112, %v2127
        %v2132 = vpack.c.bf16 %v2131, %v2130
        %v2134 = vperm.slane %v1911, 0
        %v2138 = vunpack.c.l.b16 %v1909
        %v2139 = vunpack.c.l.b16 %v1910
        %v2140 = vpack.c.b16 %v2139, %v2138
        %v2143 = vsel %vm1934, %v2132, 0
        %2145 = vmatpush.bf16.msra.mxu0 0
        %2146 = vmatpush.bf16.msra.mxu0 0
        %2147 = vmatpush.bf16.msra.mxu0 0
        %2148 = vmatpush.bf16.msra.mxu0 0
        %2149 = vmatpush.bf16.msra.mxu0 0
        %2150 = vmatpush.bf16.msra.mxu0 0
        %2151 = vmatpush.bf16.msra.mxu0 0
        %2152 = vmatpush.bf16.msra.mxu0 %v2140
        %2153 = vmatmul.bf16.gmra.mxu0 %v2143
        %v2154 = vpop.f32.mrf.mxu0
        %v2155 = vadd.f32 %v2134, %v2154
        %v2156 = vpop.f32.mrf.mxu0
        %v2157 = vadd.f32 %v2134, %v2156
        %2158 = vdwg.mxu0
        %v2159 = vadd.f32 %v1901, %v2155
        %v2160 = vadd.f32 %v1902, %v2157
        %v2161 = vsel %vm1934, %v2159, 0.0
        %2162 = vadd.xlane.f32.xlu0 %v2161
        %v2163 = vpop.xlane.xlu0 %2162
        %vm2164 = vcmask 123904
        %v2165 = vsel %vm2164, %v2160, 0.0
        %2166 = vadd.xlane.f32.xlu0 %v2165
        %v2167 = vpop.xlane.xlu0 %2166
        %v2168 = vrcp.pop 16.0
        %v2169 = vmul.f32 16.0, %v2168
        %v2170 = vsub.f32 1.0, %v2169
        %v2171 = vmul.f32 %v2168, %v2170
        %v2172 = vadd.f32 %v2168, %v2171
        %vm2173 = vweird.f32 %v2168
        %v2174 = vsel %vm2173, %v2168, %v2172
        %v2175 = vmul.f32 %v2163, %v2174
        %v2176 = vmul.f32 %v2167, %v2174
        %v2177 = vsub.f32 %v2159, %v2175
        %v2178 = vsub.f32 %v2160, %v2176
        %v2179 = vmul.f32 %v2177, %v2177
        %v2180 = vmul.f32 %v2178, %v2178
        %v2181 = vsel %vm1934, %v2179, 0.0
        %2182 = vadd.xlane.f32.xlu0 %v2181
        %v2183 = vpop.xlane.xlu0 %2182
        %v2184 = vsel %vm2164, %v2180, 0.0
        %2185 = vadd.xlane.f32.xlu0 %v2184
        %v2186 = vpop.xlane.xlu0 %2185
        %v2187 = vmul.f32 %v2183, %v2174
        %v2188 = vmul.f32 %v2186, %v2174
        %v2189 = vadd.f32 %v2187, 1e-05
        %v2190 = vadd.f32 %v2188, 1e-05
        %v2191 = vrsqrt.pop %v2189
        %v2192 = vmul.f32 %v2191, %v2189
        %v2193 = vmul.f32 %v2192, %v2191
        %v2194 = vmul.f32 0.5, %v2193
        %v2195 = vsub.f32 1.5, %v2194
        %v2196 = vmul.f32 %v2191, %v2195
        %vm2197 = vweird.f32 %v2189
        %vm2198 = vweird.f32 %v2191
        %vm2199 = vmor %vm2197, %vm2198
        %v2200 = vsel %vm2199, %v2191, %v2196
        %v2201 = vrsqrt.pop %v2190
        %v2202 = vmul.f32 %v2201, %v2190
        %v2203 = vmul.f32 %v2202, %v2201
        %v2204 = vmul.f32 0.5, %v2203
        %v2205 = vsub.f32 1.5, %v2204
        %v2206 = vmul.f32 %v2201, %v2205
        %vm2207 = vweird.f32 %v2190
        %vm2208 = vweird.f32 %v2201
        %vm2209 = vmor %vm2207, %vm2208
        %v2210 = vsel %vm2209, %v2201, %v2206
        %v2211 = vmul.f32 %v2177, %v2200
        %v2212 = vmul.f32 %v2178, %v2210
        %v2214 = vperm.slane %v1912, 0
        %v2216 = vmul.f32 %v2211, %v2214
        %v2217 = vmul.f32 %v2212, %v2214
        %v2219 = vperm.slane %v1913, 0
        %v2221 = vadd.f32 %v2216, %v2219
        %v2222 = vadd.f32 %v2217, %v2219
        %v2223 = vpack.c.bf16 %v2222, %v2221
        %v2225 = vperm.slane %v1916, 0
        %v2229 = vunpack.c.l.b16 %v1914
        %v2230 = vunpack.c.l.b16 %v1915
        %v2231 = vpack.c.b16 %v2230, %v2229
        %v2234 = vsel %vm1934, %v2223, 0
        %2236 = vmatpush.bf16.msra.mxu0 0
        %2237 = vmatpush.bf16.msra.mxu0 0
        %2238 = vmatpush.bf16.msra.mxu0 0
        %2239 = vmatpush.bf16.msra.mxu0 0
        %2240 = vmatpush.bf16.msra.mxu0 0
        %2241 = vmatpush.bf16.msra.mxu0 0
        %2242 = vmatpush.bf16.msra.mxu0 0
        %2243 = vmatpush.bf16.msra.mxu0 %v2231
        %2244 = vmatmul.bf16.gmra.mxu0 %v2234
        %v2245 = vpop.f32.mrf.mxu0
        %v2246 = vadd.f32 %v2225, %v2245
        %v2247 = vpop.f32.mrf.mxu0
        %v2248 = vadd.f32 %v2225, %v2247
        %2249 = vdwg.mxu0
        %v2250 = vmax.f32 %v2246, 0.0
        %v2251 = vmax.f32 %v2248, 0.0
        %v2252 = vpack.c.bf16 %v2251, %v2250
        %v2254 = vperm.slane %v1921, 0
        %v2260 = vunpack.c.l.b16 %v1917
        %v2261 = vunpack.c.l.b16 %v1918
        %v2262 = vunpack.c.l.b16 %v1919
        %v2263 = vunpack.c.l.b16 %v1920
        %v2264 = vpack.c.b16 %v2261, %v2260
        %v2265 = vpack.c.b16 %v2263, %v2262
        %vm2268 = vcmask 261120
        %v2270 = vsel %vm2268, %v2252, 0
        %2272 = vmatpush.bf16.msra.mxu0 0
        %2273 = vmatpush.bf16.msra.mxu0 0
        %2274 = vmatpush.bf16.msra.mxu0 0
        %2275 = vmatpush.bf16.msra.mxu0 0
        %2276 = vmatpush.bf16.msra.mxu0 0
        %2277 = vmatpush.bf16.msra.mxu0 0
        %2278 = vmatpush.bf16.msra.mxu0 %v2265
        %2279 = vmatpush.bf16.msra.mxu0 %v2264
        %2280 = vmatmul.bf16.gmra.mxu0 %v2270
        %v2281 = vpop.f32.mrf.mxu0
        %v2282 = vadd.f32 %v2254, %v2281
        %v2283 = vpop.f32.mrf.mxu0
        %v2284 = vadd.f32 %v2254, %v2283
        %2285 = vdwg.mxu0
        %v2286 = vadd.f32 %v2221, %v2282
        %v2287 = vadd.f32 %v2222, %v2284
        %v2288 = vsel %vm1934, %v2286, 0.0
        %2289 = vadd.xlane.f32.xlu0 %v2288
        %v2290 = vpop.xlane.xlu0 %2289
        %v2291 = vsel %vm2164, %v2287, 0.0
        %2292 = vadd.xlane.f32.xlu0 %v2291
        %v2293 = vpop.xlane.xlu0 %2292
        %v2294 = vmul.f32 %v2290, %v2174
        %v2295 = vmul.f32 %v2293, %v2174
        %v2296 = vsub.f32 %v2286, %v2294
        %v2297 = vsub.f32 %v2287, %v2295
        %v2298 = vmul.f32 %v2296, %v2296
        %v2299 = vmul.f32 %v2297, %v2297
        %v2300 = vsel %vm1934, %v2298, 0.0
        %2301 = vadd.xlane.f32.xlu0 %v2300
        %v2302 = vpop.xlane.xlu0 %2301
        %v2303 = vsel %vm2164, %v2299, 0.0
        %2304 = vadd.xlane.f32.xlu0 %v2303
        %v2305 = vpop.xlane.xlu0 %2304
        %v2306 = vmul.f32 %v2302, %v2174
        %v2307 = vmul.f32 %v2305, %v2174
        %v2308 = vadd.f32 %v2306, 1e-05
        %v2309 = vadd.f32 %v2307, 1e-05
        %v2310 = vrsqrt.pop %v2308
        %v2311 = vmul.f32 %v2310, %v2308
        %v2312 = vmul.f32 %v2311, %v2310
        %v2313 = vmul.f32 0.5, %v2312
        %v2314 = vsub.f32 1.5, %v2313
        %v2315 = vmul.f32 %v2310, %v2314
        %vm2316 = vweird.f32 %v2308
        %vm2317 = vweird.f32 %v2310
        %vm2318 = vmor %vm2316, %vm2317
        %v2319 = vsel %vm2318, %v2310, %v2315
        %v2320 = vrsqrt.pop %v2309
        %v2321 = vmul.f32 %v2320, %v2309
        %v2322 = vmul.f32 %v2321, %v2320
        %v2323 = vmul.f32 0.5, %v2322
        %v2324 = vsub.f32 1.5, %v2323
        %v2325 = vmul.f32 %v2320, %v2324
        %vm2326 = vweird.f32 %v2309
        %vm2327 = vweird.f32 %v2320
        %vm2328 = vmor %vm2326, %vm2327
        %v2329 = vsel %vm2328, %v2320, %v2325
        %v2330 = vmul.f32 %v2296, %v2319
        %v2331 = vmul.f32 %v2297, %v2329
        %v2333 = vperm.slane %v1922, 0
        %v2335 = vmul.f32 %v2330, %v2333
        %v2336 = vmul.f32 %v2331, %v2333
        %v2338 = vperm.slane %v1923, 0
        %v2340 = vadd.f32 %v2335, %v2338
        %v2341 = vadd.f32 %v2336, %v2338
        %v2342 = vld [vmem:[%s1865] sm:$0xff]
        %v2343 = vpack.c.bf16 %v2342, %v2342
        %v2344 = vld [vmem:[%s11] sm:$0x7]
        %v2345 = vld [vmem:[%s13] sm:$0x1]
        %v2347 = vperm.slane %v2345, 0
        %vm2349 = vcmask 39936
        %v2351 = vsel %vm2349, %v2343, 0
        %v2353 = vsel %vm1954, 4294967295, 65535
        %v2354 = vsel %vm1879, %v2353, 0
        %v2356 = vand.u32 %v2344, %v2354
        %2358 = vmatpush.bf16.msra.mxu0 0
        %2359 = vmatpush.bf16.msra.mxu0 0
        %2360 = vmatpush.bf16.msra.mxu0 0
        %2361 = vmatpush.bf16.msra.mxu0 0
        %2362 = vmatpush.bf16.msra.mxu0 0
        %2363 = vmatpush.bf16.msra.mxu0 0
        %2364 = vmatpush.bf16.msra.mxu0 0
        %2365 = vmatpush.bf16.msra.mxu0 %v2356
        %2366 = vmatmul.bf16.gmra.mxu0 %v2351
        %v2367 = vpop.f32.mrf.mxu0
        %v2368 = vadd.f32 %v2347, %v2367
        %v2369 = vpop.f32.mrf.mxu0
        %2370 = vdwg.mxu0
        %v2371 = vmax.f32 %v2368, 0.0
        %v2372 = vpack.c.bf16 %v2371, %v2371
        %v2373 = vld [vmem:[%s15] sm:$0xf]
        %v2374 = vld [vmem:[%s15 + $0x4] sm:$0xf]
        %v2375 = vld [vmem:[%s15 + $0x8] sm:$0xf]
        %v2376 = vld [vmem:[%s15 + $0xc] sm:$0xf]
        %v2377 = vld [vmem:[%s15 + $0x10] sm:$0xf]
        %v2378 = vld [vmem:[%s15 + $0x14] sm:$0xf]
        %v2379 = vld [vmem:[%s15 + $0x18] sm:$0xf]
        %v2380 = vld [vmem:[%s15 + $0x1c] sm:$0xf]
        %v2381 = vld [vmem:[%s17] sm:$0x1]
        %v2383 = vperm.slane %v2381, 0
        %v2393 = vunpack.c.l.b16 %v2373
        %v2394 = vunpack.c.l.b16 %v2374
        %v2395 = vunpack.c.l.b16 %v2375
        %v2396 = vunpack.c.l.b16 %v2376
        %v2397 = vunpack.c.l.b16 %v2377
        %v2398 = vunpack.c.l.b16 %v2378
        %v2399 = vunpack.c.l.b16 %v2379
        %v2400 = vunpack.c.l.b16 %v2380
        %v2401 = vpack.c.b16 %v2394, %v2393
        %v2402 = vpack.c.b16 %v2396, %v2395
        %v2403 = vpack.c.b16 %v2398, %v2397
        %v2404 = vpack.c.b16 %v2400, %v2399
        %vm2409 = vcmask 523264
        %v2411 = vsel %vm2409, %v2372, 0
        %2413 = vmatpush.bf16.msra.mxu0 0
        %2414 = vmatpush.bf16.msra.mxu0 0
        %2415 = vmatpush.bf16.msra.mxu0 0
        %2416 = vmatpush.bf16.msra.mxu0 0
        %2417 = vmatpush.bf16.msra.mxu0 %v2404
        %2418 = vmatpush.bf16.msra.mxu0 %v2403
        %2419 = vmatpush.bf16.msra.mxu0 %v2402
        %2420 = vmatpush.bf16.msra.mxu0 %v2401
        %2421 = vmatmul.bf16.gmra.mxu0 %v2411
        %v2422 = vpop.f32.mrf.mxu0
        %v2423 = vadd.f32 %v2383, %v2422
        %v2424 = vpop.f32.mrf.mxu0
        %2425 = vdwg.mxu0
        %v2426 = vld [vmem:[%s25] sm:$0xff]
        %v2427 = vld [vmem:[%s25 + $0x8] sm:$0xff]
        %v2428 = vld [vmem:[%s53] sm:$0xf]
        %v2429 = vld [vmem:[%s53 + $0x4] sm:$0xf]
        %v2430 = vld [vmem:[%s55] sm:$0x1]
        %v2431 = vld [vmem:[%s57] sm:$0xf]
        %v2432 = vld [vmem:[%s57 + $0x4] sm:$0xf]
        %v2433 = vld [vmem:[%s59] sm:$0x1]
        %v2434 = vld [vmem:[%s61] sm:$0x1]
        %v2435 = vld [vmem:[%s63] sm:$0x1]
        %v2436 = vld [vmem:[%s65] sm:$0xf]
        %v2437 = vld [vmem:[%s65 + $0x4] sm:$0xf]
        %v2438 = vld [vmem:[%s67] sm:$0x1]
        %v2439 = vld [vmem:[%s69] sm:$0xf]
        %v2440 = vld [vmem:[%s69 + $0x4] sm:$0xf]
        %v2441 = vld [vmem:[%s69 + $0x8] sm:$0xf]
        %v2442 = vld [vmem:[%s69 + $0xc] sm:$0xf]
        %v2443 = vld [vmem:[%s71] sm:$0x1]
        %v2444 = vld [vmem:[#allocation2] sm:$0x1]
        %v2445 = vld [vmem:[#allocation5] sm:$0x1]
        %v2446 = vpack.c.bf16 %v2423, %v2423
        %v2448 = vperm.slane %v2430, 0
        %v2452 = vunpack.c.l.b16 %v2428
        %v2453 = vunpack.c.l.b16 %v2429
        %v2454 = vpack.c.b16 %v2453, %v2452
        %v2457 = vsel %vm1934, %v2446, 0
        %2459 = vmatpush.bf16.msra.mxu0 0
        %2460 = vmatpush.bf16.msra.mxu0 0
        %2461 = vmatpush.bf16.msra.mxu0 0
        %2462 = vmatpush.bf16.msra.mxu0 0
        %2463 = vmatpush.bf16.msra.mxu0 0
        %2464 = vmatpush.bf16.msra.mxu0 0
        %2465 = vmatpush.bf16.msra.mxu0 0
        %2466 = vmatpush.bf16.msra.mxu0 %v2454
        %2467 = vmatmul.bf16.gmra.mxu0 %v2457
        %v2468 = vpop.f32.mrf.mxu0
        %v2469 = vadd.f32 %v2448, %v2468
        %v2470 = vpop.f32.mrf.mxu0
        %2471 = vdwg.mxu0
        %2473 = vrot.lane.b32.xlu0 %v2469, 120
        %v2474 = vpop.permute.xlu0 %2473
        %v2476 = vpack.c.bf16 %v2474, %v2469
        %2478 = vrot.lane.b32.xlu0 %v2476, 112
        %v2479 = vpop.permute.xlu0 %2478
        %v2481 = vsel %vm1973, %v2476, 0
        %v2484 = vsel %vm1973, %v2479, 0
        %2486 = vmatpush.bf16.xpose.msra.mxu0 0
        %2487 = vmatpush.bf16.xpose.msra.mxu0 0
        %2488 = vmatpush.bf16.xpose.msra.mxu0 0
        %2489 = vmatpush.bf16.xpose.msra.mxu0 0
        %2490 = vmatpush.bf16.xpose.msra.mxu0 0
        %2491 = vmatpush.bf16.xpose.msra.mxu0 0
        %2492 = vmatpush.bf16.xpose.msra.mxu0 0
        %2493 = vmatpush.bf16.xpose.msra.mxu0 %v2484
        %2494 = vmatmul.bf16.gmra.mxu0 %v2481
        %v2495 = vpop.f32.mrf.mxu0
        %v2496 = vadd.f32 0.0, %v2495
        %v2497 = vpop.f32.mrf.mxu0
        %v2498 = vadd.f32 0.0, %v2497
        %2499 = vdwg.mxu0
        %v2500 = vmul.f32 %v2496, 0.35355338
        %v2501 = vmul.f32 %v2498, 0.35355338
        %v2502 = vadd.f32 %v2500, %v2426
        %v2503 = vadd.f32 %v2501, %v2427
        %v2504 = vsel %vm1934, %v2502, -inf
        %2505 = vmax.xlane.f32.xlu0 %v2504
        %v2506 = vpop.xlane.xlu0 %2505
        %v2507 = vsel %vm1934, %v2503, -inf
        %2508 = vmax.xlane.f32.xlu0 %v2507
        %v2509 = vpop.xlane.xlu0 %2508
        %v2510 = vsub.f32 %v2502, %v2506
        %v2511 = vsub.f32 %v2503, %v2509
        %v2512 = vmul.f32 %v2510, 1.442695
        %v2513 = vpow.pop %v2512
        %v2514 = vmul.f32 %v2511, 1.442695
        %v2515 = vpow.pop %v2514
        %v2516 = vsel %vm1934, %v2513, 0.0
        %2517 = vadd.xlane.f32.xlu0 %v2516
        %v2518 = vpop.xlane.xlu0 %2517
        %v2519 = vsel %vm1934, %v2515, 0.0
        %2520 = vadd.xlane.f32.xlu0 %v2519
        %v2521 = vpop.xlane.xlu0 %2520
        %v2522 = vrcp.pop %v2518
        %v2523 = vmul.f32 %v2518, %v2522
        %v2524 = vsub.f32 1.0, %v2523
        %v2525 = vmul.f32 %v2522, %v2524
        %v2526 = vadd.f32 %v2522, %v2525
        %vm2527 = vweird.f32 %v2518
        %vm2528 = vweird.f32 %v2522
        %vm2529 = vmor %vm2527, %vm2528
        %v2530 = vsel %vm2529, %v2522, %v2526
        %v2531 = vand.u32 2147483647, %v2518
        %vm2532 = vcmp.eq.f32.partialorder %v2531, 8.507059e+37
        %v2533 = vand.u32 %v2518, 2147483648
        %v2534 = vor.u32 1.1754944e-38, %v2533
        %v2535 = vsel %vm2532, %v2534, %v2530
        %v2536 = vmul.f32 %v2513, %v2535
        %v2537 = vrcp.pop %v2521
        %v2538 = vmul.f32 %v2521, %v2537
        %v2539 = vsub.f32 1.0, %v2538
        %v2540 = vmul.f32 %v2537, %v2539
        %v2541 = vadd.f32 %v2537, %v2540
        %vm2542 = vweird.f32 %v2521
        %vm2543 = vweird.f32 %v2537
        %vm2544 = vmor %vm2542, %vm2543
        %v2545 = vsel %vm2544, %v2537, %v2541
        %v2546 = vand.u32 2147483647, %v2521
        %vm2547 = vcmp.eq.f32.partialorder %v2546, 8.507059e+37
        %v2548 = vand.u32 %v2521, 2147483648
        %v2549 = vor.u32 1.1754944e-38, %v2548
        %v2550 = vsel %vm2547, %v2549, %v2545
        %v2551 = vmul.f32 %v2515, %v2550
        %v2552 = vpack.c.bf16 %v2551, %v2536
        %2553 = vrot.lane.b32.xlu0 %v2476, 96
        %v2554 = vpop.permute.xlu0 %2553
        %v2557 = vsel %vm1934, %v2552, 0
        %2559 = vmatpush.bf16.msra.mxu0 0
        %2560 = vmatpush.bf16.msra.mxu0 0
        %2561 = vmatpush.bf16.msra.mxu0 0
        %2562 = vmatpush.bf16.msra.mxu0 0
        %2563 = vmatpush.bf16.msra.mxu0 0
        %2564 = vmatpush.bf16.msra.mxu0 0
        %2565 = vmatpush.bf16.msra.mxu0 0
        %2566 = vmatpush.bf16.msra.mxu0 %v2554
        %2567 = vmatmul.bf16.gmra.mxu0 %v2557
        %v2568 = vpop.f32.mrf.mxu0
        %v2569 = vadd.f32 0.0, %v2568
        %v2570 = vpop.f32.mrf.mxu0
        %v2571 = vadd.f32 0.0, %v2570
        %2572 = vdwg.mxu0
        %2574 = vrot.lane.b32.xlu0 %v2571, 8
        %v2575 = vpop.permute.xlu0 %2574
        %v2577 = vsel %vm1973, %v2569, %v2575
        %v2578 = vpack.c.bf16 %v2577, %v2577
        %v2580 = vperm.slane %v2433, 0
        %v2584 = vunpack.c.l.b16 %v2431
        %v2585 = vunpack.c.l.b16 %v2432
        %v2586 = vpack.c.b16 %v2585, %v2584
        %v2589 = vsel %vm1934, %v2578, 0
        %2591 = vmatpush.bf16.msra.mxu0 0
        %2592 = vmatpush.bf16.msra.mxu0 0
        %2593 = vmatpush.bf16.msra.mxu0 0
        %2594 = vmatpush.bf16.msra.mxu0 0
        %2595 = vmatpush.bf16.msra.mxu0 0
        %2596 = vmatpush.bf16.msra.mxu0 0
        %2597 = vmatpush.bf16.msra.mxu0 0
        %2598 = vmatpush.bf16.msra.mxu0 %v2586
        %2599 = vmatmul.bf16.gmra.mxu0 %v2589
        %v2600 = vpop.f32.mrf.mxu0
        %v2601 = vadd.f32 %v2580, %v2600
        %v2602 = vpop.f32.mrf.mxu0
        %2603 = vdwg.mxu0
        %v2604 = vadd.f32 %v2423, %v2601
        %v2605 = vsel %vm1934, %v2604, 0.0
        %2606 = vadd.xlane.f32.xlu0 %v2605
        %v2607 = vpop.xlane.xlu0 %2606
        %v2608 = vmul.f32 %v2607, %v2174
        %v2609 = vsub.f32 %v2604, %v2608
        %v2610 = vmul.f32 %v2609, %v2609
        %v2611 = vsel %vm1934, %v2610, 0.0
        %2612 = vadd.xlane.f32.xlu0 %v2611
        %v2613 = vpop.xlane.xlu0 %2612
        %v2614 = vmul.f32 %v2613, %v2174
        %v2615 = vadd.f32 %v2614, 1e-05
        %v2616 = vrsqrt.pop %v2615
        %v2617 = vmul.f32 %v2616, %v2615
        %v2618 = vmul.f32 %v2617, %v2616
        %v2619 = vmul.f32 0.5, %v2618
        %v2620 = vsub.f32 1.5, %v2619
        %v2621 = vmul.f32 %v2616, %v2620
        %vm2622 = vweird.f32 %v2615
        %vm2623 = vweird.f32 %v2616
        %vm2624 = vmor %vm2622, %vm2623
        %v2625 = vsel %vm2624, %v2616, %v2621
        %v2626 = vmul.f32 %v2609, %v2625
        %v2628 = vperm.slane %v2434, 0
        %v2630 = vmul.f32 %v2626, %v2628
        %v2632 = vperm.slane %v2435, 0
        %v2634 = vadd.f32 %v2630, %v2632
        %v2635 = vpack.c.bf16 %v2634, %v2634
        %v2637 = vperm.slane %v2438, 0
        %v2641 = vunpack.c.l.b16 %v2436
        %v2642 = vunpack.c.l.b16 %v2437
        %v2643 = vpack.c.b16 %v2642, %v2641
        %v2646 = vsel %vm1934, %v2635, 0
        %2648 = vmatpush.bf16.msra.mxu0 0
        %2649 = vmatpush.bf16.msra.mxu0 0
        %2650 = vmatpush.bf16.msra.mxu0 0
        %2651 = vmatpush.bf16.msra.mxu0 0
        %2652 = vmatpush.bf16.msra.mxu0 0
        %2653 = vmatpush.bf16.msra.mxu0 0
        %2654 = vmatpush.bf16.msra.mxu0 0
        %2655 = vmatpush.bf16.msra.mxu0 %v2643
        %2656 = vmatmul.bf16.gmra.mxu0 %v2646
        %v2657 = vpop.f32.mrf.mxu0
        %v2658 = vadd.f32 %v2637, %v2657
        %v2659 = vpop.f32.mrf.mxu0
        %2660 = vdwg.mxu0
        %v2661 = vmax.f32 %v2658, 0.0
        %v2662 = vpack.c.bf16 %v2661, %v2661
        %v2664 = vperm.slane %v2443, 0
        %v2670 = vunpack.c.l.b16 %v2439
        %v2671 = vunpack.c.l.b16 %v2440
        %v2672 = vunpack.c.l.b16 %v2441
        %v2673 = vunpack.c.l.b16 %v2442
        %v2674 = vpack.c.b16 %v2671, %v2670
        %v2675 = vpack.c.b16 %v2673, %v2672
        %v2679 = vsel %vm2268, %v2662, 0
        %2681 = vmatpush.bf16.msra.mxu0 0
        %2682 = vmatpush.bf16.msra.mxu0 0
        %2683 = vmatpush.bf16.msra.mxu0 0
        %2684 = vmatpush.bf16.msra.mxu0 0
        %2685 = vmatpush.bf16.msra.mxu0 0
        %2686 = vmatpush.bf16.msra.mxu0 0
        %2687 = vmatpush.bf16.msra.mxu0 %v2675
        %2688 = vmatpush.bf16.msra.mxu0 %v2674
        %2689 = vmatmul.bf16.gmra.mxu0 %v2679
        %v2690 = vpop.f32.mrf.mxu0
        %v2691 = vadd.f32 %v2664, %v2690
        %v2692 = vpop.f32.mrf.mxu0
        %2693 = vdwg.mxu0
        %v2694 = vadd.f32 %v2634, %v2691
        %v2695 = vsel %vm1934, %v2694, 0.0
        %2696 = vadd.xlane.f32.xlu0 %v2695
        %v2697 = vpop.xlane.xlu0 %2696
        %v2698 = vmul.f32 %v2697, %v2174
        %v2699 = vsub.f32 %v2694, %v2698
        %v2700 = vmul.f32 %v2699, %v2699
        %v2701 = vsel %vm1934, %v2700, 0.0
        %2702 = vadd.xlane.f32.xlu0 %v2701
        %v2703 = vpop.xlane.xlu0 %2702
        %v2704 = vmul.f32 %v2703, %v2174
        %v2705 = vadd.f32 %v2704, 1e-05
        %v2706 = vrsqrt.pop %v2705
        %v2707 = vmul.f32 %v2706, %v2705
        %v2708 = vmul.f32 %v2707, %v2706
        %v2709 = vmul.f32 0.5, %v2708
        %v2710 = vsub.f32 1.5, %v2709
        %v2711 = vmul.f32 %v2706, %v2710
        %vm2712 = vweird.f32 %v2705
        %vm2713 = vweird.f32 %v2706
        %vm2714 = vmor %vm2712, %vm2713
        %v2715 = vsel %vm2714, %v2706, %v2711
        %v2716 = vmul.f32 %v2699, %v2715
        %v2718 = vperm.slane %v2444, 0
        %v2720 = vmul.f32 %v2716, %v2718
        %v2722 = vperm.slane %v2445, 0
        %v2724 = vadd.f32 %v2720, %v2722
        %v2725 = vld [vmem:[%s19] sm:$0xf]
        %v2726 = vpack.c.bf16 %v2341, %v2340
        %v2727 = vld [vmem:[%s21] sm:$0xff]
        %2729 = vset.pattern.permute.xlu0 0
        %2730 = vperm.xlu0 %2729, %v2727
        %v2731 = vpop.permute.xlu0 %2730
        %vm2733 = vcmask 80896
        %v2735 = vsel %vm2733, %v2725, 0
        %vm2737 = vcmask 1044480
        %v2739 = vsel %vm2737, %v2726, 0
        %2741 = vmatpush.bf16.msra.mxu0 0
        %2742 = vmatpush.bf16.msra.mxu0 0
        %2743 = vmatpush.bf16.msra.mxu0 0
        %2744 = vmatpush.bf16.msra.mxu0 0
        %2745 = vmatpush.bf16.msra.mxu0 0
        %2746 = vmatpush.bf16.msra.mxu0 0
        %2747 = vmatpush.bf16.msra.mxu0 0
        %2748 = vmatpush.bf16.msra.mxu0 %v2739
        %2749 = vmatmul.bf16.gmra.mxu0 %v2735
        %v2750 = vpop.f32.mrf.mxu0
        %v2751 = vadd.f32 %v2731, %v2750
        %v2752 = vpop.f32.mrf.mxu0
        %2753 = vdwg.mxu0
        %2755 = vrot.lane.b32.xlu0 %v2724, 16
        %v2756 = vpop.permute.xlu0 %2755
        %v2758 = vsel %vm1934, %v2751, %v2756
        %v2759 = vld [vmem:[%s27] sm:$0xff]
        %v2760 = vld [vmem:[%s27 + $0x8] sm:$0xff]
        %v2761 = vld [vmem:[%s27 + $0x10] sm:$0xff]
        %v2762 = vld [vmem:[%s27 + $0x18] sm:$0xff]
        %v2763 = vld [vmem:[%s77] sm:$0xf]
        %v2764 = vld [vmem:[%s77 + $0x4] sm:$0xf]
        %v2765 = vld [vmem:[%s77 + $0x8] sm:$0xf]
        %v2766 = vld [vmem:[%s77 + $0xc] sm:$0xf]
        %v2767 = vld [vmem:[#allocation7] sm:$0x1]
        %v2768 = vld [vmem:[%s81] sm:$0xf]
        %v2769 = vld [vmem:[%s81 + $0x4] sm:$0xf]
        %v2770 = vld [vmem:[%s81 + $0x8] sm:$0xf]
        %v2771 = vld [vmem:[%s81 + $0xc] sm:$0xf]
        %v2772 = vld [vmem:[#allocation8] sm:$0x1]
        %v2773 = vld [vmem:[#allocation10] sm:$0x1]
        %v2774 = vld [vmem:[#allocation11] sm:$0x1]
        %v2775 = vld [vmem:[%s89] sm:$0xf]
        %v2776 = vld [vmem:[%s89 + $0x4] sm:$0xf]
        %v2777 = vld [vmem:[%s89 + $0x8] sm:$0xf]
        %v2778 = vld [vmem:[%s89 + $0xc] sm:$0xf]
        %v2779 = vld [vmem:[#allocation13] sm:$0x1]
        %v2780 = vld [vmem:[%s93] sm:$0xf]
        %v2781 = vld [vmem:[%s93 + $0x4] sm:$0xf]
        %v2782 = vld [vmem:[%s93 + $0x8] sm:$0xf]
        %v2783 = vld [vmem:[%s93 + $0xc] sm:$0xf]
        %v2784 = vld [vmem:[%s93 + $0x10] sm:$0xf]
        %v2785 = vld [vmem:[%s93 + $0x14] sm:$0xf]
        %v2786 = vld [vmem:[%s93 + $0x18] sm:$0xf]
        %v2787 = vld [vmem:[%s93 + $0x1c] sm:$0xf]
        %v2788 = vld [vmem:[#allocation14] sm:$0x1]
        %v2789 = vld [vmem:[#allocation16] sm:$0x1]
        %v2790 = vld [vmem:[#allocation17] sm:$0x1]
        %v2791 = vpack.c.bf16 %v2758, %v2758
        %v2793 = vperm.slane %v2767, 0
        %v2799 = vunpack.c.l.b16 %v2763
        %v2800 = vunpack.c.l.b16 %v2764
        %v2801 = vunpack.c.l.b16 %v2765
        %v2802 = vunpack.c.l.b16 %v2766
        %v2803 = vpack.c.b16 %v2800, %v2799
        %v2804 = vpack.c.b16 %v2802, %v2801
        %v2808 = vsel %vm2268, %v2791, 0
        %2810 = vmatpush.bf16.msra.mxu0 0
        %2811 = vmatpush.bf16.msra.mxu0 0
        %2812 = vmatpush.bf16.msra.mxu0 0
        %2813 = vmatpush.bf16.msra.mxu0 0
        %2814 = vmatpush.bf16.msra.mxu0 0
        %2815 = vmatpush.bf16.msra.mxu0 0
        %2816 = vmatpush.bf16.msra.mxu0 %v2804
        %2817 = vmatpush.bf16.msra.mxu0 %v2803
        %2818 = vmatmul.bf16.gmra.mxu0 %v2808
        %v2819 = vpop.f32.mrf.mxu0
        %v2820 = vadd.f32 %v2793, %v2819
        %v2821 = vpop.f32.mrf.mxu0
        %2822 = vdwg.mxu0
        %2824 = vrot.lane.b32.xlu0 %v2820, 120
        %v2825 = vpop.permute.xlu0 %2824
        %2827 = vrot.lane.b32.xlu0 %v2820, 112
        %v2828 = vpop.permute.xlu0 %2827
        %2830 = vrot.lane.b32.xlu0 %v2820, 104
        %v2831 = vpop.permute.xlu0 %2830
        %v2833 = vpack.c.bf16 %v2825, %v2820
        %v2834 = vpack.c.bf16 %v2831, %v2828
        %2837 = vrot.lane.b32.xlu0 %v2833, 96
        %v2838 = vpop.permute.xlu0 %2837
        %2839 = vrot.lane.b32.xlu0 %v2834, 96
        %v2840 = vpop.permute.xlu0 %2839
        %v2842 = vsel %vm1973, %v2833, 0
        %v2845 = vsel %vm1973, %v2834, 0
        %v2848 = vsel %vm1973, %v2838, 0
        %v2851 = vsel %vm1973, %v2840, 0
        %2853 = vmatpush.bf16.xpose.msra.mxu0 0
        %2854 = vmatpush.bf16.xpose.msra.mxu0 0
        %2855 = vmatpush.bf16.xpose.msra.mxu0 0
        %2856 = vmatpush.bf16.xpose.msra.mxu0 0
        %2857 = vmatpush.bf16.xpose.msra.mxu0 0
        %2858 = vmatpush.bf16.xpose.msra.mxu0 0
        %2859 = vmatpush.bf16.xpose.msra.mxu0 %v2851
        %2860 = vmatpush.bf16.xpose.msra.mxu0 %v2848
        %2861 = vmatmul.bf16.gmra.mxu0 %v2842
        %v2862 = vpop.f32.mrf.mxu0
        %v2863 = vadd.f32 0.0, %v2862
        %v2864 = vpop.f32.mrf.mxu0
        %v2865 = vadd.f32 0.0, %v2864
        %2866 = vmatmul.bf16.gmra.mxu0 %v2845
        %v2867 = vpop.f32.mrf.mxu0
        %v2868 = vadd.f32 0.0, %v2867
        %v2869 = vpop.f32.mrf.mxu0
        %v2870 = vadd.f32 0.0, %v2869
        %2871 = vdwg.mxu0
        %v2872 = vmul.f32 %v2863, 0.35355338
        %v2873 = vmul.f32 %v2865, 0.35355338
        %v2874 = vmul.f32 %v2868, 0.35355338
        %v2875 = vmul.f32 %v2870, 0.35355338
        %v2876 = vadd.f32 %v2872, %v2759
        %v2877 = vadd.f32 %v2873, %v2760
        %v2878 = vadd.f32 %v2874, %v2761
        %v2879 = vadd.f32 %v2875, %v2762
        %v2880 = vsel %vm2268, %v2876, -inf
        %2881 = vmax.xlane.f32.xlu0 %v2880
        %v2882 = vpop.xlane.xlu0 %2881
        %v2883 = vsel %vm2268, %v2877, -inf
        %2884 = vmax.xlane.f32.xlu0 %v2883
        %v2885 = vpop.xlane.xlu0 %2884
        %v2886 = vsel %vm2268, %v2878, -inf
        %2887 = vmax.xlane.f32.xlu0 %v2886
        %v2888 = vpop.xlane.xlu0 %2887
        %v2889 = vsel %vm2268, %v2879, -inf
        %2890 = vmax.xlane.f32.xlu0 %v2889
        %v2891 = vpop.xlane.xlu0 %2890
        %v2892 = vsub.f32 %v2876, %v2882
        %v2893 = vsub.f32 %v2877, %v2885
        %v2894 = vsub.f32 %v2878, %v2888
        %v2895 = vsub.f32 %v2879, %v2891
        %v2896 = vmul.f32 %v2892, 1.442695
        %v2897 = vpow.pop %v2896
        %v2898 = vmul.f32 %v2893, 1.442695
        %v2899 = vpow.pop %v2898
        %v2900 = vmul.f32 %v2894, 1.442695
        %v2901 = vpow.pop %v2900
        %v2902 = vmul.f32 %v2895, 1.442695
        %v2903 = vpow.pop %v2902
        %v2904 = vsel %vm2268, %v2897, 0.0
        %2905 = vadd.xlane.f32.xlu0 %v2904
        %v2906 = vpop.xlane.xlu0 %2905
        %v2907 = vsel %vm2268, %v2899, 0.0
        %2908 = vadd.xlane.f32.xlu0 %v2907
        %v2909 = vpop.xlane.xlu0 %2908
        %v2910 = vsel %vm2268, %v2901, 0.0
        %2911 = vadd.xlane.f32.xlu0 %v2910
        %v2912 = vpop.xlane.xlu0 %2911
        %v2913 = vsel %vm2268, %v2903, 0.0
        %2914 = vadd.xlane.f32.xlu0 %v2913
        %v2915 = vpop.xlane.xlu0 %2914
        %v2916 = vrcp.pop %v2906
        %v2917 = vmul.f32 %v2906, %v2916
        %v2918 = vsub.f32 1.0, %v2917
        %v2919 = vmul.f32 %v2916, %v2918
        %v2920 = vadd.f32 %v2916, %v2919
        %vm2921 = vweird.f32 %v2906
        %vm2922 = vweird.f32 %v2916
        %vm2923 = vmor %vm2921, %vm2922
        %v2924 = vsel %vm2923, %v2916, %v2920
        %v2925 = vand.u32 2147483647, %v2906
        %vm2926 = vcmp.eq.f32.partialorder %v2925, 8.507059e+37
        %v2927 = vand.u32 %v2906, 2147483648
        %v2928 = vor.u32 1.1754944e-38, %v2927
        %v2929 = vsel %vm2926, %v2928, %v2924
        %v2930 = vmul.f32 %v2897, %v2929
        %v2931 = vrcp.pop %v2909
        %v2932 = vmul.f32 %v2909, %v2931
        %v2933 = vsub.f32 1.0, %v2932
        %v2934 = vmul.f32 %v2931, %v2933
        %v2935 = vadd.f32 %v2931, %v2934
        %vm2936 = vweird.f32 %v2909
        %vm2937 = vweird.f32 %v2931
        %vm2938 = vmor %vm2936, %vm2937
        %v2939 = vsel %vm2938, %v2931, %v2935
        %v2940 = vand.u32 2147483647, %v2909
        %vm2941 = vcmp.eq.f32.partialorder %v2940, 8.507059e+37
        %v2942 = vand.u32 %v2909, 2147483648
        %v2943 = vor.u32 1.1754944e-38, %v2942
        %v2944 = vsel %vm2941, %v2943, %v2939
        %v2945 = vmul.f32 %v2899, %v2944
        %v2946 = vrcp.pop %v2912
        %v2947 = vmul.f32 %v2912, %v2946
        %v2948 = vsub.f32 1.0, %v2947
        %v2949 = vmul.f32 %v2946, %v2948
        %v2950 = vadd.f32 %v2946, %v2949
        %vm2951 = vweird.f32 %v2912
        %vm2952 = vweird.f32 %v2946
        %vm2953 = vmor %vm2951, %vm2952
        %v2954 = vsel %vm2953, %v2946, %v2950
        %v2955 = vand.u32 2147483647, %v2912
        %vm2956 = vcmp.eq.f32.partialorder %v2955, 8.507059e+37
        %v2957 = vand.u32 %v2912, 2147483648
        %v2958 = vor.u32 1.1754944e-38, %v2957
        %v2959 = vsel %vm2956, %v2958, %v2954
        %v2960 = vmul.f32 %v2901, %v2959
        %v2961 = vrcp.pop %v2915
        %v2962 = vmul.f32 %v2915, %v2961
        %v2963 = vsub.f32 1.0, %v2962
        %v2964 = vmul.f32 %v2961, %v2963
        %v2965 = vadd.f32 %v2961, %v2964
        %vm2966 = vweird.f32 %v2915
        %vm2967 = vweird.f32 %v2961
        %vm2968 = vmor %vm2966, %vm2967
        %v2969 = vsel %vm2968, %v2961, %v2965
        %v2970 = vand.u32 2147483647, %v2915
        %vm2971 = vcmp.eq.f32.partialorder %v2970, 8.507059e+37
        %v2972 = vand.u32 %v2915, 2147483648
        %v2973 = vor.u32 1.1754944e-38, %v2972
        %v2974 = vsel %vm2971, %v2973, %v2969
        %v2975 = vmul.f32 %v2903, %v2974
        %v2976 = vpack.c.bf16 %v2945, %v2930
        %v2977 = vpack.c.bf16 %v2975, %v2960
        %2978 = vrot.lane.b32.xlu0 %v2833, 64
        %v2979 = vpop.permute.xlu0 %2978
        %2980 = vrot.lane.b32.xlu0 %v2834, 64
        %v2981 = vpop.permute.xlu0 %2980
        %v2985 = vsel %vm2268, %v2976, 0
        %v2988 = vsel %vm2268, %v2977, 0
        %2990 = vmatpush.bf16.msra.mxu0 0
        %2991 = vmatpush.bf16.msra.mxu0 0
        %2992 = vmatpush.bf16.msra.mxu0 0
        %2993 = vmatpush.bf16.msra.mxu0 0
        %2994 = vmatpush.bf16.msra.mxu0 0
        %2995 = vmatpush.bf16.msra.mxu0 0
        %2996 = vmatpush.bf16.msra.mxu0 %v2981
        %2997 = vmatpush.bf16.msra.mxu0 %v2979
        %2998 = vmatmul.bf16.gmra.mxu0 %v2985
        %v2999 = vpop.f32.mrf.mxu0
        %v3000 = vadd.f32 0.0, %v2999
        %v3001 = vpop.f32.mrf.mxu0
        %v3002 = vadd.f32 0.0, %v3001
        %3003 = vmatmul.bf16.gmra.mxu0 %v2988
        %v3004 = vpop.f32.mrf.mxu0
        %v3005 = vadd.f32 0.0, %v3004
        %v3006 = vpop.f32.mrf.mxu0
        %v3007 = vadd.f32 0.0, %v3006
        %3008 = vdwg.mxu0
        %3010 = vrot.lane.b32.xlu0 %v3002, 8
        %v3011 = vpop.permute.xlu0 %3010
        %3014 = vrot.lane.b32.xlu0 %v3005, 16
        %v3015 = vpop.permute.xlu0 %3014
        %3018 = vrot.lane.b32.xlu0 %v3007, 24
        %v3019 = vpop.permute.xlu0 %3018
        %v3021 = vsel %vm1973, %v3000, %v3011
        %v3022 = vsel %vm1934, %v3021, %v3015
        %vm3023 = vcmask 195584
        %v3024 = vsel %vm3023, %v3022, %v3019
        %v3025 = vpack.c.bf16 %v3024, %v3024
        %v3027 = vperm.slane %v2772, 0
        %v3033 = vunpack.c.l.b16 %v2768
        %v3034 = vunpack.c.l.b16 %v2769
        %v3035 = vunpack.c.l.b16 %v2770
        %v3036 = vunpack.c.l.b16 %v2771
        %v3037 = vpack.c.b16 %v3034, %v3033
        %v3038 = vpack.c.b16 %v3036, %v3035
        %v3042 = vsel %vm2268, %v3025, 0
        %3044 = vmatpush.bf16.msra.mxu0 0
        %3045 = vmatpush.bf16.msra.mxu0 0
        %3046 = vmatpush.bf16.msra.mxu0 0
        %3047 = vmatpush.bf16.msra.mxu0 0
        %3048 = vmatpush.bf16.msra.mxu0 0
        %3049 = vmatpush.bf16.msra.mxu0 0
        %3050 = vmatpush.bf16.msra.mxu0 %v3038
        %3051 = vmatpush.bf16.msra.mxu0 %v3037
        %3052 = vmatmul.bf16.gmra.mxu0 %v3042
        %v3053 = vpop.f32.mrf.mxu0
        %v3054 = vadd.f32 %v3027, %v3053
        %v3055 = vpop.f32.mrf.mxu0
        %3056 = vdwg.mxu0
        %v3057 = vadd.f32 %v2758, %v3054
        %v3058 = vsel %vm2268, %v3057, 0.0
        %3059 = vadd.xlane.f32.xlu0 %v3058
        %v3060 = vpop.xlane.xlu0 %3059
        %v3061 = vrcp.pop 32.0
        %v3062 = vmul.f32 32.0, %v3061
        %v3063 = vsub.f32 1.0, %v3062
        %v3064 = vmul.f32 %v3061, %v3063
        %v3065 = vadd.f32 %v3061, %v3064
        %vm3066 = vweird.f32 %v3061
        %v3067 = vsel %vm3066, %v3061, %v3065
        %v3068 = vmul.f32 %v3060, %v3067
        %v3069 = vsub.f32 %v3057, %v3068
        %v3070 = vmul.f32 %v3069, %v3069
        %v3071 = vsel %vm2268, %v3070, 0.0
        %3072 = vadd.xlane.f32.xlu0 %v3071
        %v3073 = vpop.xlane.xlu0 %3072
        %v3074 = vmul.f32 %v3073, %v3067
        %v3075 = vadd.f32 %v3074, 1e-05
        %v3076 = vrsqrt.pop %v3075
        %v3077 = vmul.f32 %v3076, %v3075
        %v3078 = vmul.f32 %v3077, %v3076
        %v3079 = vmul.f32 0.5, %v3078
        %v3080 = vsub.f32 1.5, %v3079
        %v3081 = vmul.f32 %v3076, %v3080
        %vm3082 = vweird.f32 %v3075
        %vm3083 = vweird.f32 %v3076
        %vm3084 = vmor %vm3082, %vm3083
        %v3085 = vsel %vm3084, %v3076, %v3081
        %v3086 = vmul.f32 %v3069, %v3085
        %v3088 = vperm.slane %v2773, 0
        %v3090 = vmul.f32 %v3086, %v3088
        %v3092 = vperm.slane %v2774, 0
        %v3094 = vadd.f32 %v3090, %v3092
        %v3095 = vpack.c.bf16 %v3094, %v3094
        %v3097 = vperm.slane %v2779, 0
        %v3103 = vunpack.c.l.b16 %v2775
        %v3104 = vunpack.c.l.b16 %v2776
        %v3105 = vunpack.c.l.b16 %v2777
        %v3106 = vunpack.c.l.b16 %v2778
        %v3107 = vpack.c.b16 %v3104, %v3103
        %v3108 = vpack.c.b16 %v3106, %v3105
        %v3112 = vsel %vm2268, %v3095, 0
        %3114 = vmatpush.bf16.msra.mxu0 0
        %3115 = vmatpush.bf16.msra.mxu0 0
        %3116 = vmatpush.bf16.msra.mxu0 0
        %3117 = vmatpush.bf16.msra.mxu0 0
        %3118 = vmatpush.bf16.msra.mxu0 0
        %3119 = vmatpush.bf16.msra.mxu0 0
        %3120 = vmatpush.bf16.msra.mxu0 %v3108
        %3121 = vmatpush.bf16.msra.mxu0 %v3107
        %3122 = vmatmul.bf16.gmra.mxu0 %v3112
        %v3123 = vpop.f32.mrf.mxu0
        %v3124 = vadd.f32 %v3097, %v3123
        %v3125 = vpop.f32.mrf.mxu0
        %3126 = vdwg.mxu0
        %v3127 = vmax.f32 %v3124, 0.0
        %v3128 = vpack.c.bf16 %v3127, %v3127
        %v3130 = vperm.slane %v2788, 0
        %v3140 = vunpack.c.l.b16 %v2780
        %v3141 = vunpack.c.l.b16 %v2781
        %v3142 = vunpack.c.l.b16 %v2782
        %v3143 = vunpack.c.l.b16 %v2783
        %v3144 = vunpack.c.l.b16 %v2784
        %v3145 = vunpack.c.l.b16 %v2785
        %v3146 = vunpack.c.l.b16 %v2786
        %v3147 = vunpack.c.l.b16 %v2787
        %v3148 = vpack.c.b16 %v3141, %v3140
        %v3149 = vpack.c.b16 %v3143, %v3142
        %v3150 = vpack.c.b16 %v3145, %v3144
        %v3151 = vpack.c.b16 %v3147, %v3146
        %v3157 = vsel %vm2409, %v3128, 0
        %3159 = vmatpush.bf16.msra.mxu0 0
        %3160 = vmatpush.bf16.msra.mxu0 0
        %3161 = vmatpush.bf16.msra.mxu0 0
        %3162 = vmatpush.bf16.msra.mxu0 0
        %3163 = vmatpush.bf16.msra.mxu0 %v3151
        %3164 = vmatpush.bf16.msra.mxu0 %v3150
        %3165 = vmatpush.bf16.msra.mxu0 %v3149
        %3166 = vmatpush.bf16.msra.mxu0 %v3148
        %3167 = vmatmul.bf16.gmra.mxu0 %v3157
        %v3168 = vpop.f32.mrf.mxu0
        %v3169 = vadd.f32 %v3130, %v3168
        %v3170 = vpop.f32.mrf.mxu0
        %3171 = vdwg.mxu0
        %v3172 = vadd.f32 %v3094, %v3169
        %v3173 = vsel %vm2268, %v3172, 0.0
        %3174 = vadd.xlane.f32.xlu0 %v3173
        %v3175 = vpop.xlane.xlu0 %3174
        %v3176 = vmul.f32 %v3175, %v3067
        %v3177 = vsub.f32 %v3172, %v3176
        %v3178 = vmul.f32 %v3177, %v3177
        %v3179 = vsel %vm2268, %v3178, 0.0
        %3180 = vadd.xlane.f32.xlu0 %v3179
        %v3181 = vpop.xlane.xlu0 %3180
        %v3182 = vmul.f32 %v3181, %v3067
        %v3183 = vadd.f32 %v3182, 1e-05
        %v3184 = vrsqrt.pop %v3183
        %v3185 = vmul.f32 %v3184, %v3183
        %v3186 = vmul.f32 %v3185, %v3184
        %v3187 = vmul.f32 0.5, %v3186
        %v3188 = vsub.f32 1.5, %v3187
        %v3189 = vmul.f32 %v3184, %v3188
        %vm3190 = vweird.f32 %v3183
        %vm3191 = vweird.f32 %v3184
        %vm3192 = vmor %vm3190, %vm3191
        %v3193 = vsel %vm3192, %v3184, %v3189
        %v3194 = vmul.f32 %v3177, %v3193
        %v3196 = vperm.slane %v2789, 0
        %v3198 = vmul.f32 %v3194, %v3196
        %v3200 = vperm.slane %v2790, 0
        %v3202 = vadd.f32 %v3198, %v3200
        %v3203 = vld [vmem:[%s103] sm:$0xf]
        %v3204 = vpack.c.bf16 %v3202, %v3202
        %v3205 = vld [vmem:[#allocation19] sm:$0xff]
        %v3206 = vld [vmem:[#allocation19 + $0x8] sm:$0xff]
        %v3207 = vld [vmem:[#allocation19 + $0x10] sm:$0xff]
        %v3208 = vld [vmem:[#allocation19 + $0x18] sm:$0xff]
        %v3209 = vld [vmem:[#allocation19 + $0x20] sm:$0xff]
        %v3210 = vld [vmem:[#allocation19 + $0x28] sm:$0xff]
        %v3211 = vld [vmem:[#allocation19 + $0x30] sm:$0xff]
        %v3212 = vld [vmem:[#allocation19 + $0x38] sm:$0xff]
        %v3221 = vunpack.c.l.b16 %v3205
        %v3222 = vunpack.c.h.b16 %v3205
        %v3223 = vunpack.c.l.b16 %v3206
        %v3224 = vunpack.c.h.b16 %v3206
        %v3225 = vunpack.c.l.b16 %v3207
        %v3226 = vunpack.c.h.b16 %v3207
        %v3227 = vunpack.c.l.b16 %v3208
        %v3228 = vunpack.c.h.b16 %v3208
        %v3229 = vunpack.c.l.b16 %v3209
        %v3230 = vunpack.c.h.b16 %v3209
        %v3231 = vunpack.c.l.b16 %v3210
        %v3232 = vunpack.c.h.b16 %v3210
        %v3233 = vunpack.c.l.b16 %v3211
        %v3234 = vunpack.c.h.b16 %v3211
        %v3235 = vunpack.c.l.b16 %v3212
        %v3236 = vunpack.c.h.b16 %v3212
        %v3237 = vpack.c.b16 %v3225, %v3221
        %v3238 = vpack.c.b16 %v3226, %v3222
        %v3239 = vpack.c.b16 %v3227, %v3223
        %v3240 = vpack.c.b16 %v3228, %v3224
        %v3241 = vpack.c.b16 %v3233, %v3229
        %v3242 = vpack.c.b16 %v3234, %v3230
        %v3243 = vpack.c.b16 %v3235, %v3231
        %v3244 = vpack.c.b16 %v3236, %v3232
        %v3254 = vsel %vm2268, %v3204, 0
        %3256 = vmatpush.bf16.msra.mxu0 0
        %3257 = vmatpush.bf16.msra.mxu0 0
        %3258 = vmatpush.bf16.msra.mxu0 0
        %3259 = vmatpush.bf16.msra.mxu0 0
        %3260 = vmatpush.bf16.msra.mxu0 0
        %3261 = vmatpush.bf16.msra.mxu0 0
        %3262 = vmatpush.bf16.msra.mxu0 %v3241
        %3263 = vmatpush.bf16.msra.mxu0 %v3237
        %3264 = vmatmul.bf16.gmra.mxu0 %v3254
        %v3265 = vpop.f32.mrf.mxu0
        %v3266 = vadd.f32 0.0, %v3265
        %v3267 = vpop.f32.mrf.mxu0
        %3268 = vdwg.mxu0
        %3269 = vmatpush.bf16.msra.mxu0 0
        %3270 = vmatpush.bf16.msra.mxu0 0
        %3271 = vmatpush.bf16.msra.mxu0 0
        %3272 = vmatpush.bf16.msra.mxu0 0
        %3273 = vmatpush.bf16.msra.mxu0 0
        %3274 = vmatpush.bf16.msra.mxu0 0
        %3275 = vmatpush.bf16.msra.mxu0 %v3242
        %3276 = vmatpush.bf16.msra.mxu0 %v3238
        %3277 = vmatmul.bf16.gmra.mxu0 %v3254
        %v3278 = vpop.f32.mrf.mxu0
        %v3279 = vadd.f32 0.0, %v3278
        %v3280 = vpop.f32.mrf.mxu0
        %3281 = vdwg.mxu0
        %3282 = vmatpush.bf16.msra.mxu0 0
        %3283 = vmatpush.bf16.msra.mxu0 0
        %3284 = vmatpush.bf16.msra.mxu0 0
        %3285 = vmatpush.bf16.msra.mxu0 0
        %3286 = vmatpush.bf16.msra.mxu0 0
        %3287 = vmatpush.bf16.msra.mxu0 0
        %3288 = vmatpush.bf16.msra.mxu0 %v3243
        %3289 = vmatpush.bf16.msra.mxu0 %v3239
        %3290 = vmatmul.bf16.gmra.mxu0 %v3254
        %v3291 = vpop.f32.mrf.mxu0
        %v3292 = vadd.f32 0.0, %v3291
        %v3293 = vpop.f32.mrf.mxu0
        %3294 = vdwg.mxu0
        %3295 = vmatpush.bf16.msra.mxu0 0
        %3296 = vmatpush.bf16.msra.mxu0 0
        %3297 = vmatpush.bf16.msra.mxu0 0
        %3298 = vmatpush.bf16.msra.mxu0 0
        %3299 = vmatpush.bf16.msra.mxu0 0
        %3300 = vmatpush.bf16.msra.mxu0 0
        %3301 = vmatpush.bf16.msra.mxu0 %v3244
        %3302 = vmatpush.bf16.msra.mxu0 %v3240
        %3303 = vmatmul.bf16.gmra.mxu0 %v3254
        %v3304 = vpop.f32.mrf.mxu0
        %v3305 = vadd.f32 0.0, %v3304
        %v3306 = vpop.f32.mrf.mxu0
        %3307 = vdwg.mxu0
        %v3312 = vrot.slane %v3279, 7
        %v3313 = vrot.slane %v3292, 6
        %v3314 = vrot.slane %v3305, 5
        %vm3315 = vcmask 1040384
        %v3316 = vsel %vm3315, %v3266, %v3312
        %vm3317 = vcmask 1042434
        %v3318 = vsel %vm3317, %v3313, %v3314
        %v3319 = vsel %vm1954, %v3316, %v3318
        %v3321 = vadd.f32 %v3203, %v3319
        %s3322 = scalar_lea.vmem [#allocation19], 64
        %v3323 = vld [vmem:[%s3322] sm:$0xff]
        %v3324 = vld [vmem:[%s3322 + $0x8] sm:$0xff]
        %v3325 = vld [vmem:[%s3322 + $0x10] sm:$0xff]
        %v3326 = vld [vmem:[%s3322 + $0x18] sm:$0xff]
        %v3327 = vld [vmem:[%s3322 + $0x20] sm:$0xff]
        %v3328 = vld [vmem:[%s3322 + $0x28] sm:$0xff]
        %v3329 = vld [vmem:[%s3322 + $0x30] sm:$0xff]
        %v3330 = vld [vmem:[%s3322 + $0x38] sm:$0xff]
        %v3331 = vshrl.u32 %v3204, 16
        %v3341 = vunpack.c.l.b16 %v3323
        %v3342 = vunpack.c.h.b16 %v3323
        %v3343 = vunpack.c.l.b16 %v3324
        %v3344 = vunpack.c.h.b16 %v3324
        %v3345 = vunpack.c.l.b16 %v3325
        %v3346 = vunpack.c.h.b16 %v3325
        %v3347 = vunpack.c.l.b16 %v3326
        %v3348 = vunpack.c.h.b16 %v3326
        %v3349 = vunpack.c.l.b16 %v3327
        %v3350 = vunpack.c.h.b16 %v3327
        %v3351 = vunpack.c.l.b16 %v3328
        %v3352 = vunpack.c.h.b16 %v3328
        %v3353 = vunpack.c.l.b16 %v3329
        %v3354 = vunpack.c.h.b16 %v3329
        %v3355 = vunpack.c.l.b16 %v3330
        %v3356 = vunpack.c.h.b16 %v3330
        %v3357 = vpack.c.b16 %v3345, %v3341
        %v3358 = vpack.c.b16 %v3346, %v3342
        %v3359 = vpack.c.b16 %v3347, %v3343
        %v3360 = vpack.c.b16 %v3348, %v3344
        %v3361 = vpack.c.b16 %v3353, %v3349
        %v3362 = vpack.c.b16 %v3354, %v3350
        %v3363 = vpack.c.b16 %v3355, %v3351
        %v3364 = vpack.c.b16 %v3356, %v3352
        %v3374 = vsel %vm2268, %v3331, 0
        %3376 = vmatpush.bf16.msra.mxu0 0
        %3377 = vmatpush.bf16.msra.mxu0 0
        %3378 = vmatpush.bf16.msra.mxu0 0
        %3379 = vmatpush.bf16.msra.mxu0 0
        %3380 = vmatpush.bf16.msra.mxu0 0
        %3381 = vmatpush.bf16.msra.mxu0 0
        %3382 = vmatpush.bf16.msra.mxu0 %v3361
        %3383 = vmatpush.bf16.msra.mxu0 %v3357
        %3384 = vmatmul.bf16.gmra.mxu0 %v3374
        %v3385 = vpop.f32.mrf.mxu0
        %v3386 = vadd.f32 0.0, %v3385
        %v3387 = vpop.f32.mrf.mxu0
        %3388 = vdwg.mxu0
        %3389 = vmatpush.bf16.msra.mxu0 0
        %3390 = vmatpush.bf16.msra.mxu0 0
        %3391 = vmatpush.bf16.msra.mxu0 0
        %3392 = vmatpush.bf16.msra.mxu0 0
        %3393 = vmatpush.bf16.msra.mxu0 0
        %3394 = vmatpush.bf16.msra.mxu0 0
        %3395 = vmatpush.bf16.msra.mxu0 %v3362
        %3396 = vmatpush.bf16.msra.mxu0 %v3358
        %3397 = vmatmul.bf16.gmra.mxu0 %v3374
        %v3398 = vpop.f32.mrf.mxu0
        %v3399 = vadd.f32 0.0, %v3398
        %v3400 = vpop.f32.mrf.mxu0
        %3401 = vdwg.mxu0
        %3402 = vmatpush.bf16.msra.mxu0 0
        %3403 = vmatpush.bf16.msra.mxu0 0
        %3404 = vmatpush.bf16.msra.mxu0 0
        %3405 = vmatpush.bf16.msra.mxu0 0
        %3406 = vmatpush.bf16.msra.mxu0 0
        %3407 = vmatpush.bf16.msra.mxu0 0
        %3408 = vmatpush.bf16.msra.mxu0 %v3363
        %3409 = vmatpush.bf16.msra.mxu0 %v3359
        %3410 = vmatmul.bf16.gmra.mxu0 %v3374
        %v3411 = vpop.f32.mrf.mxu0
        %v3412 = vadd.f32 0.0, %v3411
        %v3413 = vpop.f32.mrf.mxu0
        %3414 = vdwg.mxu0
        %3415 = vmatpush.bf16.msra.mxu0 0
        %3416 = vmatpush.bf16.msra.mxu0 0
        %3417 = vmatpush.bf16.msra.mxu0 0
        %3418 = vmatpush.bf16.msra.mxu0 0
        %3419 = vmatpush.bf16.msra.mxu0 0
        %3420 = vmatpush.bf16.msra.mxu0 0
        %3421 = vmatpush.bf16.msra.mxu0 %v3364
        %3422 = vmatpush.bf16.msra.mxu0 %v3360
        %3423 = vmatmul.bf16.gmra.mxu0 %v3374
        %v3424 = vpop.f32.mrf.mxu0
        %v3425 = vadd.f32 0.0, %v3424
        %v3426 = vpop.f32.mrf.mxu0
        %3427 = vdwg.mxu0
        %v3432 = vrot.slane %v3399, 7
        %v3433 = vrot.slane %v3412, 6
        %v3434 = vrot.slane %v3425, 5
        %v3435 = vsel %vm3315, %v3386, %v3432
        %v3436 = vsel %vm3317, %v3433, %v3434
        %v3437 = vsel %vm1954, %v3435, %v3436
        %v3439 = vadd.f32 %v3321, %v3437
        %s3440 = scalar_lea.vmem [#allocation19], 128
        %v3441 = vld [vmem:[%s3440] sm:$0xff]
        %v3442 = vld [vmem:[%s3440 + $0x8] sm:$0xff]
        %v3443 = vld [vmem:[%s3440 + $0x10] sm:$0xff]
        %v3444 = vld [vmem:[%s3440 + $0x18] sm:$0xff]
        %v3445 = vld [vmem:[%s3440 + $0x20] sm:$0xff]
        %v3446 = vld [vmem:[%s3440 + $0x28] sm:$0xff]
        %v3447 = vld [vmem:[%s3440 + $0x30] sm:$0xff]
        %v3448 = vld [vmem:[%s3440 + $0x38] sm:$0xff]
        %v3450 = vrot.slane %v3204, 1
        %v3459 = vunpack.c.l.b16 %v3441
        %v3460 = vunpack.c.h.b16 %v3441
        %v3461 = vunpack.c.l.b16 %v3442
        %v3462 = vunpack.c.h.b16 %v3442
        %v3463 = vunpack.c.l.b16 %v3443
        %v3464 = vunpack.c.h.b16 %v3443
        %v3465 = vunpack.c.l.b16 %v3444
        %v3466 = vunpack.c.h.b16 %v3444
        %v3467 = vunpack.c.l.b16 %v3445
        %v3468 = vunpack.c.h.b16 %v3445
        %v3469 = vunpack.c.l.b16 %v3446
        %v3470 = vunpack.c.h.b16 %v3446
        %v3471 = vunpack.c.l.b16 %v3447
        %v3472 = vunpack.c.h.b16 %v3447
        %v3473 = vunpack.c.l.b16 %v3448
        %v3474 = vunpack.c.h.b16 %v3448
        %v3475 = vpack.c.b16 %v3463, %v3459
        %v3476 = vpack.c.b16 %v3464, %v3460
        %v3477 = vpack.c.b16 %v3465, %v3461
        %v3478 = vpack.c.b16 %v3466, %v3462
        %v3479 = vpack.c.b16 %v3471, %v3467
        %v3480 = vpack.c.b16 %v3472, %v3468
        %v3481 = vpack.c.b16 %v3473, %v3469
        %v3482 = vpack.c.b16 %v3474, %v3470
        %v3492 = vsel %vm2268, %v3450, 0
        %3494 = vmatpush.bf16.msra.mxu0 0
        %3495 = vmatpush.bf16.msra.mxu0 0
        %3496 = vmatpush.bf16.msra.mxu0 0
        %3497 = vmatpush.bf16.msra.mxu0 0
        %3498 = vmatpush.bf16.msra.mxu0 0
        %3499 = vmatpush.bf16.msra.mxu0 0
        %3500 = vmatpush.bf16.msra.mxu0 %v3479
        %3501 = vmatpush.bf16.msra.mxu0 %v3475
        %3502 = vmatmul.bf16.gmra.mxu0 %v3492
        %v3503 = vpop.f32.mrf.mxu0
        %v3504 = vadd.f32 0.0, %v3503
        %v3505 = vpop.f32.mrf.mxu0
        %3506 = vdwg.mxu0
        %3507 = vmatpush.bf16.msra.mxu0 0
        %3508 = vmatpush.bf16.msra.mxu0 0
        %3509 = vmatpush.bf16.msra.mxu0 0
        %3510 = vmatpush.bf16.msra.mxu0 0
        %3511 = vmatpush.bf16.msra.mxu0 0
        %3512 = vmatpush.bf16.msra.mxu0 0
        %3513 = vmatpush.bf16.msra.mxu0 %v3480
        %3514 = vmatpush.bf16.msra.mxu0 %v3476
        %3515 = vmatmul.bf16.gmra.mxu0 %v3492
        %v3516 = vpop.f32.mrf.mxu0
        %v3517 = vadd.f32 0.0, %v3516
        %v3518 = vpop.f32.mrf.mxu0
        %3519 = vdwg.mxu0
        %3520 = vmatpush.bf16.msra.mxu0 0
        %3521 = vmatpush.bf16.msra.mxu0 0
        %3522 = vmatpush.bf16.msra.mxu0 0
        %3523 = vmatpush.bf16.msra.mxu0 0
        %3524 = vmatpush.bf16.msra.mxu0 0
        %3525 = vmatpush.bf16.msra.mxu0 0
        %3526 = vmatpush.bf16.msra.mxu0 %v3481
        %3527 = vmatpush.bf16.msra.mxu0 %v3477
        %3528 = vmatmul.bf16.gmra.mxu0 %v3492
        %v3529 = vpop.f32.mrf.mxu0
        %v3530 = vadd.f32 0.0, %v3529
        %v3531 = vpop.f32.mrf.mxu0
        %3532 = vdwg.mxu0
        %3533 = vmatpush.bf16.msra.mxu0 0
        %3534 = vmatpush.bf16.msra.mxu0 0
        %3535 = vmatpush.bf16.msra.mxu0 0
        %3536 = vmatpush.bf16.msra.mxu0 0
        %3537 = vmatpush.bf16.msra.mxu0 0
        %3538 = vmatpush.bf16.msra.mxu0 0
        %3539 = vmatpush.bf16.msra.mxu0 %v3482
        %3540 = vmatpush.bf16.msra.mxu0 %v3478
        %3541 = vmatmul.bf16.gmra.mxu0 %v3492
        %v3542 = vpop.f32.mrf.mxu0
        %v3543 = vadd.f32 0.0, %v3542
        %v3544 = vpop.f32.mrf.mxu0
        %3545 = vdwg.mxu0
        %v3550 = vrot.slane %v3517, 7
        %v3551 = vrot.slane %v3530, 6
        %v3552 = vrot.slane %v3543, 5
        %v3553 = vsel %vm3315, %v3504, %v3550
        %v3554 = vsel %vm3317, %v3551, %v3552
        %v3555 = vsel %vm1954, %v3553, %v3554
        %v3557 = vadd.f32 %v3439, %v3555
        %s3558 = scalar_lea.vmem [#allocation19], 192
        %v3559 = vld [vmem:[%s3558] sm:$0xff]
        %v3560 = vld [vmem:[%s3558 + $0x8] sm:$0xff]
        %v3561 = vld [vmem:[%s3558 + $0x10] sm:$0xff]
        %v3562 = vld [vmem:[%s3558 + $0x18] sm:$0xff]
        %v3563 = vld [vmem:[%s3558 + $0x20] sm:$0xff]
        %v3564 = vld [vmem:[%s3558 + $0x28] sm:$0xff]
        %v3565 = vld [vmem:[%s3558 + $0x30] sm:$0xff]
        %v3566 = vld [vmem:[%s3558 + $0x38] sm:$0xff]
        %v3567 = vrot.slane %v3331, 1
        %v3576 = vunpack.c.l.b16 %v3559
        %v3577 = vunpack.c.h.b16 %v3559
        %v3578 = vunpack.c.l.b16 %v3560
        %v3579 = vunpack.c.h.b16 %v3560
        %v3580 = vunpack.c.l.b16 %v3561
        %v3581 = vunpack.c.h.b16 %v3561
        %v3582 = vunpack.c.l.b16 %v3562
        %v3583 = vunpack.c.h.b16 %v3562
        %v3584 = vunpack.c.l.b16 %v3563
        %v3585 = vunpack.c.h.b16 %v3563
        %v3586 = vunpack.c.l.b16 %v3564
        %v3587 = vunpack.c.h.b16 %v3564
        %v3588 = vunpack.c.l.b16 %v3565
        %v3589 = vunpack.c.h.b16 %v3565
        %v3590 = vunpack.c.l.b16 %v3566
        %v3591 = vunpack.c.h.b16 %v3566
        %v3592 = vpack.c.b16 %v3580, %v3576
        %v3593 = vpack.c.b16 %v3581, %v3577
        %v3594 = vpack.c.b16 %v3582, %v3578
        %v3595 = vpack.c.b16 %v3583, %v3579
        %v3596 = vpack.c.b16 %v3588, %v3584
        %v3597 = vpack.c.b16 %v3589, %v3585
        %v3598 = vpack.c.b16 %v3590, %v3586
        %v3599 = vpack.c.b16 %v3591, %v3587
        %v3609 = vsel %vm2268, %v3567, 0
        %3611 = vmatpush.bf16.msra.mxu0 0
        %3612 = vmatpush.bf16.msra.mxu0 0
        %3613 = vmatpush.bf16.msra.mxu0 0
        %3614 = vmatpush.bf16.msra.mxu0 0
        %3615 = vmatpush.bf16.msra.mxu0 0
        %3616 = vmatpush.bf16.msra.mxu0 0
        %3617 = vmatpush.bf16.msra.mxu0 %v3596
        %3618 = vmatpush.bf16.msra.mxu0 %v3592
        %3619 = vmatmul.bf16.gmra.mxu0 %v3609
        %v3620 = vpop.f32.mrf.mxu0
        %v3621 = vadd.f32 0.0, %v3620
        %v3622 = vpop.f32.mrf.mxu0
        %3623 = vdwg.mxu0
        %3624 = vmatpush.bf16.msra.mxu0 0
        %3625 = vmatpush.bf16.msra.mxu0 0
        %3626 = vmatpush.bf16.msra.mxu0 0
        %3627 = vmatpush.bf16.msra.mxu0 0
        %3628 = vmatpush.bf16.msra.mxu0 0
        %3629 = vmatpush.bf16.msra.mxu0 0
        %3630 = vmatpush.bf16.msra.mxu0 %v3597
        %3631 = vmatpush.bf16.msra.mxu0 %v3593
        %3632 = vmatmul.bf16.gmra.mxu0 %v3609
        %v3633 = vpop.f32.mrf.mxu0
        %v3634 = vadd.f32 0.0, %v3633
        %v3635 = vpop.f32.mrf.mxu0
        %3636 = vdwg.mxu0
        %3637 = vmatpush.bf16.msra.mxu0 0
        %3638 = vmatpush.bf16.msra.mxu0 0
        %3639 = vmatpush.bf16.msra.mxu0 0
        %3640 = vmatpush.bf16.msra.mxu0 0
        %3641 = vmatpush.bf16.msra.mxu0 0
        %3642 = vmatpush.bf16.msra.mxu0 0
        %3643 = vmatpush.bf16.msra.mxu0 %v3598
        %3644 = vmatpush.bf16.msra.mxu0 %v3594
        %3645 = vmatmul.bf16.gmra.mxu0 %v3609
        %v3646 = vpop.f32.mrf.mxu0
        %v3647 = vadd.f32 0.0, %v3646
        %v3648 = vpop.f32.mrf.mxu0
        %3649 = vdwg.mxu0
        %3650 = vmatpush.bf16.msra.mxu0 0
        %3651 = vmatpush.bf16.msra.mxu0 0
        %3652 = vmatpush.bf16.msra.mxu0 0
        %3653 = vmatpush.bf16.msra.mxu0 0
        %3654 = vmatpush.bf16.msra.mxu0 0
        %3655 = vmatpush.bf16.msra.mxu0 0
        %3656 = vmatpush.bf16.msra.mxu0 %v3599
        %3657 = vmatpush.bf16.msra.mxu0 %v3595
        %3658 = vmatmul.bf16.gmra.mxu0 %v3609
        %v3659 = vpop.f32.mrf.mxu0
        %v3660 = vadd.f32 0.0, %v3659
        %v3661 = vpop.f32.mrf.mxu0
        %3662 = vdwg.mxu0
        %v3667 = vrot.slane %v3634, 7
        %v3668 = vrot.slane %v3647, 6
        %v3669 = vrot.slane %v3660, 5
        %v3670 = vsel %vm3315, %v3621, %v3667
        %v3671 = vsel %vm3317, %v3668, %v3669
        %v3672 = vsel %vm1954, %v3670, %v3671
        %v3674 = vadd.f32 %v3557, %v3672
        %s3675 = scalar_lea.vmem [#allocation19], 256
        %v3676 = vld [vmem:[%s3675] sm:$0xff]
        %v3677 = vld [vmem:[%s3675 + $0x8] sm:$0xff]
        %v3678 = vld [vmem:[%s3675 + $0x10] sm:$0xff]
        %v3679 = vld [vmem:[%s3675 + $0x18] sm:$0xff]
        %v3680 = vld [vmem:[%s3675 + $0x20] sm:$0xff]
        %v3681 = vld [vmem:[%s3675 + $0x28] sm:$0xff]
        %v3682 = vld [vmem:[%s3675 + $0x30] sm:$0xff]
        %v3683 = vld [vmem:[%s3675 + $0x38] sm:$0xff]
        %v3684 = vrot.slane %v3204, 2
        %v3693 = vunpack.c.l.b16 %v3676
        %v3694 = vunpack.c.h.b16 %v3676
        %v3695 = vunpack.c.l.b16 %v3677
        %v3696 = vunpack.c.h.b16 %v3677
        %v3697 = vunpack.c.l.b16 %v3678
        %v3698 = vunpack.c.h.b16 %v3678
        %v3699 = vunpack.c.l.b16 %v3679
        %v3700 = vunpack.c.h.b16 %v3679
        %v3701 = vunpack.c.l.b16 %v3680
        %v3702 = vunpack.c.h.b16 %v3680
        %v3703 = vunpack.c.l.b16 %v3681
        %v3704 = vunpack.c.h.b16 %v3681
        %v3705 = vunpack.c.l.b16 %v3682
        %v3706 = vunpack.c.h.b16 %v3682
        %v3707 = vunpack.c.l.b16 %v3683
        %v3708 = vunpack.c.h.b16 %v3683
        %v3709 = vpack.c.b16 %v3697, %v3693
        %v3710 = vpack.c.b16 %v3698, %v3694
        %v3711 = vpack.c.b16 %v3699, %v3695
        %v3712 = vpack.c.b16 %v3700, %v3696
        %v3713 = vpack.c.b16 %v3705, %v3701
        %v3714 = vpack.c.b16 %v3706, %v3702
        %v3715 = vpack.c.b16 %v3707, %v3703
        %v3716 = vpack.c.b16 %v3708, %v3704
        %v3726 = vsel %vm2268, %v3684, 0
        %3728 = vmatpush.bf16.msra.mxu0 0
        %3729 = vmatpush.bf16.msra.mxu0 0
        %3730 = vmatpush.bf16.msra.mxu0 0
        %3731 = vmatpush.bf16.msra.mxu0 0
        %3732 = vmatpush.bf16.msra.mxu0 0
        %3733 = vmatpush.bf16.msra.mxu0 0
        %3734 = vmatpush.bf16.msra.mxu0 %v3713
        %3735 = vmatpush.bf16.msra.mxu0 %v3709
        %3736 = vmatmul.bf16.gmra.mxu0 %v3726
        %v3737 = vpop.f32.mrf.mxu0
        %v3738 = vadd.f32 0.0, %v3737
        %v3739 = vpop.f32.mrf.mxu0
        %3740 = vdwg.mxu0
        %3741 = vmatpush.bf16.msra.mxu0 0
        %3742 = vmatpush.bf16.msra.mxu0 0
        %3743 = vmatpush.bf16.msra.mxu0 0
        %3744 = vmatpush.bf16.msra.mxu0 0
        %3745 = vmatpush.bf16.msra.mxu0 0
        %3746 = vmatpush.bf16.msra.mxu0 0
        %3747 = vmatpush.bf16.msra.mxu0 %v3714
        %3748 = vmatpush.bf16.msra.mxu0 %v3710
        %3749 = vmatmul.bf16.gmra.mxu0 %v3726
        %v3750 = vpop.f32.mrf.mxu0
        %v3751 = vadd.f32 0.0, %v3750
        %v3752 = vpop.f32.mrf.mxu0
        %3753 = vdwg.mxu0
        %3754 = vmatpush.bf16.msra.mxu0 0
        %3755 = vmatpush.bf16.msra.mxu0 0
        %3756 = vmatpush.bf16.msra.mxu0 0
        %3757 = vmatpush.bf16.msra.mxu0 0
        %3758 = vmatpush.bf16.msra.mxu0 0
        %3759 = vmatpush.bf16.msra.mxu0 0
        %3760 = vmatpush.bf16.msra.mxu0 %v3715
        %3761 = vmatpush.bf16.msra.mxu0 %v3711
        %3762 = vmatmul.bf16.gmra.mxu0 %v3726
        %v3763 = vpop.f32.mrf.mxu0
        %v3764 = vadd.f32 0.0, %v3763
        %v3765 = vpop.f32.mrf.mxu0
        %3766 = vdwg.mxu0
        %3767 = vmatpush.bf16.msra.mxu0 0
        %3768 = vmatpush.bf16.msra.mxu0 0
        %3769 = vmatpush.bf16.msra.mxu0 0
        %3770 = vmatpush.bf16.msra.mxu0 0
        %3771 = vmatpush.bf16.msra.mxu0 0
        %3772 = vmatpush.bf16.msra.mxu0 0
        %3773 = vmatpush.bf16.msra.mxu0 %v3716
        %3774 = vmatpush.bf16.msra.mxu0 %v3712
        %3775 = vmatmul.bf16.gmra.mxu0 %v3726
        %v3776 = vpop.f32.mrf.mxu0
        %v3777 = vadd.f32 0.0, %v3776
        %v3778 = vpop.f32.mrf.mxu0
        %3779 = vdwg.mxu0
        %v3784 = vrot.slane %v3751, 7
        %v3785 = vrot.slane %v3764, 6
        %v3786 = vrot.slane %v3777, 5
        %v3787 = vsel %vm3315, %v3738, %v3784
        %v3788 = vsel %vm3317, %v3785, %v3786
        %v3789 = vsel %vm1954, %v3787, %v3788
        %v3791 = vadd.f32 %v3674, %v3789
        %s3792 = scalar_lea.vmem [#allocation19], 320
        %v3793 = vld [vmem:[%s3792] sm:$0xff]
        %v3794 = vld [vmem:[%s3792 + $0x8] sm:$0xff]
        %v3795 = vld [vmem:[%s3792 + $0x10] sm:$0xff]
        %v3796 = vld [vmem:[%s3792 + $0x18] sm:$0xff]
        %v3797 = vld [vmem:[%s3792 + $0x20] sm:$0xff]
        %v3798 = vld [vmem:[%s3792 + $0x28] sm:$0xff]
        %v3799 = vld [vmem:[%s3792 + $0x30] sm:$0xff]
        %v3800 = vld [vmem:[%s3792 + $0x38] sm:$0xff]
        %v3801 = vrot.slane %v3331, 2
        %v3810 = vunpack.c.l.b16 %v3793
        %v3811 = vunpack.c.h.b16 %v3793
        %v3812 = vunpack.c.l.b16 %v3794
        %v3813 = vunpack.c.h.b16 %v3794
        %v3814 = vunpack.c.l.b16 %v3795
        %v3815 = vunpack.c.h.b16 %v3795
        %v3816 = vunpack.c.l.b16 %v3796
        %v3817 = vunpack.c.h.b16 %v3796
        %v3818 = vunpack.c.l.b16 %v3797
        %v3819 = vunpack.c.h.b16 %v3797
        %v3820 = vunpack.c.l.b16 %v3798
        %v3821 = vunpack.c.h.b16 %v3798
        %v3822 = vunpack.c.l.b16 %v3799
        %v3823 = vunpack.c.h.b16 %v3799
        %v3824 = vunpack.c.l.b16 %v3800
        %v3825 = vunpack.c.h.b16 %v3800
        %v3826 = vpack.c.b16 %v3814, %v3810
        %v3827 = vpack.c.b16 %v3815, %v3811
        %v3828 = vpack.c.b16 %v3816, %v3812
        %v3829 = vpack.c.b16 %v3817, %v3813
        %v3830 = vpack.c.b16 %v3822, %v3818
        %v3831 = vpack.c.b16 %v3823, %v3819
        %v3832 = vpack.c.b16 %v3824, %v3820
        %v3833 = vpack.c.b16 %v3825, %v3821
        %v3843 = vsel %vm2268, %v3801, 0
        %3845 = vmatpush.bf16.msra.mxu0 0
        %3846 = vmatpush.bf16.msra.mxu0 0
        %3847 = vmatpush.bf16.msra.mxu0 0
        %3848 = vmatpush.bf16.msra.mxu0 0
        %3849 = vmatpush.bf16.msra.mxu0 0
        %3850 = vmatpush.bf16.msra.mxu0 0
        %3851 = vmatpush.bf16.msra.mxu0 %v3830
        %3852 = vmatpush.bf16.msra.mxu0 %v3826
        %3853 = vmatmul.bf16.gmra.mxu0 %v3843
        %v3854 = vpop.f32.mrf.mxu0
        %v3855 = vadd.f32 0.0, %v3854
        %v3856 = vpop.f32.mrf.mxu0
        %3857 = vdwg.mxu0
        %3858 = vmatpush.bf16.msra.mxu0 0
        %3859 = vmatpush.bf16.msra.mxu0 0
        %3860 = vmatpush.bf16.msra.mxu0 0
        %3861 = vmatpush.bf16.msra.mxu0 0
        %3862 = vmatpush.bf16.msra.mxu0 0
        %3863 = vmatpush.bf16.msra.mxu0 0
        %3864 = vmatpush.bf16.msra.mxu0 %v3831
        %3865 = vmatpush.bf16.msra.mxu0 %v3827
        %3866 = vmatmul.bf16.gmra.mxu0 %v3843
        %v3867 = vpop.f32.mrf.mxu0
        %v3868 = vadd.f32 0.0, %v3867
        %v3869 = vpop.f32.mrf.mxu0
        %3870 = vdwg.mxu0
        %3871 = vmatpush.bf16.msra.mxu0 0
        %3872 = vmatpush.bf16.msra.mxu0 0
        %3873 = vmatpush.bf16.msra.mxu0 0
        %3874 = vmatpush.bf16.msra.mxu0 0
        %3875 = vmatpush.bf16.msra.mxu0 0
        %3876 = vmatpush.bf16.msra.mxu0 0
        %3877 = vmatpush.bf16.msra.mxu0 %v3832
        %3878 = vmatpush.bf16.msra.mxu0 %v3828
        %3879 = vmatmul.bf16.gmra.mxu0 %v3843
        %v3880 = vpop.f32.mrf.mxu0
        %v3881 = vadd.f32 0.0, %v3880
        %v3882 = vpop.f32.mrf.mxu0
        %3883 = vdwg.mxu0
        %3884 = vmatpush.bf16.msra.mxu0 0
        %3885 = vmatpush.bf16.msra.mxu0 0
        %3886 = vmatpush.bf16.msra.mxu0 0
        %3887 = vmatpush.bf16.msra.mxu0 0
        %3888 = vmatpush.bf16.msra.mxu0 0
        %3889 = vmatpush.bf16.msra.mxu0 0
        %3890 = vmatpush.bf16.msra.mxu0 %v3833
        %3891 = vmatpush.bf16.msra.mxu0 %v3829
        %3892 = vmatmul.bf16.gmra.mxu0 %v3843
        %v3893 = vpop.f32.mrf.mxu0
        %v3894 = vadd.f32 0.0, %v3893
        %v3895 = vpop.f32.mrf.mxu0
        %3896 = vdwg.mxu0
        %v3901 = vrot.slane %v3868, 7
        %v3902 = vrot.slane %v3881, 6
        %v3903 = vrot.slane %v3894, 5
        %v3904 = vsel %vm3315, %v3855, %v3901
        %v3905 = vsel %vm3317, %v3902, %v3903
        %v3906 = vsel %vm1954, %v3904, %v3905
        %v3908 = vadd.f32 %v3791, %v3906
        %s3909 = scalar_lea.vmem [#allocation19], 384
        %v3910 = vld [vmem:[%s3909] sm:$0xff]
        %v3911 = vld [vmem:[%s3909 + $0x8] sm:$0xff]
        %v3912 = vld [vmem:[%s3909 + $0x10] sm:$0xff]
        %v3913 = vld [vmem:[%s3909 + $0x18] sm:$0xff]
        %v3914 = vld [vmem:[%s3909 + $0x20] sm:$0xff]
        %v3915 = vld [vmem:[%s3909 + $0x28] sm:$0xff]
        %v3916 = vld [vmem:[%s3909 + $0x30] sm:$0xff]
        %v3917 = vld [vmem:[%s3909 + $0x38] sm:$0xff]
        %v3918 = vrot.slane %v3204, 3
        %v3927 = vunpack.c.l.b16 %v3910
        %v3928 = vunpack.c.h.b16 %v3910
        %v3929 = vunpack.c.l.b16 %v3911
        %v3930 = vunpack.c.h.b16 %v3911
        %v3931 = vunpack.c.l.b16 %v3912
        %v3932 = vunpack.c.h.b16 %v3912
        %v3933 = vunpack.c.l.b16 %v3913
        %v3934 = vunpack.c.h.b16 %v3913
        %v3935 = vunpack.c.l.b16 %v3914
        %v3936 = vunpack.c.h.b16 %v3914
        %v3937 = vunpack.c.l.b16 %v3915
        %v3938 = vunpack.c.h.b16 %v3915
        %v3939 = vunpack.c.l.b16 %v3916
        %v3940 = vunpack.c.h.b16 %v3916
        %v3941 = vunpack.c.l.b16 %v3917
        %v3942 = vunpack.c.h.b16 %v3917
        %v3943 = vpack.c.b16 %v3931, %v3927
        %v3944 = vpack.c.b16 %v3932, %v3928
        %v3945 = vpack.c.b16 %v3933, %v3929
        %v3946 = vpack.c.b16 %v3934, %v3930
        %v3947 = vpack.c.b16 %v3939, %v3935
        %v3948 = vpack.c.b16 %v3940, %v3936
        %v3949 = vpack.c.b16 %v3941, %v3937
        %v3950 = vpack.c.b16 %v3942, %v3938
        %v3960 = vsel %vm2268, %v3918, 0
        %3962 = vmatpush.bf16.msra.mxu0 0
        %3963 = vmatpush.bf16.msra.mxu0 0
        %3964 = vmatpush.bf16.msra.mxu0 0
        %3965 = vmatpush.bf16.msra.mxu0 0
        %3966 = vmatpush.bf16.msra.mxu0 0
        %3967 = vmatpush.bf16.msra.mxu0 0
        %3968 = vmatpush.bf16.msra.mxu0 %v3947
        %3969 = vmatpush.bf16.msra.mxu0 %v3943
        %3970 = vmatmul.bf16.gmra.mxu0 %v3960
        %v3971 = vpop.f32.mrf.mxu0
        %v3972 = vadd.f32 0.0, %v3971
        %v3973 = vpop.f32.mrf.mxu0
        %3974 = vdwg.mxu0
        %3975 = vmatpush.bf16.msra.mxu0 0
        %3976 = vmatpush.bf16.msra.mxu0 0
        %3977 = vmatpush.bf16.msra.mxu0 0
        %3978 = vmatpush.bf16.msra.mxu0 0
        %3979 = vmatpush.bf16.msra.mxu0 0
        %3980 = vmatpush.bf16.msra.mxu0 0
        %3981 = vmatpush.bf16.msra.mxu0 %v3948
        %3982 = vmatpush.bf16.msra.mxu0 %v3944
        %3983 = vmatmul.bf16.gmra.mxu0 %v3960
        %v3984 = vpop.f32.mrf.mxu0
        %v3985 = vadd.f32 0.0, %v3984
        %v3986 = vpop.f32.mrf.mxu0
        %3987 = vdwg.mxu0
        %3988 = vmatpush.bf16.msra.mxu0 0
        %3989 = vmatpush.bf16.msra.mxu0 0
        %3990 = vmatpush.bf16.msra.mxu0 0
        %3991 = vmatpush.bf16.msra.mxu0 0
        %3992 = vmatpush.bf16.msra.mxu0 0
        %3993 = vmatpush.bf16.msra.mxu0 0
        %3994 = vmatpush.bf16.msra.mxu0 %v3949
        %3995 = vmatpush.bf16.msra.mxu0 %v3945
        %3996 = vmatmul.bf16.gmra.mxu0 %v3960
        %v3997 = vpop.f32.mrf.mxu0
        %v3998 = vadd.f32 0.0, %v3997
        %v3999 = vpop.f32.mrf.mxu0
        %4000 = vdwg.mxu0
        %4001 = vmatpush.bf16.msra.mxu0 0
        %4002 = vmatpush.bf16.msra.mxu0 0
        %4003 = vmatpush.bf16.msra.mxu0 0
        %4004 = vmatpush.bf16.msra.mxu0 0
        %4005 = vmatpush.bf16.msra.mxu0 0
        %4006 = vmatpush.bf16.msra.mxu0 0
        %4007 = vmatpush.bf16.msra.mxu0 %v3950
        %4008 = vmatpush.bf16.msra.mxu0 %v3946
        %4009 = vmatmul.bf16.gmra.mxu0 %v3960
        %v4010 = vpop.f32.mrf.mxu0
        %v4011 = vadd.f32 0.0, %v4010
        %v4012 = vpop.f32.mrf.mxu0
        %4013 = vdwg.mxu0
        %v4018 = vrot.slane %v3985, 7
        %v4019 = vrot.slane %v3998, 6
        %v4020 = vrot.slane %v4011, 5
        %v4021 = vsel %vm3315, %v3972, %v4018
        %v4022 = vsel %vm3317, %v4019, %v4020
        %v4023 = vsel %vm1954, %v4021, %v4022
        %v4025 = vadd.f32 %v3908, %v4023
        %s4026 = scalar_lea.vmem [#allocation19], 448
        %v4027 = vld [vmem:[%s4026] sm:$0xff]
        %v4028 = vld [vmem:[%s4026 + $0x8] sm:$0xff]
        %v4029 = vld [vmem:[%s4026 + $0x10] sm:$0xff]
        %v4030 = vld [vmem:[%s4026 + $0x18] sm:$0xff]
        %v4031 = vld [vmem:[%s4026 + $0x20] sm:$0xff]
        %v4032 = vld [vmem:[%s4026 + $0x28] sm:$0xff]
        %v4033 = vld [vmem:[%s4026 + $0x30] sm:$0xff]
        %v4034 = vld [vmem:[%s4026 + $0x38] sm:$0xff]
        %v4035 = vrot.slane %v3331, 3
        %v4044 = vunpack.c.l.b16 %v4027
        %v4045 = vunpack.c.h.b16 %v4027
        %v4046 = vunpack.c.l.b16 %v4028
        %v4047 = vunpack.c.h.b16 %v4028
        %v4048 = vunpack.c.l.b16 %v4029
        %v4049 = vunpack.c.h.b16 %v4029
        %v4050 = vunpack.c.l.b16 %v4030
        %v4051 = vunpack.c.h.b16 %v4030
        %v4052 = vunpack.c.l.b16 %v4031
        %v4053 = vunpack.c.h.b16 %v4031
        %v4054 = vunpack.c.l.b16 %v4032
        %v4055 = vunpack.c.h.b16 %v4032
        %v4056 = vunpack.c.l.b16 %v4033
        %v4057 = vunpack.c.h.b16 %v4033
        %v4058 = vunpack.c.l.b16 %v4034
        %v4059 = vunpack.c.h.b16 %v4034
        %v4060 = vpack.c.b16 %v4048, %v4044
        %v4061 = vpack.c.b16 %v4049, %v4045
        %v4062 = vpack.c.b16 %v4050, %v4046
        %v4063 = vpack.c.b16 %v4051, %v4047
        %v4064 = vpack.c.b16 %v4056, %v4052
        %v4065 = vpack.c.b16 %v4057, %v4053
        %v4066 = vpack.c.b16 %v4058, %v4054
        %v4067 = vpack.c.b16 %v4059, %v4055
        %v4077 = vsel %vm2268, %v4035, 0
        %4079 = vmatpush.bf16.msra.mxu0 0
        %4080 = vmatpush.bf16.msra.mxu0 0
        %4081 = vmatpush.bf16.msra.mxu0 0
        %4082 = vmatpush.bf16.msra.mxu0 0
        %4083 = vmatpush.bf16.msra.mxu0 0
        %4084 = vmatpush.bf16.msra.mxu0 0
        %4085 = vmatpush.bf16.msra.mxu0 %v4064
        %4086 = vmatpush.bf16.msra.mxu0 %v4060
        %4087 = vmatmul.bf16.gmra.mxu0 %v4077
        %v4088 = vpop.f32.mrf.mxu0
        %v4089 = vadd.f32 0.0, %v4088
        %v4090 = vpop.f32.mrf.mxu0
        %4091 = vdwg.mxu0
        %4092 = vmatpush.bf16.msra.mxu0 0
        %4093 = vmatpush.bf16.msra.mxu0 0
        %4094 = vmatpush.bf16.msra.mxu0 0
        %4095 = vmatpush.bf16.msra.mxu0 0
        %4096 = vmatpush.bf16.msra.mxu0 0
        %4097 = vmatpush.bf16.msra.mxu0 0
        %4098 = vmatpush.bf16.msra.mxu0 %v4065
        %4099 = vmatpush.bf16.msra.mxu0 %v4061
        %4100 = vmatmul.bf16.gmra.mxu0 %v4077
        %v4101 = vpop.f32.mrf.mxu0
        %v4102 = vadd.f32 0.0, %v4101
        %v4103 = vpop.f32.mrf.mxu0
        %4104 = vdwg.mxu0
        %4105 = vmatpush.bf16.msra.mxu0 0
        %4106 = vmatpush.bf16.msra.mxu0 0
        %4107 = vmatpush.bf16.msra.mxu0 0
        %4108 = vmatpush.bf16.msra.mxu0 0
        %4109 = vmatpush.bf16.msra.mxu0 0
        %4110 = vmatpush.bf16.msra.mxu0 0
        %4111 = vmatpush.bf16.msra.mxu0 %v4066
        %4112 = vmatpush.bf16.msra.mxu0 %v4062
        %4113 = vmatmul.bf16.gmra.mxu0 %v4077
        %v4114 = vpop.f32.mrf.mxu0
        %v4115 = vadd.f32 0.0, %v4114
        %v4116 = vpop.f32.mrf.mxu0
        %4117 = vdwg.mxu0
        %4118 = vmatpush.bf16.msra.mxu0 0
        %4119 = vmatpush.bf16.msra.mxu0 0
        %4120 = vmatpush.bf16.msra.mxu0 0
        %4121 = vmatpush.bf16.msra.mxu0 0
        %4122 = vmatpush.bf16.msra.mxu0 0
        %4123 = vmatpush.bf16.msra.mxu0 0
        %4124 = vmatpush.bf16.msra.mxu0 %v4067
        %4125 = vmatpush.bf16.msra.mxu0 %v4063
        %4126 = vmatmul.bf16.gmra.mxu0 %v4077
        %v4127 = vpop.f32.mrf.mxu0
        %v4128 = vadd.f32 0.0, %v4127
        %v4129 = vpop.f32.mrf.mxu0
        %4130 = vdwg.mxu0
        %v4135 = vrot.slane %v4102, 7
        %v4136 = vrot.slane %v4115, 6
        %v4137 = vrot.slane %v4128, 5
        %v4138 = vsel %vm3315, %v4089, %v4135
        %v4139 = vsel %vm3317, %v4136, %v4137
        %v4140 = vsel %vm1954, %v4138, %v4139
        %v4142 = vadd.f32 %v4025, %v4140
        %v4143 = vmax.f32 %v4142, 0.0
        %v4145 = vperm.slane %v4143, 0
        %v4146 = vperm.slane %v4143, 1
        %v4147 = vperm.slane %v4143, 2
        %v4148 = vperm.slane %v4143, 3
        %v4153 = vpack.c.bf16 %v4145, %v4145
        %v4154 = vpack.c.bf16 %v4146, %v4146
        %v4155 = vpack.c.bf16 %v4147, %v4147
        %v4156 = vpack.c.bf16 %v4148, %v4148
        %v4157 = vld [vmem:[#allocation20] sm:$0xff]
        %v4158 = vld [vmem:[#allocation20 + $0x8] sm:$0xff]
        %v4159 = vld [vmem:[#allocation20 + $0x10] sm:$0xff]
        %v4160 = vld [vmem:[#allocation20 + $0x18] sm:$0xff]
        %v4161 = vld [vmem:[#allocation20 + $0x20] sm:$0xff]
        %v4162 = vld [vmem:[#allocation20 + $0x28] sm:$0xff]
        %v4163 = vld [vmem:[#allocation20 + $0x30] sm:$0xff]
        %v4164 = vld [vmem:[#allocation20 + $0x38] sm:$0xff]
        %v4165 = vld [vmem:[#allocation20 + $0x40] sm:$0xff]
        %v4166 = vld [vmem:[#allocation20 + $0x48] sm:$0xff]
        %v4167 = vld [vmem:[#allocation20 + $0x50] sm:$0xff]
        %v4168 = vld [vmem:[#allocation20 + $0x58] sm:$0xff]
        %v4169 = vld [vmem:[#allocation20 + $0x60] sm:$0xff]
        %v4170 = vld [vmem:[#allocation20 + $0x68] sm:$0xff]
        %v4171 = vld [vmem:[#allocation20 + $0x70] sm:$0xff]
        %v4172 = vld [vmem:[#allocation20 + $0x78] sm:$0xff]
        %v4173 = vld [vmem:[#allocation20 + $0x80] sm:$0xff]
        %v4174 = vld [vmem:[#allocation20 + $0x88] sm:$0xff]
        %v4175 = vld [vmem:[#allocation20 + $0x90] sm:$0xff]
        %v4176 = vld [vmem:[#allocation20 + $0x98] sm:$0xff]
        %v4177 = vld [vmem:[#allocation20 + $0xa0] sm:$0xff]
        %v4178 = vld [vmem:[#allocation20 + $0xa8] sm:$0xff]
        %v4179 = vld [vmem:[#allocation20 + $0xb0] sm:$0xff]
        %v4180 = vld [vmem:[#allocation20 + $0xb8] sm:$0xff]
        %v4181 = vld [vmem:[#allocation20 + $0xc0] sm:$0xff]
        %v4182 = vld [vmem:[#allocation20 + $0xc8] sm:$0xff]
        %v4183 = vld [vmem:[#allocation20 + $0xd0] sm:$0xff]
        %v4184 = vld [vmem:[#allocation20 + $0xd8] sm:$0xff]
        %v4185 = vld [vmem:[#allocation20 + $0xe0] sm:$0xff]
        %v4186 = vld [vmem:[#allocation20 + $0xe8] sm:$0xff]
        %v4187 = vld [vmem:[#allocation20 + $0xf0] sm:$0xff]
        %v4188 = vld [vmem:[#allocation20 + $0xf8] sm:$0xff]
        %v4189 = vld [vmem:[#allocation20 + $0x100] sm:$0xff]
        %v4190 = vld [vmem:[#allocation20 + $0x108] sm:$0xff]
        %v4191 = vld [vmem:[#allocation20 + $0x110] sm:$0xff]
        %v4192 = vld [vmem:[#allocation20 + $0x118] sm:$0xff]
        %v4193 = vld [vmem:[#allocation20 + $0x120] sm:$0xff]
        %v4194 = vld [vmem:[#allocation20 + $0x128] sm:$0xff]
        %v4195 = vld [vmem:[#allocation20 + $0x130] sm:$0xff]
        %v4196 = vld [vmem:[#allocation20 + $0x138] sm:$0xff]
        %v4197 = vld [vmem:[#allocation20 + $0x140] sm:$0xff]
        %v4198 = vld [vmem:[#allocation20 + $0x148] sm:$0xff]
        %v4199 = vld [vmem:[#allocation20 + $0x150] sm:$0xff]
        %v4200 = vld [vmem:[#allocation20 + $0x158] sm:$0xff]
        %v4201 = vld [vmem:[#allocation20 + $0x160] sm:$0xff]
        %v4202 = vld [vmem:[#allocation20 + $0x168] sm:$0xff]
        %v4203 = vld [vmem:[#allocation20 + $0x170] sm:$0xff]
        %v4204 = vld [vmem:[#allocation20 + $0x178] sm:$0xff]
        %v4205 = vld [vmem:[#allocation20 + $0x180] sm:$0xff]
        %v4206 = vld [vmem:[#allocation20 + $0x188] sm:$0xff]
        %v4207 = vld [vmem:[#allocation20 + $0x190] sm:$0xff]
        %v4208 = vld [vmem:[#allocation20 + $0x198] sm:$0xff]
        %v4209 = vld [vmem:[#allocation20 + $0x1a0] sm:$0xff]
        %v4210 = vld [vmem:[#allocation20 + $0x1a8] sm:$0xff]
        %v4211 = vld [vmem:[#allocation20 + $0x1b0] sm:$0xff]
        %v4212 = vld [vmem:[#allocation20 + $0x1b8] sm:$0xff]
        %v4213 = vld [vmem:[#allocation20 + $0x1c0] sm:$0xff]
        %v4214 = vld [vmem:[#allocation20 + $0x1c8] sm:$0xff]
        %v4215 = vld [vmem:[#allocation20 + $0x1d0] sm:$0xff]
        %v4216 = vld [vmem:[#allocation20 + $0x1d8] sm:$0xff]
        %v4217 = vld [vmem:[#allocation20 + $0x1e0] sm:$0xff]
        %v4218 = vld [vmem:[#allocation20 + $0x1e8] sm:$0xff]
        %v4219 = vld [vmem:[#allocation20 + $0x1f0] sm:$0xff]
        %v4220 = vld [vmem:[#allocation20 + $0x1f8] sm:$0xff]
        %v4221 = vld [vmem:[%s107] sm:$0x3]
        %v4286 = vunpack.c.l.b16 %v4157
        %v4287 = vunpack.c.h.b16 %v4157
        %v4288 = vunpack.c.l.b16 %v4158
        %v4289 = vunpack.c.h.b16 %v4158
        %v4290 = vunpack.c.l.b16 %v4159
        %v4291 = vunpack.c.h.b16 %v4159
        %v4292 = vunpack.c.l.b16 %v4160
        %v4293 = vunpack.c.h.b16 %v4160
        %v4294 = vunpack.c.l.b16 %v4161
        %v4295 = vunpack.c.h.b16 %v4161
        %v4296 = vunpack.c.l.b16 %v4162
        %v4297 = vunpack.c.h.b16 %v4162
        %v4298 = vunpack.c.l.b16 %v4163
        %v4299 = vunpack.c.h.b16 %v4163
        %v4300 = vunpack.c.l.b16 %v4164
        %v4301 = vunpack.c.h.b16 %v4164
        %v4302 = vunpack.c.l.b16 %v4165
        %v4303 = vunpack.c.h.b16 %v4165
        %v4304 = vunpack.c.l.b16 %v4166
        %v4305 = vunpack.c.h.b16 %v4166
        %v4306 = vunpack.c.l.b16 %v4167
        %v4307 = vunpack.c.h.b16 %v4167
        %v4308 = vunpack.c.l.b16 %v4168
        %v4309 = vunpack.c.h.b16 %v4168
        %v4310 = vunpack.c.l.b16 %v4169
        %v4311 = vunpack.c.h.b16 %v4169
        %v4312 = vunpack.c.l.b16 %v4170
        %v4313 = vunpack.c.h.b16 %v4170
        %v4314 = vunpack.c.l.b16 %v4171
        %v4315 = vunpack.c.h.b16 %v4171
        %v4316 = vunpack.c.l.b16 %v4172
        %v4317 = vunpack.c.h.b16 %v4172
        %v4318 = vunpack.c.l.b16 %v4173
        %v4319 = vunpack.c.h.b16 %v4173
        %v4320 = vunpack.c.l.b16 %v4174
        %v4321 = vunpack.c.h.b16 %v4174
        %v4322 = vunpack.c.l.b16 %v4175
        %v4323 = vunpack.c.h.b16 %v4175
        %v4324 = vunpack.c.l.b16 %v4176
        %v4325 = vunpack.c.h.b16 %v4176
        %v4326 = vunpack.c.l.b16 %v4177
        %v4327 = vunpack.c.h.b16 %v4177
        %v4328 = vunpack.c.l.b16 %v4178
        %v4329 = vunpack.c.h.b16 %v4178
        %v4330 = vunpack.c.l.b16 %v4179
        %v4331 = vunpack.c.h.b16 %v4179
        %v4332 = vunpack.c.l.b16 %v4180
        %v4333 = vunpack.c.h.b16 %v4180
        %v4334 = vunpack.c.l.b16 %v4181
        %v4335 = vunpack.c.h.b16 %v4181
        %v4336 = vunpack.c.l.b16 %v4182
        %v4337 = vunpack.c.h.b16 %v4182
        %v4338 = vunpack.c.l.b16 %v4183
        %v4339 = vunpack.c.h.b16 %v4183
        %v4340 = vunpack.c.l.b16 %v4184
        %v4341 = vunpack.c.h.b16 %v4184
        %v4342 = vunpack.c.l.b16 %v4185
        %v4343 = vunpack.c.h.b16 %v4185
        %v4344 = vunpack.c.l.b16 %v4186
        %v4345 = vunpack.c.h.b16 %v4186
        %v4346 = vunpack.c.l.b16 %v4187
        %v4347 = vunpack.c.h.b16 %v4187
        %v4348 = vunpack.c.l.b16 %v4188
        %v4349 = vunpack.c.h.b16 %v4188
        %v4350 = vunpack.c.l.b16 %v4189
        %v4351 = vunpack.c.h.b16 %v4189
        %v4352 = vunpack.c.l.b16 %v4190
        %v4353 = vunpack.c.h.b16 %v4190
        %v4354 = vunpack.c.l.b16 %v4191
        %v4355 = vunpack.c.h.b16 %v4191
        %v4356 = vunpack.c.l.b16 %v4192
        %v4357 = vunpack.c.h.b16 %v4192
        %v4358 = vunpack.c.l.b16 %v4193
        %v4359 = vunpack.c.h.b16 %v4193
        %v4360 = vunpack.c.l.b16 %v4194
        %v4361 = vunpack.c.h.b16 %v4194
        %v4362 = vunpack.c.l.b16 %v4195
        %v4363 = vunpack.c.h.b16 %v4195
        %v4364 = vunpack.c.l.b16 %v4196
        %v4365 = vunpack.c.h.b16 %v4196
        %v4366 = vunpack.c.l.b16 %v4197
        %v4367 = vunpack.c.h.b16 %v4197
        %v4368 = vunpack.c.l.b16 %v4198
        %v4369 = vunpack.c.h.b16 %v4198
        %v4370 = vunpack.c.l.b16 %v4199
        %v4371 = vunpack.c.h.b16 %v4199
        %v4372 = vunpack.c.l.b16 %v4200
        %v4373 = vunpack.c.h.b16 %v4200
        %v4374 = vunpack.c.l.b16 %v4201
        %v4375 = vunpack.c.h.b16 %v4201
        %v4376 = vunpack.c.l.b16 %v4202
        %v4377 = vunpack.c.h.b16 %v4202
        %v4378 = vunpack.c.l.b16 %v4203
        %v4379 = vunpack.c.h.b16 %v4203
        %v4380 = vunpack.c.l.b16 %v4204
        %v4381 = vunpack.c.h.b16 %v4204
        %v4382 = vunpack.c.l.b16 %v4205
        %v4383 = vunpack.c.h.b16 %v4205
        %v4384 = vunpack.c.l.b16 %v4206
        %v4385 = vunpack.c.h.b16 %v4206
        %v4386 = vunpack.c.l.b16 %v4207
        %v4387 = vunpack.c.h.b16 %v4207
        %v4388 = vunpack.c.l.b16 %v4208
        %v4389 = vunpack.c.h.b16 %v4208
        %v4390 = vunpack.c.l.b16 %v4209
        %v4391 = vunpack.c.h.b16 %v4209
        %v4392 = vunpack.c.l.b16 %v4210
        %v4393 = vunpack.c.h.b16 %v4210
        %v4394 = vunpack.c.l.b16 %v4211
        %v4395 = vunpack.c.h.b16 %v4211
        %v4396 = vunpack.c.l.b16 %v4212
        %v4397 = vunpack.c.h.b16 %v4212
        %v4398 = vunpack.c.l.b16 %v4213
        %v4399 = vunpack.c.h.b16 %v4213
        %v4400 = vunpack.c.l.b16 %v4214
        %v4401 = vunpack.c.h.b16 %v4214
        %v4402 = vunpack.c.l.b16 %v4215
        %v4403 = vunpack.c.h.b16 %v4215
        %v4404 = vunpack.c.l.b16 %v4216
        %v4405 = vunpack.c.h.b16 %v4216
        %v4406 = vunpack.c.l.b16 %v4217
        %v4407 = vunpack.c.h.b16 %v4217
        %v4408 = vunpack.c.l.b16 %v4218
        %v4409 = vunpack.c.h.b16 %v4218
        %v4410 = vunpack.c.l.b16 %v4219
        %v4411 = vunpack.c.h.b16 %v4219
        %v4412 = vunpack.c.l.b16 %v4220
        %v4413 = vunpack.c.h.b16 %v4220
        %v4414 = vpack.c.b16 %v4288, %v4286
        %v4415 = vpack.c.b16 %v4289, %v4287
        %v4416 = vpack.c.b16 %v4292, %v4290
        %v4417 = vpack.c.b16 %v4293, %v4291
        %v4418 = vpack.c.b16 %v4296, %v4294
        %v4419 = vpack.c.b16 %v4297, %v4295
        %v4420 = vpack.c.b16 %v4300, %v4298
        %v4421 = vpack.c.b16 %v4301, %v4299
        %v4422 = vpack.c.b16 %v4304, %v4302
        %v4423 = vpack.c.b16 %v4305, %v4303
        %v4424 = vpack.c.b16 %v4308, %v4306
        %v4425 = vpack.c.b16 %v4309, %v4307
        %v4426 = vpack.c.b16 %v4312, %v4310
        %v4427 = vpack.c.b16 %v4313, %v4311
        %v4428 = vpack.c.b16 %v4316, %v4314
        %v4429 = vpack.c.b16 %v4317, %v4315
        %v4430 = vpack.c.b16 %v4320, %v4318
        %v4431 = vpack.c.b16 %v4321, %v4319
        %v4432 = vpack.c.b16 %v4324, %v4322
        %v4433 = vpack.c.b16 %v4325, %v4323
        %v4434 = vpack.c.b16 %v4328, %v4326
        %v4435 = vpack.c.b16 %v4329, %v4327
        %v4436 = vpack.c.b16 %v4332, %v4330
        %v4437 = vpack.c.b16 %v4333, %v4331
        %v4438 = vpack.c.b16 %v4336, %v4334
        %v4439 = vpack.c.b16 %v4337, %v4335
        %v4440 = vpack.c.b16 %v4340, %v4338
        %v4441 = vpack.c.b16 %v4341, %v4339
        %v4442 = vpack.c.b16 %v4344, %v4342
        %v4443 = vpack.c.b16 %v4345, %v4343
        %v4444 = vpack.c.b16 %v4348, %v4346
        %v4445 = vpack.c.b16 %v4349, %v4347
        %v4446 = vpack.c.b16 %v4352, %v4350
        %v4447 = vpack.c.b16 %v4353, %v4351
        %v4448 = vpack.c.b16 %v4356, %v4354
        %v4449 = vpack.c.b16 %v4357, %v4355
        %v4450 = vpack.c.b16 %v4360, %v4358
        %v4451 = vpack.c.b16 %v4361, %v4359
        %v4452 = vpack.c.b16 %v4364, %v4362
        %v4453 = vpack.c.b16 %v4365, %v4363
        %v4454 = vpack.c.b16 %v4368, %v4366
        %v4455 = vpack.c.b16 %v4369, %v4367
        %v4456 = vpack.c.b16 %v4372, %v4370
        %v4457 = vpack.c.b16 %v4373, %v4371
        %v4458 = vpack.c.b16 %v4376, %v4374
        %v4459 = vpack.c.b16 %v4377, %v4375
        %v4460 = vpack.c.b16 %v4380, %v4378
        %v4461 = vpack.c.b16 %v4381, %v4379
        %v4462 = vpack.c.b16 %v4384, %v4382
        %v4463 = vpack.c.b16 %v4385, %v4383
        %v4464 = vpack.c.b16 %v4388, %v4386
        %v4465 = vpack.c.b16 %v4389, %v4387
        %v4466 = vpack.c.b16 %v4392, %v4390
        %v4467 = vpack.c.b16 %v4393, %v4391
        %v4468 = vpack.c.b16 %v4396, %v4394
        %v4469 = vpack.c.b16 %v4397, %v4395
        %v4470 = vpack.c.b16 %v4400, %v4398
        %v4471 = vpack.c.b16 %v4401, %v4399
        %v4472 = vpack.c.b16 %v4404, %v4402
        %v4473 = vpack.c.b16 %v4405, %v4403
        %v4474 = vpack.c.b16 %v4408, %v4406
        %v4475 = vpack.c.b16 %v4409, %v4407
        %v4476 = vpack.c.b16 %v4412, %v4410
        %v4477 = vpack.c.b16 %v4413, %v4411
        %v4543 = vperm.slane %v4221, 0
        %v4544 = vperm.slane %v4221, 1
        %4547 = vmatpush.bf16.msra.mxu0 %v4428
        %4548 = vmatpush.bf16.msra.mxu0 %v4426
        %4549 = vmatpush.bf16.msra.mxu0 %v4424
        %4550 = vmatpush.bf16.msra.mxu0 %v4422
        %4551 = vmatpush.bf16.msra.mxu0 %v4420
        %4552 = vmatpush.bf16.msra.mxu0 %v4418
        %4553 = vmatpush.bf16.msra.mxu0 %v4416
        %4554 = vmatpush.bf16.msra.mxu0 %v4414
        %4555 = vmatmul.bf16.gmra.mxu0 %v4153
        %v4556 = vpop.f32.mrf.mxu0
        %v4557 = vadd.f32 %v4543, %v4556
        %v4558 = vpop.f32.mrf.mxu0
        %4559 = vdwg.mxu0
        %4560 = vmatpush.bf16.msra.mxu0 %v4444
        %4561 = vmatpush.bf16.msra.mxu0 %v4442
        %4562 = vmatpush.bf16.msra.mxu0 %v4440
        %4563 = vmatpush.bf16.msra.mxu0 %v4438
        %4564 = vmatpush.bf16.msra.mxu0 %v4436
        %4565 = vmatpush.bf16.msra.mxu0 %v4434
        %4566 = vmatpush.bf16.msra.mxu0 %v4432
        %4567 = vmatpush.bf16.msra.mxu0 %v4430
        %4568 = vmatmul.bf16.gmra.mxu0 %v4154
        %v4569 = vpop.f32.mrf.mxu0
        %v4570 = vadd.f32 %v4557, %v4569
        %v4571 = vpop.f32.mrf.mxu0
        %4572 = vdwg.mxu0
        %4573 = vmatpush.bf16.msra.mxu0 %v4460
        %4574 = vmatpush.bf16.msra.mxu0 %v4458
        %4575 = vmatpush.bf16.msra.mxu0 %v4456
        %4576 = vmatpush.bf16.msra.mxu0 %v4454
        %4577 = vmatpush.bf16.msra.mxu0 %v4452
        %4578 = vmatpush.bf16.msra.mxu0 %v4450
        %4579 = vmatpush.bf16.msra.mxu0 %v4448
        %4580 = vmatpush.bf16.msra.mxu0 %v4446
        %4581 = vmatmul.bf16.gmra.mxu0 %v4155
        %v4582 = vpop.f32.mrf.mxu0
        %v4583 = vadd.f32 %v4570, %v4582
        %v4584 = vpop.f32.mrf.mxu0
        %4585 = vdwg.mxu0
        %4586 = vmatpush.bf16.msra.mxu0 %v4476
        %4587 = vmatpush.bf16.msra.mxu0 %v4474
        %4588 = vmatpush.bf16.msra.mxu0 %v4472
        %4589 = vmatpush.bf16.msra.mxu0 %v4470
        %4590 = vmatpush.bf16.msra.mxu0 %v4468
        %4591 = vmatpush.bf16.msra.mxu0 %v4466
        %4592 = vmatpush.bf16.msra.mxu0 %v4464
        %4593 = vmatpush.bf16.msra.mxu0 %v4462
        %4594 = vmatmul.bf16.gmra.mxu0 %v4156
        %v4595 = vpop.f32.mrf.mxu0
        %v4596 = vadd.f32 %v4583, %v4595
        %v4597 = vpop.f32.mrf.mxu0
        %4598 = vdwg.mxu0
        %4599 = vmatpush.bf16.msra.mxu0 %v4429
        %4600 = vmatpush.bf16.msra.mxu0 %v4427
        %4601 = vmatpush.bf16.msra.mxu0 %v4425
        %4602 = vmatpush.bf16.msra.mxu0 %v4423
        %4603 = vmatpush.bf16.msra.mxu0 %v4421
        %4604 = vmatpush.bf16.msra.mxu0 %v4419
        %4605 = vmatpush.bf16.msra.mxu0 %v4417
        %4606 = vmatpush.bf16.msra.mxu0 %v4415
        %4607 = vmatmul.bf16.gmra.mxu0 %v4153
        %v4608 = vpop.f32.mrf.mxu0
        %v4609 = vadd.f32 %v4544, %v4608
        %v4610 = vpop.f32.mrf.mxu0
        %4611 = vdwg.mxu0
        %4612 = vmatpush.bf16.msra.mxu0 %v4445
        %4613 = vmatpush.bf16.msra.mxu0 %v4443
        %4614 = vmatpush.bf16.msra.mxu0 %v4441
        %4615 = vmatpush.bf16.msra.mxu0 %v4439
        %4616 = vmatpush.bf16.msra.mxu0 %v4437
        %4617 = vmatpush.bf16.msra.mxu0 %v4435
        %4618 = vmatpush.bf16.msra.mxu0 %v4433
        %4619 = vmatpush.bf16.msra.mxu0 %v4431
        %4620 = vmatmul.bf16.gmra.mxu0 %v4154
        %v4621 = vpop.f32.mrf.mxu0
        %v4622 = vadd.f32 %v4609, %v4621
        %v4623 = vpop.f32.mrf.mxu0
        %4624 = vdwg.mxu0
        %4625 = vmatpush.bf16.msra.mxu0 %v4461
        %4626 = vmatpush.bf16.msra.mxu0 %v4459
        %4627 = vmatpush.bf16.msra.mxu0 %v4457
        %4628 = vmatpush.bf16.msra.mxu0 %v4455
        %4629 = vmatpush.bf16.msra.mxu0 %v4453
        %4630 = vmatpush.bf16.msra.mxu0 %v4451
        %4631 = vmatpush.bf16.msra.mxu0 %v4449
        %4632 = vmatpush.bf16.msra.mxu0 %v4447
        %4633 = vmatmul.bf16.gmra.mxu0 %v4155
        %v4634 = vpop.f32.mrf.mxu0
        %v4635 = vadd.f32 %v4622, %v4634
        %v4636 = vpop.f32.mrf.mxu0
        %4637 = vdwg.mxu0
        %4638 = vmatpush.bf16.msra.mxu0 %v4477
        %4639 = vmatpush.bf16.msra.mxu0 %v4475
        %4640 = vmatpush.bf16.msra.mxu0 %v4473
        %4641 = vmatpush.bf16.msra.mxu0 %v4471
        %4642 = vmatpush.bf16.msra.mxu0 %v4469
        %4643 = vmatpush.bf16.msra.mxu0 %v4467
        %4644 = vmatpush.bf16.msra.mxu0 %v4465
        %4645 = vmatpush.bf16.msra.mxu0 %v4463
        %4646 = vmatmul.bf16.gmra.mxu0 %v4156
        %v4647 = vpop.f32.mrf.mxu0
        %v4648 = vadd.f32 %v4635, %v4647
        %v4649 = vpop.f32.mrf.mxu0
        %4650 = vdwg.mxu0
        %v4651 = vmax.f32 %v4596, 0.0
        %v4652 = vmax.f32 %v4648, 0.0
        %v4653 = vpack.c.bf16 %v4651, %v4651
        %v4654 = vpack.c.bf16 %v4652, %v4652
        %v4655 = vld [vmem:[%s109] sm:$0xf]
        %v4656 = vld [vmem:[%s109 + $0x4] sm:$0xf]
        %v4657 = vld [vmem:[%s109 + $0x8] sm:$0xf]
        %v4658 = vld [vmem:[%s109 + $0xc] sm:$0xf]
        %v4659 = vld [vmem:[%s109 + $0x10] sm:$0xf]
        %v4660 = vld [vmem:[%s109 + $0x14] sm:$0xf]
        %v4661 = vld [vmem:[%s109 + $0x18] sm:$0xf]
        %v4662 = vld [vmem:[%s109 + $0x1c] sm:$0xf]
        %v4663 = vld [vmem:[%s109 + $0x20] sm:$0xf]
        %v4664 = vld [vmem:[%s109 + $0x24] sm:$0xf]
        %v4665 = vld [vmem:[%s109 + $0x28] sm:$0xf]
        %v4666 = vld [vmem:[%s109 + $0x2c] sm:$0xf]
        %v4667 = vld [vmem:[%s109 + $0x30] sm:$0xf]
        %v4668 = vld [vmem:[%s109 + $0x34] sm:$0xf]
        %v4669 = vld [vmem:[%s109 + $0x38] sm:$0xf]
        %v4670 = vld [vmem:[%s109 + $0x3c] sm:$0xf]
        %v4671 = vld [vmem:[%s109 + $0x40] sm:$0xf]
        %v4672 = vld [vmem:[%s109 + $0x44] sm:$0xf]
        %v4673 = vld [vmem:[%s109 + $0x48] sm:$0xf]
        %v4674 = vld [vmem:[%s109 + $0x4c] sm:$0xf]
        %v4675 = vld [vmem:[%s109 + $0x50] sm:$0xf]
        %v4676 = vld [vmem:[%s109 + $0x54] sm:$0xf]
        %v4677 = vld [vmem:[%s109 + $0x58] sm:$0xf]
        %v4678 = vld [vmem:[%s109 + $0x5c] sm:$0xf]
        %v4679 = vld [vmem:[%s109 + $0x60] sm:$0xf]
        %v4680 = vld [vmem:[%s109 + $0x64] sm:$0xf]
        %v4681 = vld [vmem:[%s109 + $0x68] sm:$0xf]
        %v4682 = vld [vmem:[%s109 + $0x6c] sm:$0xf]
        %v4683 = vld [vmem:[%s109 + $0x70] sm:$0xf]
        %v4684 = vld [vmem:[%s109 + $0x74] sm:$0xf]
        %v4685 = vld [vmem:[%s109 + $0x78] sm:$0xf]
        %v4686 = vld [vmem:[%s109 + $0x7c] sm:$0xf]
        %v4687 = vld [vmem:[#allocation22] sm:$0x1]
        %v4720 = vunpack.c.l.b16 %v4655
        %v4721 = vunpack.c.l.b16 %v4656
        %v4722 = vunpack.c.l.b16 %v4657
        %v4723 = vunpack.c.l.b16 %v4658
        %v4724 = vunpack.c.l.b16 %v4659
        %v4725 = vunpack.c.l.b16 %v4660
        %v4726 = vunpack.c.l.b16 %v4661
        %v4727 = vunpack.c.l.b16 %v4662
        %v4728 = vunpack.c.l.b16 %v4663
        %v4729 = vunpack.c.l.b16 %v4664
        %v4730 = vunpack.c.l.b16 %v4665
        %v4731 = vunpack.c.l.b16 %v4666
        %v4732 = vunpack.c.l.b16 %v4667
        %v4733 = vunpack.c.l.b16 %v4668
        %v4734 = vunpack.c.l.b16 %v4669
        %v4735 = vunpack.c.l.b16 %v4670
        %v4736 = vunpack.c.l.b16 %v4671
        %v4737 = vunpack.c.l.b16 %v4672
        %v4738 = vunpack.c.l.b16 %v4673
        %v4739 = vunpack.c.l.b16 %v4674
        %v4740 = vunpack.c.l.b16 %v4675
        %v4741 = vunpack.c.l.b16 %v4676
        %v4742 = vunpack.c.l.b16 %v4677
        %v4743 = vunpack.c.l.b16 %v4678
        %v4744 = vunpack.c.l.b16 %v4679
        %v4745 = vunpack.c.l.b16 %v4680
        %v4746 = vunpack.c.l.b16 %v4681
        %v4747 = vunpack.c.l.b16 %v4682
        %v4748 = vunpack.c.l.b16 %v4683
        %v4749 = vunpack.c.l.b16 %v4684
        %v4750 = vunpack.c.l.b16 %v4685
        %v4751 = vunpack.c.l.b16 %v4686
        %v4752 = vpack.c.b16 %v4721, %v4720
        %v4753 = vpack.c.b16 %v4723, %v4722
        %v4754 = vpack.c.b16 %v4725, %v4724
        %v4755 = vpack.c.b16 %v4727, %v4726
        %v4756 = vpack.c.b16 %v4729, %v4728
        %v4757 = vpack.c.b16 %v4731, %v4730
        %v4758 = vpack.c.b16 %v4733, %v4732
        %v4759 = vpack.c.b16 %v4735, %v4734
        %v4760 = vpack.c.b16 %v4737, %v4736
        %v4761 = vpack.c.b16 %v4739, %v4738
        %v4762 = vpack.c.b16 %v4741, %v4740
        %v4763 = vpack.c.b16 %v4743, %v4742
        %v4764 = vpack.c.b16 %v4745, %v4744
        %v4765 = vpack.c.b16 %v4747, %v4746
        %v4766 = vpack.c.b16 %v4749, %v4748
        %v4767 = vpack.c.b16 %v4751, %v4750
        %4784 = vmatpush.bf16.msra.mxu0 %v4759
        %4785 = vmatpush.bf16.msra.mxu0 %v4758
        %4786 = vmatpush.bf16.msra.mxu0 %v4757
        %4787 = vmatpush.bf16.msra.mxu0 %v4756
        %4788 = vmatpush.bf16.msra.mxu0 %v4755
        %4789 = vmatpush.bf16.msra.mxu0 %v4754
        %4790 = vmatpush.bf16.msra.mxu0 %v4753
        %4791 = vmatpush.bf16.msra.mxu0 %v4752
        %4792 = vmatmul.bf16.gmra.mxu0 %v4653
        %v4793 = vpop.f32.mrf.mxu0
        %v4794 = vadd.f32 %v4687, %v4793
        %v4795 = vpop.f32.mrf.mxu0
        %4796 = vdwg.mxu0
        %4797 = vmatpush.bf16.msra.mxu0 %v4767
        %4798 = vmatpush.bf16.msra.mxu0 %v4766
        %4799 = vmatpush.bf16.msra.mxu0 %v4765
        %4800 = vmatpush.bf16.msra.mxu0 %v4764
        %4801 = vmatpush.bf16.msra.mxu0 %v4763
        %4802 = vmatpush.bf16.msra.mxu0 %v4762
        %4803 = vmatpush.bf16.msra.mxu0 %v4761
        %4804 = vmatpush.bf16.msra.mxu0 %v4760
        %4805 = vmatmul.bf16.gmra.mxu0 %v4654
        %v4806 = vpop.f32.mrf.mxu0
        %v4807 = vadd.f32 %v4794, %v4806
        %v4808 = vpop.f32.mrf.mxu0
        %4809 = vdwg.mxu0
        %vm4810 = vcmask 32768
        %4811 = vst.msk [vmem:[%s1856] sm:$0x1] %vm4810, %v4807
        %s4812 = sand.u32 %s1328, 1
        %s4813 = scalar_lea.sflag [#allocation4], %s4812
        %s4814 = sand.u32 %s1328, 1
        %s4815 = scalar_lea.vmem [#allocation23], %s4814
        // Predicated region
        $region297: #{irms_forward.1} parent=243 // pred_check
          %p4816 = pneg %p1338
        $region298: #{irms_forward.1} parent=243 // pred_check_branch
          %4818 = sbr.rel (%p4816) target = $region300
        $region299: #{irms_forward.1} parent=243 // pred_region
          %4820 = vsyncadd %s4813, 0
          %s4821 = scalar_lea.hbm %s113, %s134
          %s4823 = sshll.u32 %s4815, 4
          %s4824 = int_to_ptr.vmem [resolvable:$true] %s4823
          %s4825 = sshll.u32 %s4821, 4
          %s4826 = int_to_ptr.hbm [resolvable:$true] %s4825
          %4828 = dma.vmem_to_hbm [thread:$0]  %s4824, 16, %s4826, %s4813
        $region300: #{irms_forward.1} parent=243 // pred_fallthru
          _
      $region244: #{irms_forward.1} parent=5 // pred_fallthru
        _
      %p4829 = scmp.le.s32.totalorder 2, %s129
      // Predicated region
      $region301: #{irms_forward.1} parent=5 // pred_check
        %p4830 = pneg %p4829
      $region302: #{irms_forward.1} parent=5 // pred_check_branch
        %4832 = sbr.rel (%p4830) target = $region304
      $region303: #{irms_forward.1} parent=5 // pred_region
        %s4833 = ssub.s32 %s129, 2
        // Predicated region
        $region305: #{irms_forward.1} parent=303 // pred_check
          %p4834 = pneg %p1344
        $region306: #{irms_forward.1} parent=303 // pred_check_branch
          %4836 = sbr.rel (%p4834) target = $region308
        $region307: #{irms_forward.1} parent=303 // pred_region
          %s4837 = sand.u32 %s1329, 1
          %s4838 = scalar_lea.sflag [#allocation4], %s4837
          %s4839 = sand.u32 %s1329, 1
          %s4840 = scalar_lea.vmem [#allocation23], %s4839
          %4842 = dma.done %s4838, 16
        $region308: #{irms_forward.1} parent=303 // pred_fallthru
          _
      $region304: #{irms_forward.1} parent=5 // pred_fallthru
        _
    $region6: #{irms_forward.1} parent=1 // loop_footer
      %s133 = sadd.s32 1, %s129
    $region7: #{irms_forward.1} parent=1 // loop_footer_branch
      %128 = sbr.rel target = $region3
    $region8: #{irms_forward.1} parent=1 // loop_exit
      _
    %4843 = vsyncpa [#allocation3], 1
    %s4844 = scalar_lea.sflag [#allocation3], 1
    %4845 = vsyncpa %s4844, 1
    %4846 = vsyncpa [#allocation6], 1
    %4847 = vsyncpa [#allocation9], 1
    %4848 = vsyncpa [#allocation12], 1
    %4849 = vsyncpa [#allocation15], 1
    %4850 = vsyncpa [#allocation18], 1
    %4851 = vsyncpa [#allocation21], 1
    %4852 = vsyncpa [#allocation4], 1
    %s4853 = scalar_lea.sflag [#allocation4], 1
    %4854 = vsyncpa %s4853, 1

</llo_original>
